<compile_context>
chip_gen: v7x
topology: tpu7x:2x2x1
jax: 0.10.0
libtpu: 0.0.40
codegen_flags: <defaults>
</compile_context>

<pallas_src>
import functools

import jax
import jax.numpy as jnp
from jax import lax
from jax.experimental import pallas as pl
from jax.experimental.pallas import tpu as pltpu


def _round_up(x, m):
    return ((x + m - 1) // m) * m


def _pick_tile_rows(n, cap):
    """Row-tile size: a multiple of 8 that divides n when possible.

    If n has no multiple-of-8 divisor <= cap we either take the full extent
    (n <= cap) or return a multiple-of-8 tile and let the caller use a
    pl.cdiv grid (partial last tile, masked pooling in kernel 1)."""
    cap = max(8, min(cap, n))
    if n % 8 == 0:
        best = 8
        t = 8
        while t <= cap:
            if n % t == 0:
                best = t
            t += 8
        return best
    if n <= cap:
        return n                       # single full-extent block
    return (cap // 8) * 8              # cdiv grid + masked tail


def _vmem_limit_bytes():
    # v7x has only 64 MiB physical VMEM per core -> leave headroom there;
    # v5e/v6e have 128 MiB -> allow bigger blocks / deeper buffering.
    try:
        kind = jax.devices()[0].device_kind.lower()
    except Exception:
        kind = ""
    if "v7" in kind:
        return 48 * 1024 * 1024
    return 96 * 1024 * 1024


# ----------------------------------------------------------------------------
# Kernel 1: 1x1 conv (bf16 MXU / tiny-K VPU FMA) + folded BN + Hardswish
#           + per-tile partial channel sum/max pools (combined in the wrapper)
# ----------------------------------------------------------------------------
def conv_bn_act_pool_kernel(x_ref, w_ref, scale_ref, bias_ref,
                            y_ref, sum_ref, max_ref, *, hw, tile):
    # x_ref: (1, T, C1) bf16, w_ref: (C1, C2) bf16, scale/bias: (1, C2) f32
    # y_ref: (1, T, C2) bf16; sum_ref/max_ref: (1, 1, 1, C2) f32 (per tile)
    x = x_ref[0]                          # (T, C1) bf16
    w = w_ref[...]                        # (C1, C2) bf16
    c1 = x.shape[-1]

    if c1 <= 4:
        # K is tiny: an MXU pass is pure latency; unrolled VPU FMA in f32.
        xf = x.astype(jnp.float32)
        wf = w.astype(jnp.float32)
        acc = xf[:, 0:1] * wf[0:1, :]
        for c in range(1, c1):
            acc = acc + xf[:, c:c + 1] * wf[c:c + 1, :]
    else:
        # Real channel counts: bf16 MXU inputs, f32 accumulation.
        acc = jnp.dot(x, w, preferred_element_type=jnp.float32)

    y = acc * scale_ref[...] + bias_ref[...]           # folded BN (f32)
    # Hardswish: y * relu6(y + 3) / 6
    y = y * jnp.minimum(jnp.maximum(y + 3.0, 0.0), 6.0) * (1.0 / 6.0)
    y_ref[0] = y.astype(y_ref.dtype)                   # bf16 staging to HBM

    # Partial channel pools for this tile (f32, computed pre-cast).
    if hw % tile != 0:
        # cdiv grid: mask rows past the logical end (garbage reads from the
        # padded block must not pollute the pools).  A tile always contains at
        # least one valid row, so -inf can never survive the final max.
        base = pl.program_id(1) * tile
        rows = base + lax.broadcasted_iota(jnp.int32, (tile, 1), 0)
        valid = rows < hw
        y_s = jnp.where(valid, y, 0.0)
        y_m = jnp.where(valid, y, -jnp.inf)
    else:
        y_s = y
        y_m = y
    sum_ref[0, 0] = jnp.sum(y_s, axis=0, keepdims=True)
    max_ref[0, 0] = jnp.max(y_m, axis=0, keepdims=True)


# ----------------------------------------------------------------------------
# Kernel 2: per H-tile channel mean/max of (y * ca)  ->  spatial maps
# ----------------------------------------------------------------------------
def reduce_kernel(y_ref, ca_ref, avg_ref, max_ref):
    # y_ref: (1, TH, W, C2) bf16, ca_ref: (1, 1, C2) f32
    # avg_ref/max_ref: (1, TH, W) f32
    y = y_ref[0].astype(jnp.float32)      # (TH, W, C2)
    ca = ca_ref[0]                        # (1, C2)
    yc = y * ca[None, :, :]
    c2 = y.shape[-1]
    avg_ref[0] = jnp.sum(yc, axis=-1) * (1.0 / float(c2))
    max_ref[0] = jnp.max(yc, axis=-1)


# ----------------------------------------------------------------------------
# Kernel 3: 7x7 spatial-attention conv per image (lane-dense, roll-based)
# ----------------------------------------------------------------------------
def spatial_conv_kernel(saw_ref, avg_ref, max_ref, sa_ref, pad_ref, roll_ref):
    # saw_ref: (98,) SMEM 7x7x2 conv weights, index = kh*14 + kw*2 + ci
    # avg_ref/max_ref: (1, H, W) f32; sa_ref: (1, H, W) f32
    # pad_ref: (2*Hp, Wp) scratch; roll_ref: (14*Hp, Wp) scratch (7 kw slabs)
    _, H, W = avg_ref.shape
    two_hp, Wp = pad_ref.shape
    Hp = two_hp // 2
    OFF = 8  # data row offset inside each Hp half (8-aligned stores)

    # Zero-extended, lane-dense stacked maps: avg in rows [OFF, OFF+H) of the
    # first half, max in rows [Hp+OFF, Hp+OFF+H); cols [0, W).  The 7x7 border
    # (pad=3) is handled by reads/rolls landing in the zero region
    # (requires Hp >= H + 11 and Wp >= W + 3; the wrapper asserts this).
    pad_ref[...] = jnp.zeros(pad_ref.shape, pad_ref.dtype)
    pad_ref[OFF:OFF + H, 0:W] = avg_ref[0]
    pad_ref[Hp + OFF:Hp + OFF + H, 0:W] = max_ref[0]

    # Only 7 XLU lane rolls total: one per kw moves BOTH stacked maps; the kh
    # window walk below is plain sublane-offset loads (no XLU).
    pad = pad_ref[...]
    for kw in range(7):
        sl = (3 - kw) % Wp
        rolled = pltpu.roll(pad, sl, axis=1) if sl else pad
        roll_ref[pl.ds(kw * 2 * Hp, 2 * Hp), :] = rolled

    # 49-tap cross-correlation with 4 independent partial accumulators.
    accs = [jnp.zeros((H, Wp), jnp.float32) for _ in range(4)]
    idx = 0
    for kh in range(7):
        for kw in range(7):
            base = kw * 2 * Hp
            a = roll_ref[pl.ds(base + OFF - 3 + kh, H), :]
            m = roll_ref[pl.ds(base + Hp + OFF - 3 + kh, H), :]
            w_a = saw_ref[kh * 14 + kw * 2 + 0]
            w_m = saw_ref[kh * 14 + kw * 2 + 1]
            accs[idx % 4] = accs[idx % 4] + (a * w_a + m * w_m)
            idx += 1
    s = (accs[0] + accs[1]) + (accs[2] + accs[3])

    sa_ref[0] = jax.nn.sigmoid(s[:, 0:W])
    # TODO(synk): for narrow maps (W<=58) pack several image rows side by side
    # in the lane axis of the padded scratch to recover wasted lane width.


# ----------------------------------------------------------------------------
# Kernel 4: apply both attentions  o = y * ca * sa   (H-tiled)
# ----------------------------------------------------------------------------
def apply_kernel(y_ref, ca_ref, sa_ref, o_ref):
    # y_ref: (1, TH, W, C2) bf16, ca_ref: (1, 1, C2) f32, sa_ref: (1, TH, W)
    y = y_ref[0].astype(jnp.float32)
    ca = ca_ref[0]                        # (1, C2)
    sa = sa_ref[0]                        # (TH, W)
    o_ref[0] = (y * ca[None, :, :]) * sa[:, :, None]
    # TODO(synk): stage sa in a sublane-major (TH*W, 1) layout to avoid the
    # hidden relayout when broadcasting over the C2 lane axis.


# ----------------------------------------------------------------------------
# Wrapper
# ----------------------------------------------------------------------------
@functools.partial(jax.jit, static_argnames=("tile_rows", "tile_h"))
def conv_cbam_forward(x_nchw, conv_w, bn_scale, bn_bias, fc1_w, fc2_w,
                      sa_w_flat, *, tile_rows=1024, tile_h=64):
    N, C1, H, W = x_nchw.shape
    C2 = conv_w.shape[1]
    HW = H * W
    vmem = _vmem_limit_bytes()

    # NCHW -> (N, H*W, C1) channels-last rows, cast to bf16 (fuses with the
    # transpose in XLA and halves the kernel-1 x read).
    x3 = jnp.transpose(x_nchw, (0, 2, 3, 1)).reshape(N, HW, C1)
    x3 = x3.astype(jnp.bfloat16)
    w_bf = conv_w.astype(jnp.bfloat16)

    tile = _pick_tile_rows(HW, tile_rows)
    n_tiles = pl.cdiv(HW, tile)
    grid1 = (N, n_tiles)

    kernel1 = functools.partial(conv_bn_act_pool_kernel, hw=HW, tile=tile)

    y3, sum_p, max_p = pl.pallas_call(
        kernel1,
        grid=grid1,
        in_specs=[
            pl.BlockSpec((1, tile, C1), lambda n, t: (n, t, 0)),
            pl.BlockSpec((C1, C2), lambda n, t: (0, 0)),
            pl.BlockSpec((1, C2), lambda n, t: (0, 0)),
            pl.BlockSpec((1, C2), lambda n, t: (0, 0)),
        ],
        out_specs=[
            pl.BlockSpec((1, tile, C2), lambda n, t: (n, t, 0)),
            pl.BlockSpec((1, 1, 1, C2), lambda n, t: (n, t, 0, 0)),
            pl.BlockSpec((1, 1, 1, C2), lambda n, t: (n, t, 0, 0)),
        ],
        out_shape=(
            jax.ShapeDtypeStruct((N, HW, C2), jnp.bfloat16),
            jax.ShapeDtypeStruct((N, n_tiles, 1, C2), jnp.float32),
            jax.ShapeDtypeStruct((N, n_tiles, 1, C2), jnp.float32),
        ),
        compiler_params=pltpu.CompilerParams(
            dimension_semantics=("parallel", "parallel"),
            vmem_limit_bytes=vmem,
        ),
    )(x3, w_bf, bn_scale, bn_bias)

    # ---- channel attention MLP + sigmoid in plain JAX (tiny, O(N*C2*CR)) ----
    avg_pool = jnp.sum(sum_p[:, :, 0, :], axis=1) * (1.0 / float(HW))   # (N,C2)
    max_pool = jnp.max(max_p[:, :, 0, :], axis=1)                        # (N,C2)

    def mlp(p):
        return jnp.maximum(p @ fc1_w, 0.0) @ fc2_w

    ca = jax.nn.sigmoid(mlp(avg_pool) + mlp(max_pool))                   # (N,C2)
    ca3 = ca.reshape(N, 1, C2).astype(jnp.float32)

    y4 = y3.reshape(N, H, W, C2)          # free metadata reshape

    # ---- reduce pass: per-pixel channel mean/max of y*ca, H-tiled -----------
    th = _pick_tile_rows(H, tile_h)
    grid2 = (N, pl.cdiv(H, th))

    avg_map, max_map = pl.pallas_call(
        reduce_kernel,
        grid=grid2,
        in_specs=[
            pl.BlockSpec((1, th, W, C2), lambda n, h: (n, h, 0, 0)),
            pl.BlockSpec((1, 1, C2), lambda n, h: (n, 0, 0)),
        ],
        out_specs=[
            pl.BlockSpec((1, th, W), lambda n, h: (n, h, 0)),
            pl.BlockSpec((1, th, W), lambda n, h: (n, h, 0)),
        ],
        out_shape=(
            jax.ShapeDtypeStruct((N, H, W), jnp.float32),
            jax.ShapeDtypeStruct((N, H, W), jnp.float32),
        ),
        compiler_params=pltpu.CompilerParams(
            dimension_semantics=("parallel", "parallel"),
            vmem_limit_bytes=vmem,
        ),
    )(y4, ca3)

    # ---- 7x7 spatial-attention conv, per image ------------------------------
    Hp = _round_up(H + 11, 8)             # data at row offset 8, reads up to H+10
    Wp = _round_up(W + 6, 128)            # lane-dense
    assert Hp >= H + 11 and Wp >= W + 6, "padding too small for 7x7 conv"

    sa_map = pl.pallas_call(
        spatial_conv_kernel,
        grid=(N,),
        in_specs=[
            pl.BlockSpec(memory_space=pltpu.MemorySpace.SMEM),
            pl.BlockSpec((1, H, W), lambda n: (n, 0, 0)),
            pl.BlockSpec((1, H, W), lambda n: (n, 0, 0)),
        ],
        out_specs=pl.BlockSpec((1, H, W), lambda n: (n, 0, 0)),
        out_shape=jax.ShapeDtypeStruct((N, H, W), jnp.float32),
        scratch_shapes=[
            pltpu.VMEM((2 * Hp, Wp), jnp.float32),
            pltpu.VMEM((14 * Hp, Wp), jnp.float32),
        ],
        compiler_params=pltpu.CompilerParams(
            dimension_semantics=("parallel",),
            vmem_limit_bytes=vmem,
        ),
    )(sa_w_flat, avg_map, max_map)

    # ---- apply pass: o = y * ca * sa, H-tiled --------------------------------
    out4 = pl.pallas_call(
        apply_kernel,
        grid=grid2,
        in_specs=[
            pl.BlockSpec((1, th, W, C2), lambda n, h: (n, h, 0, 0)),
            pl.BlockSpec((1, 1, C2), lambda n, h: (n, 0, 0)),
            pl.BlockSpec((1, th, W), lambda n, h: (n, h, 0)),
        ],
        out_specs=pl.BlockSpec((1, th, W, C2), lambda n, h: (n, h, 0, 0)),
        out_shape=jax.ShapeDtypeStruct((N, H, W, C2), jnp.float32),
        compiler_params=pltpu.CompilerParams(
            dimension_semantics=("parallel", "parallel"),
            vmem_limit_bytes=vmem,
        ),
    )(y4, ca3, sa_map)

    # back to PyTorch NCHW
    return jnp.transpose(out4, (0, 3, 1, 2))


# ----------------------------------------------------------------------------
# Pure-JAX reference (same math, NCHW like PyTorch) for validation
# ----------------------------------------------------------------------------
def reference(x_nchw, conv_w, bn_scale, bn_bias, fc1_w, fc2_w, sa_w_oihw):
    y = jnp.einsum('nchw,cd->ndhw', x_nchw, conv_w)
    y = y * bn_scale[0][None, :, None, None] + bn_bias[0][None, :, None, None]
    y = y * jnp.clip(y + 3.0, 0.0, 6.0) / 6.0
    avg = y.mean(axis=(2, 3))
    mx = y.max(axis=(2, 3))
    mlp = lambda p: jnp.maximum(p @ fc1_w, 0.0) @ fc2_w
    ca = jax.nn.sigmoid(mlp(avg) + mlp(mx))
    y = y * ca[:, :, None, None]
    cat = jnp.concatenate([y.mean(axis=1, keepdims=True),
                           y.max(axis=1, keepdims=True)], axis=1)
    s = lax.conv_general_dilated(cat, sa_w_oihw, (1, 1), 'SAME',
                                 dimension_numbers=('NCHW', 'OIHW', 'NCHW'))
    return y * jax.nn.sigmoid(s)


if __name__ == "__main__":
    key = jax.random.PRNGKey(0)
    N, C1, H, W = 2, 4, 16, 16
    C2 = 32                      # needs C2 >= 16 so that C2 // 16 >= 1
    CR = C2 // 16
    EPS = 1e-5

    k = jax.random.split(key, 6)
    # PyTorch conv weight (C2, C1, 1, 1) -> our (C1, C2)
    conv_w = 0.2 * jax.random.normal(k[0], (C1, C2), jnp.float32)
    # BatchNorm (inference-mode, folded): deterministic non-trivial stats
    gamma = 1.0 + 0.05 * jnp.arange(C2, dtype=jnp.float32)
    beta = 0.01 * jnp.arange(C2, dtype=jnp.float32)
    run_mean = 0.02 * jnp.arange(C2, dtype=jnp.float32)
    run_var = 1.0 + 0.03 * jnp.arange(C2, dtype=jnp.float32)
    scale = gamma / jnp.sqrt(run_var + EPS)
    bias = beta - run_mean * scale
    bn_scale = scale.reshape(1, C2)
    bn_bias = bias.reshape(1, C2)
    # ChannelAttention 1x1 convs (bias=False): fc1 (CR,C2,1,1), fc2 (C2,CR,1,1)
    fc1_w = 0.3 * jax.random.normal(k[1], (C2, CR), jnp.float32)   # (C2, CR)
    fc2_w = 0.3 * jax.random.normal(k[2], (CR, C2), jnp.float32)   # (CR, C2)
    # SpatialAttention 7x7 conv weight (1, 2, 7, 7), bias=False
    sa_w_oihw = 0.1 * jax.random.normal(k[3], (1, 2, 7, 7), jnp.float32)
    # flatten as [kh, kw, ci] -> index kh*14 + kw*2 + ci (SMEM scalar table)
    sa_w_flat = jnp.transpose(sa_w_oihw[0], (1, 2, 0)).reshape(-1)

    x = jax.random.normal(k[4], (N, C1, H, W), jnp.float32)

    # tile_rows=128 / tile_h=8 exercise the multi-tile pooling and the H-tiled
    # reduce/apply passes; production maps should use larger tiles (defaults).
    out = conv_cbam_forward(x, conv_w, bn_scale, bn_bias, fc1_w, fc2_w,
                            sa_w_flat, tile_rows=128, tile_h=8)
    out = jax.block_until_ready(out)

    ref = reference(x, conv_w, bn_scale, bn_bias, fc1_w, fc2_w, sa_w_oihw)
    assert out.shape == (N, C2, H, W)
    # bf16 staging of x/w/y (f32 accumulation everywhere) -> loosened tolerance
    err = float(jnp.max(jnp.abs(out - ref)))
    assert jnp.allclose(out, ref, rtol=5e-2, atol=5e-2), \
        f"mismatch vs reference (max abs err {err})"

    print("KERNEL_OK")
</pallas_src>

<mosaic_0001>
module attributes {stable_mosaic.version = 11 : i64} {
  func.func @conv_bn_act_pool_kernel(%arg0: i32, %arg1: i32, %arg2: memref<1x128x4xbf16, #tpu.memory_space<vmem>>, %arg3: memref<4x32xbf16, #tpu.memory_space<vmem>>, %arg4: memref<1x32xf32, #tpu.memory_space<vmem>>, %arg5: memref<1x32xf32, #tpu.memory_space<vmem>>, %arg6: memref<1x128x32xbf16, #tpu.memory_space<vmem>>, %arg7: memref<1x1x1x32xf32, #tpu.memory_space<vmem>>, %arg8: memref<1x1x1x32xf32, #tpu.memory_space<vmem>>) attributes {dimension_semantics = [#tpu.dimension_semantics<parallel>, #tpu.dimension_semantics<parallel>], iteration_bounds = array<i64: 2, 2>, scalar_prefetch = 0 : i64, scratch_operands = 0 : i64, tpu.core_type = #tpu.core_type<tc>, window_params = [{transform_indices = @transform_0, window_bounds = array<i64: 1, 128, 4>}, {pipeline_mode = #tpu.pipeline_mode<synchronous>, transform_indices = @transform_1, window_bounds = array<i64: 4, 32>}, {pipeline_mode = #tpu.pipeline_mode<synchronous>, transform_indices = @transform_2, window_bounds = array<i64: 1, 32>}, {pipeline_mode = #tpu.pipeline_mode<synchronous>, transform_indices = @transform_3, window_bounds = array<i64: 1, 32>}, {transform_indices = @transform_4, window_bounds = array<i64: 1, 128, 32>}, {transform_indices = @transform_5, window_bounds = array<i64: 1, 1, 1, 32>}, {transform_indices = @transform_6, window_bounds = array<i64: 1, 1, 1, 32>}]} {
    %c0 = arith.constant 0 : index
    %c0_0 = arith.constant 0 : index
    %c0_1 = arith.constant 0 : index
    %0 = vector.load %arg2[%c0, %c0_0, %c0_1] : memref<1x128x4xbf16, #tpu.memory_space<vmem>>, vector<1x128x4xbf16>
    %1 = vector.shape_cast %0 : vector<1x128x4xbf16> to vector<128x4xbf16>
    %c0_2 = arith.constant 0 : index
    %c0_3 = arith.constant 0 : index
    %2 = vector.load %arg3[%c0_2, %c0_3] : memref<4x32xbf16, #tpu.memory_space<vmem>>, vector<4x32xbf16>
    %3 = arith.extf %1 : vector<128x4xbf16> to vector<128x4xf32>
    %4 = arith.extf %2 : vector<4x32xbf16> to vector<4x32xf32>
    %5 = vector.extract_strided_slice %3 {offsets = [0, 0], sizes = [128, 1], strides = [1, 1]} : vector<128x4xf32> to vector<128x1xf32>
    %6 = vector.extract_strided_slice %4 {offsets = [0, 0], sizes = [1, 32], strides = [1, 1]} : vector<4x32xf32> to vector<1x32xf32>
    %7 = vector.broadcast %5 : vector<128x1xf32> to vector<128x32xf32>
    %8 = vector.broadcast %6 : vector<1x32xf32> to vector<128x32xf32>
    %9 = arith.mulf %7, %8 : vector<128x32xf32>
    %10 = vector.extract_strided_slice %3 {offsets = [0, 1], sizes = [128, 1], strides = [1, 1]} : vector<128x4xf32> to vector<128x1xf32>
    %11 = vector.extract_strided_slice %4 {offsets = [1, 0], sizes = [1, 32], strides = [1, 1]} : vector<4x32xf32> to vector<1x32xf32>
    %12 = vector.broadcast %10 : vector<128x1xf32> to vector<128x32xf32>
    %13 = vector.broadcast %11 : vector<1x32xf32> to vector<128x32xf32>
    %14 = arith.mulf %12, %13 : vector<128x32xf32>
    %15 = arith.addf %9, %14 : vector<128x32xf32>
    %16 = vector.extract_strided_slice %3 {offsets = [0, 2], sizes = [128, 1], strides = [1, 1]} : vector<128x4xf32> to vector<128x1xf32>
    %17 = vector.extract_strided_slice %4 {offsets = [2, 0], sizes = [1, 32], strides = [1, 1]} : vector<4x32xf32> to vector<1x32xf32>
    %18 = vector.broadcast %16 : vector<128x1xf32> to vector<128x32xf32>
    %19 = vector.broadcast %17 : vector<1x32xf32> to vector<128x32xf32>
    %20 = arith.mulf %18, %19 : vector<128x32xf32>
    %21 = arith.addf %15, %20 : vector<128x32xf32>
    %22 = vector.extract_strided_slice %3 {offsets = [0, 3], sizes = [128, 1], strides = [1, 1]} : vector<128x4xf32> to vector<128x1xf32>
    %23 = vector.extract_strided_slice %4 {offsets = [3, 0], sizes = [1, 32], strides = [1, 1]} : vector<4x32xf32> to vector<1x32xf32>
    %24 = vector.broadcast %22 : vector<128x1xf32> to vector<128x32xf32>
    %25 = vector.broadcast %23 : vector<1x32xf32> to vector<128x32xf32>
    %26 = arith.mulf %24, %25 : vector<128x32xf32>
    %27 = arith.addf %21, %26 : vector<128x32xf32>
    %c0_4 = arith.constant 0 : index
    %c0_5 = arith.constant 0 : index
    %28 = vector.load %arg4[%c0_4, %c0_5] : memref<1x32xf32, #tpu.memory_space<vmem>>, vector<1x32xf32>
    %29 = vector.broadcast %28 : vector<1x32xf32> to vector<128x32xf32>
    %30 = arith.mulf %27, %29 : vector<128x32xf32>
    %c0_6 = arith.constant 0 : index
    %c0_7 = arith.constant 0 : index
    %31 = vector.load %arg5[%c0_6, %c0_7] : memref<1x32xf32, #tpu.memory_space<vmem>>, vector<1x32xf32>
    %32 = vector.broadcast %31 : vector<1x32xf32> to vector<128x32xf32>
    %33 = arith.addf %30, %32 : vector<128x32xf32>
    %cst = arith.constant 3.000000e+00 : f32
    %34 = vector.broadcast %cst : f32 to vector<128x32xf32>
    %35 = arith.addf %33, %34 : vector<128x32xf32>
    %cst_8 = arith.constant 0.000000e+00 : f32
    %36 = vector.broadcast %cst_8 : f32 to vector<128x32xf32>
    %37 = arith.maximumf %35, %36 : vector<128x32xf32>
    %cst_9 = arith.constant 6.000000e+00 : f32
    %38 = vector.broadcast %cst_9 : f32 to vector<128x32xf32>
    %39 = arith.minimumf %37, %38 : vector<128x32xf32>
    %40 = arith.mulf %33, %39 : vector<128x32xf32>
    %cst_10 = arith.constant 0.166666672 : f32
    %41 = vector.broadcast %cst_10 : f32 to vector<128x32xf32>
    %42 = arith.mulf %40, %41 : vector<128x32xf32>
    %43 = arith.truncf %42 : vector<128x32xf32> to vector<128x32xbf16>
    %c0_11 = arith.constant 0 : index
    %c0_12 = arith.constant 0 : index
    %c0_13 = arith.constant 0 : index
    %44 = vector.load %arg6[%c0_11, %c0_12, %c0_13] : memref<1x128x32xbf16, #tpu.memory_space<vmem>>, vector<1x128x32xbf16>
    %45 = vector.shape_cast %44 : vector<1x128x32xbf16> to vector<128x32xbf16>
    %46 = vector.shape_cast %43 : vector<128x32xbf16> to vector<1x128x32xbf16>
    tpu.vector_store %arg6[%c0_11, %c0_12, %c0_13], %46 {strides = array<i32>} : memref<1x128x32xbf16, #tpu.memory_space<vmem>>, vector<1x128x32xbf16>,
    %cst_14 = arith.constant dense<0.000000e+00> : vector<32xf32>
    %47 = vector.multi_reduction <add>, %42, %cst_14 [0] : vector<128x32xf32> to vector<32xf32>
    %48 = vector.shape_cast %47 : vector<32xf32> to vector<1x32xf32>
    %c0_15 = arith.constant 0 : index
    %c0_16 = arith.constant 0 : index
    %c0_17 = arith.constant 0 : index
    %c0_18 = arith.constant 0 : index
    %49 = vector.load %arg7[%c0_15, %c0_16, %c0_17, %c0_18] : memref<1x1x1x32xf32, #tpu.memory_space<vmem>>, vector<1x1x1x32xf32>
    %50 = vector.shape_cast %49 : vector<1x1x1x32xf32> to vector<1x32xf32>
    %51 = vector.shape_cast %48 : vector<1x32xf32> to vector<1x1x1x32xf32>
    tpu.vector_store %arg7[%c0_15, %c0_16, %c0_17, %c0_18], %51 {strides = array<i32>} : memref<1x1x1x32xf32, #tpu.memory_space<vmem>>, vector<1x1x1x32xf32>,
    %cst_19 = arith.constant dense<0xFF800000> : vector<32xf32>
    %52 = vector.multi_reduction <maximumf>, %42, %cst_19 [0] : vector<128x32xf32> to vector<32xf32>
    %53 = vector.shape_cast %52 : vector<32xf32> to vector<1x32xf32>
    %c0_20 = arith.constant 0 : index
    %c0_21 = arith.constant 0 : index
    %c0_22 = arith.constant 0 : index
    %c0_23 = arith.constant 0 : index
    %54 = vector.load %arg8[%c0_20, %c0_21, %c0_22, %c0_23] : memref<1x1x1x32xf32, #tpu.memory_space<vmem>>, vector<1x1x1x32xf32>
    %55 = vector.shape_cast %54 : vector<1x1x1x32xf32> to vector<1x32xf32>
    %56 = vector.shape_cast %53 : vector<1x32xf32> to vector<1x1x1x32xf32>
    tpu.vector_store %arg8[%c0_20, %c0_21, %c0_22, %c0_23], %56 {strides = array<i32>} : memref<1x1x1x32xf32, #tpu.memory_space<vmem>>, vector<1x1x1x32xf32>,
    return
  }
  func.func @transform_0(%arg0: i32, %arg1: i32) -> (i32, i32, i32) {
    %c0_i32 = arith.constant 0 : i32
    %c0_i32_0 = arith.constant 0 : i32
    return %arg0, %arg1, %c0_i32 : i32, i32, i32
  }
  func.func @transform_1(%arg0: i32, %arg1: i32) -> (i32, i32) {
    %c0_i32 = arith.constant 0 : i32
    %c0_i32_0 = arith.constant 0 : i32
    %c0_i32_1 = arith.constant 0 : i32
    return %c0_i32, %c0_i32_0 : i32, i32
  }
  func.func @transform_2(%arg0: i32, %arg1: i32) -> (i32, i32) {
    %c0_i32 = arith.constant 0 : i32
    %c0_i32_0 = arith.constant 0 : i32
    %c0_i32_1 = arith.constant 0 : i32
    return %c0_i32, %c0_i32_0 : i32, i32
  }
  func.func @transform_3(%arg0: i32, %arg1: i32) -> (i32, i32) {
    %c0_i32 = arith.constant 0 : i32
    %c0_i32_0 = arith.constant 0 : i32
    %c0_i32_1 = arith.constant 0 : i32
    return %c0_i32, %c0_i32_0 : i32, i32
  }
  func.func @transform_4(%arg0: i32, %arg1: i32) -> (i32, i32, i32) {
    %c0_i32 = arith.constant 0 : i32
    %c0_i32_0 = arith.constant 0 : i32
    return %arg0, %arg1, %c0_i32 : i32, i32, i32
  }
  func.func @transform_5(%arg0: i32, %arg1: i32) -> (i32, i32, i32, i32) {
    %c0_i32 = arith.constant 0 : i32
    %c0_i32_0 = arith.constant 0 : i32
    %c0_i32_1 = arith.constant 0 : i32
    return %arg0, %arg1, %c0_i32, %c0_i32_0 : i32, i32, i32, i32
  }
  func.func @transform_6(%arg0: i32, %arg1: i32) -> (i32, i32, i32, i32) {
    %c0_i32 = arith.constant 0 : i32
    %c0_i32_0 = arith.constant 0 : i32
    %c0_i32_1 = arith.constant 0 : i32
    return %arg0, %arg1, %c0_i32, %c0_i32_0 : i32, i32, i32, i32
  }
}

module attributes {stable_mosaic.version = 11 : i64} {
  func.func @reduce_kernel(%arg0: i32, %arg1: i32, %arg2: memref<1x8x16x32xbf16, #tpu.memory_space<vmem>>, %arg3: memref<1x1x32xf32, #tpu.memory_space<vmem>>, %arg4: memref<1x8x16xf32, #tpu.memory_space<vmem>>, %arg5: memref<1x8x16xf32, #tpu.memory_space<vmem>>) attributes {dimension_semantics = [#tpu.dimension_semantics<parallel>, #tpu.dimension_semantics<parallel>], iteration_bounds = array<i64: 2, 2>, scalar_prefetch = 0 : i64, scratch_operands = 0 : i64, tpu.core_type = #tpu.core_type<tc>, window_params = [{transform_indices = @transform_0, window_bounds = array<i64: 1, 8, 16, 32>}, {transform_indices = @transform_1, window_bounds = array<i64: 1, 1, 32>}, {transform_indices = @transform_2, window_bounds = array<i64: 1, 8, 16>}, {transform_indices = @transform_3, window_bounds = array<i64: 1, 8, 16>}]} {
    %c0 = arith.constant 0 : index
    %c0_0 = arith.constant 0 : index
    %c0_1 = arith.constant 0 : index
    %c0_2 = arith.constant 0 : index
    %0 = vector.load %arg2[%c0, %c0_0, %c0_1, %c0_2] : memref<1x8x16x32xbf16, #tpu.memory_space<vmem>>, vector<1x8x16x32xbf16>
    %1 = vector.shape_cast %0 : vector<1x8x16x32xbf16> to vector<8x16x32xbf16>
    %2 = arith.extf %1 : vector<8x16x32xbf16> to vector<8x16x32xf32>
    %c0_3 = arith.constant 0 : index
    %c0_4 = arith.constant 0 : index
    %c0_5 = arith.constant 0 : index
    %3 = vector.load %arg3[%c0_3, %c0_4, %c0_5] : memref<1x1x32xf32, #tpu.memory_space<vmem>>, vector<1x1x32xf32>
    %4 = vector.shape_cast %3 : vector<1x1x32xf32> to vector<1x32xf32>
    %5 = vector.shape_cast %4 : vector<1x32xf32> to vector<1x1x32xf32>
    %6 = vector.broadcast %5 : vector<1x1x32xf32> to vector<8x16x32xf32>
    %7 = arith.mulf %2, %6 : vector<8x16x32xf32>
    %cst = arith.constant dense<0.000000e+00> : vector<8x16xf32>
    %8 = vector.multi_reduction <add>, %7, %cst [2] : vector<8x16x32xf32> to vector<8x16xf32>
    %cst_6 = arith.constant 3.125000e-02 : f32
    %9 = vector.broadcast %cst_6 : f32 to vector<8x16xf32>
    %10 = arith.mulf %8, %9 : vector<8x16xf32>
    %c0_7 = arith.constant 0 : index
    %c0_8 = arith.constant 0 : index
    %c0_9 = arith.constant 0 : index
    %11 = vector.load %arg4[%c0_7, %c0_8, %c0_9] : memref<1x8x16xf32, #tpu.memory_space<vmem>>, vector<1x8x16xf32>
    %12 = vector.shape_cast %11 : vector<1x8x16xf32> to vector<8x16xf32>
    %13 = vector.shape_cast %10 : vector<8x16xf32> to vector<1x8x16xf32>
    tpu.vector_store %arg4[%c0_7, %c0_8, %c0_9], %13 {strides = array<i32>} : memref<1x8x16xf32, #tpu.memory_space<vmem>>, vector<1x8x16xf32>,
    %cst_10 = arith.constant dense<0xFF800000> : vector<8x16xf32>
    %14 = vector.multi_reduction <maximumf>, %7, %cst_10 [2] : vector<8x16x32xf32> to vector<8x16xf32>
    %c0_11 = arith.constant 0 : index
    %c0_12 = arith.constant 0 : index
    %c0_13 = arith.constant 0 : index
    %15 = vector.load %arg5[%c0_11, %c0_12, %c0_13] : memref<1x8x16xf32, #tpu.memory_space<vmem>>, vector<1x8x16xf32>
    %16 = vector.shape_cast %15 : vector<1x8x16xf32> to vector<8x16xf32>
    %17 = vector.shape_cast %14 : vector<8x16xf32> to vector<1x8x16xf32>
    tpu.vector_store %arg5[%c0_11, %c0_12, %c0_13], %17 {strides = array<i32>} : memref<1x8x16xf32, #tpu.memory_space<vmem>>, vector<1x8x16xf32>,
    return
  }
  func.func @transform_0(%arg0: i32, %arg1: i32) -> (i32, i32, i32, i32) {
    %c0_i32 = arith.constant 0 : i32
    %c0_i32_0 = arith.constant 0 : i32
    %c0_i32_1 = arith.constant 0 : i32
    return %arg0, %arg1, %c0_i32, %c0_i32_0 : i32, i32, i32, i32
  }
  func.func @transform_1(%arg0: i32, %arg1: i32) -> (i32, i32, i32) {
    %c0_i32 = arith.constant 0 : i32
    %c0_i32_0 = arith.constant 0 : i32
    %c0_i32_1 = arith.constant 0 : i32
    return %arg0, %c0_i32, %c0_i32_0 : i32, i32, i32
  }
  func.func @transform_2(%arg0: i32, %arg1: i32) -> (i32, i32, i32) {
    %c0_i32 = arith.constant 0 : i32
    %c0_i32_0 = arith.constant 0 : i32
    return %arg0, %arg1, %c0_i32 : i32, i32, i32
  }
  func.func @transform_3(%arg0: i32, %arg1: i32) -> (i32, i32, i32) {
    %c0_i32 = arith.constant 0 : i32
    %c0_i32_0 = arith.constant 0 : i32
    return %arg0, %arg1, %c0_i32 : i32, i32, i32
  }
}

module attributes {stable_mosaic.version = 11 : i64} {
  func.func @apply_kernel(%arg0: i32, %arg1: i32, %arg2: memref<1x8x16x32xbf16, #tpu.memory_space<vmem>>, %arg3: memref<1x1x32xf32, #tpu.memory_space<vmem>>, %arg4: memref<1x8x16xf32, #tpu.memory_space<vmem>>, %arg5: memref<1x8x16x32xf32, #tpu.memory_space<vmem>>) attributes {dimension_semantics = [#tpu.dimension_semantics<parallel>, #tpu.dimension_semantics<parallel>], iteration_bounds = array<i64: 2, 2>, scalar_prefetch = 0 : i64, scratch_operands = 0 : i64, tpu.core_type = #tpu.core_type<tc>, window_params = [{transform_indices = @transform_0, window_bounds = array<i64: 1, 8, 16, 32>}, {transform_indices = @transform_1, window_bounds = array<i64: 1, 1, 32>}, {transform_indices = @transform_2, window_bounds = array<i64: 1, 8, 16>}, {transform_indices = @transform_3, window_bounds = array<i64: 1, 8, 16, 32>}]} {
    %c0 = arith.constant 0 : index
    %c0_0 = arith.constant 0 : index
    %c0_1 = arith.constant 0 : index
    %c0_2 = arith.constant 0 : index
    %0 = vector.load %arg2[%c0, %c0_0, %c0_1, %c0_2] : memref<1x8x16x32xbf16, #tpu.memory_space<vmem>>, vector<1x8x16x32xbf16>
    %1 = vector.shape_cast %0 : vector<1x8x16x32xbf16> to vector<8x16x32xbf16>
    %2 = arith.extf %1 : vector<8x16x32xbf16> to vector<8x16x32xf32>
    %c0_3 = arith.constant 0 : index
    %c0_4 = arith.constant 0 : index
    %c0_5 = arith.constant 0 : index
    %3 = vector.load %arg3[%c0_3, %c0_4, %c0_5] : memref<1x1x32xf32, #tpu.memory_space<vmem>>, vector<1x1x32xf32>
    %4 = vector.shape_cast %3 : vector<1x1x32xf32> to vector<1x32xf32>
    %c0_6 = arith.constant 0 : index
    %c0_7 = arith.constant 0 : index
    %c0_8 = arith.constant 0 : index
    %5 = vector.load %arg4[%c0_6, %c0_7, %c0_8] : memref<1x8x16xf32, #tpu.memory_space<vmem>>, vector<1x8x16xf32>
    %6 = vector.shape_cast %5 : vector<1x8x16xf32> to vector<8x16xf32>
    %7 = vector.shape_cast %4 : vector<1x32xf32> to vector<1x1x32xf32>
    %8 = vector.broadcast %7 : vector<1x1x32xf32> to vector<8x16x32xf32>
    %9 = arith.mulf %2, %8 : vector<8x16x32xf32>
    %10 = vector.shape_cast %6 : vector<8x16xf32> to vector<8x16x1xf32>
    %11 = vector.broadcast %10 : vector<8x16x1xf32> to vector<8x16x32xf32>
    %12 = arith.mulf %9, %11 : vector<8x16x32xf32>
    %c0_9 = arith.constant 0 : index
    %c0_10 = arith.constant 0 : index
    %c0_11 = arith.constant 0 : index
    %c0_12 = arith.constant 0 : index
    %13 = vector.load %arg5[%c0_9, %c0_10, %c0_11, %c0_12] : memref<1x8x16x32xf32, #tpu.memory_space<vmem>>, vector<1x8x16x32xf32>
    %14 = vector.shape_cast %13 : vector<1x8x16x32xf32> to vector<8x16x32xf32>
    %15 = vector.shape_cast %12 : vector<8x16x32xf32> to vector<1x8x16x32xf32>
    tpu.vector_store %arg5[%c0_9, %c0_10, %c0_11, %c0_12], %15 {strides = array<i32>} : memref<1x8x16x32xf32, #tpu.memory_space<vmem>>, vector<1x8x16x32xf32>,
    return
  }
  func.func @transform_0(%arg0: i32, %arg1: i32) -> (i32, i32, i32, i32) {
    %c0_i32 = arith.constant 0 : i32
    %c0_i32_0 = arith.constant 0 : i32
    %c0_i32_1 = arith.constant 0 : i32
    return %arg0, %arg1, %c0_i32, %c0_i32_0 : i32, i32, i32, i32
  }
  func.func @transform_1(%arg0: i32, %arg1: i32) -> (i32, i32, i32) {
    %c0_i32 = arith.constant 0 : i32
    %c0_i32_0 = arith.constant 0 : i32
    %c0_i32_1 = arith.constant 0 : i32
    return %arg0, %c0_i32, %c0_i32_0 : i32, i32, i32
  }
  func.func @transform_2(%arg0: i32, %arg1: i32) -> (i32, i32, i32) {
    %c0_i32 = arith.constant 0 : i32
    %c0_i32_0 = arith.constant 0 : i32
    return %arg0, %arg1, %c0_i32 : i32, i32, i32
  }
  func.func @transform_3(%arg0: i32, %arg1: i32) -> (i32, i32, i32, i32) {
    %c0_i32 = arith.constant 0 : i32
    %c0_i32_0 = arith.constant 0 : i32
    %c0_i32_1 = arith.constant 0 : i32
    return %arg0, %arg1, %c0_i32, %c0_i32_0 : i32, i32, i32, i32
  }
}

module attributes {stable_mosaic.version = 11 : i64} {
  func.func @spatial_conv_kernel(%arg0: i32, %arg1: memref<98xf32, #tpu.memory_space<smem>>, %arg2: memref<1x16x16xf32, #tpu.memory_space<vmem>>, %arg3: memref<1x16x16xf32, #tpu.memory_space<vmem>>, %arg4: memref<1x16x16xf32, #tpu.memory_space<vmem>>, %arg5: memref<64x128xf32, #tpu.memory_space<vmem>>, %arg6: memref<448x128xf32, #tpu.memory_space<vmem>>) attributes {dimension_semantics = [#tpu.dimension_semantics<parallel>], iteration_bounds = array<i64: 2>, scalar_prefetch = 0 : i64, scratch_operands = 2 : i64, tpu.core_type = #tpu.core_type<tc>, window_params = [{transform_indices = @transform_0, window_bounds = array<i64: 98>}, {transform_indices = @transform_1, window_bounds = array<i64: 1, 16, 16>}, {transform_indices = @transform_2, window_bounds = array<i64: 1, 16, 16>}, {transform_indices = @transform_3, window_bounds = array<i64: 1, 16, 16>}]} {
    %cst = arith.constant 0.000000e+00 : f32
    %0 = vector.broadcast %cst : f32 to vector<64x128xf32>
    %c0 = arith.constant 0 : index
    %c0_0 = arith.constant 0 : index
    %1 = vector.load %arg5[%c0, %c0_0] : memref<64x128xf32, #tpu.memory_space<vmem>>, vector<64x128xf32>
    tpu.vector_store %arg5[%c0, %c0_0], %0 {strides = array<i32>} : memref<64x128xf32, #tpu.memory_space<vmem>>, vector<64x128xf32>,
    %c0_1 = arith.constant 0 : index
    %c0_2 = arith.constant 0 : index
    %c0_3 = arith.constant 0 : index
    %2 = vector.load %arg2[%c0_1, %c0_2, %c0_3] : memref<1x16x16xf32, #tpu.memory_space<vmem>>, vector<1x16x16xf32>
    %3 = vector.shape_cast %2 : vector<1x16x16xf32> to vector<16x16xf32>
    %c8 = arith.constant 8 : index
    %c0_4 = arith.constant 0 : index
    %4 = vector.load %arg5[%c8, %c0_4] : memref<64x128xf32, #tpu.memory_space<vmem>>, vector<16x16xf32>
    tpu.vector_store %arg5[%c8, %c0_4], %3 {strides = array<i32>} : memref<64x128xf32, #tpu.memory_space<vmem>>, vector<16x16xf32>,
    %c0_5 = arith.constant 0 : index
    %c0_6 = arith.constant 0 : index
    %c0_7 = arith.constant 0 : index
    %5 = vector.load %arg3[%c0_5, %c0_6, %c0_7] : memref<1x16x16xf32, #tpu.memory_space<vmem>>, vector<1x16x16xf32>
    %6 = vector.shape_cast %5 : vector<1x16x16xf32> to vector<16x16xf32>
    %c40 = arith.constant 40 : index
    %c0_8 = arith.constant 0 : index
    %7 = vector.load %arg5[%c40, %c0_8] : memref<64x128xf32, #tpu.memory_space<vmem>>, vector<16x16xf32>
    tpu.vector_store %arg5[%c40, %c0_8], %6 {strides = array<i32>} : memref<64x128xf32, #tpu.memory_space<vmem>>, vector<16x16xf32>,
    %c0_9 = arith.constant 0 : index
    %c0_10 = arith.constant 0 : index
    %8 = vector.load %arg5[%c0_9, %c0_10] : memref<64x128xf32, #tpu.memory_space<vmem>>, vector<64x128xf32>
    %c3_i32 = arith.constant 3 : i32
    %9 = tpu.dynamic_rotate %8 by %c3_i32 dim 1 : vector<64x128xf32>, i32 -> vector<64x128xf32>
    %c0_11 = arith.constant 0 : index
    %c0_12 = arith.constant 0 : index
    %10 = vector.load %arg6[%c0_11, %c0_12] : memref<448x128xf32, #tpu.memory_space<vmem>>, vector<64x128xf32>
    tpu.vector_store %arg6[%c0_11, %c0_12], %9 {strides = array<i32>} : memref<448x128xf32, #tpu.memory_space<vmem>>, vector<64x128xf32>,
    %c2_i32 = arith.constant 2 : i32
    %11 = tpu.dynamic_rotate %8 by %c2_i32 dim 1 : vector<64x128xf32>, i32 -> vector<64x128xf32>
    %c64 = arith.constant 64 : index
    %c0_13 = arith.constant 0 : index
    %12 = vector.load %arg6[%c64, %c0_13] : memref<448x128xf32, #tpu.memory_space<vmem>>, vector<64x128xf32>
    tpu.vector_store %arg6[%c64, %c0_13], %11 {strides = array<i32>} : memref<448x128xf32, #tpu.memory_space<vmem>>, vector<64x128xf32>,
    %c1_i32 = arith.constant 1 : i32
    %13 = tpu.dynamic_rotate %8 by %c1_i32 dim 1 : vector<64x128xf32>, i32 -> vector<64x128xf32>
    %c128 = arith.constant 128 : index
    %c0_14 = arith.constant 0 : index
    %14 = vector.load %arg6[%c128, %c0_14] : memref<448x128xf32, #tpu.memory_space<vmem>>, vector<64x128xf32>
    tpu.vector_store %arg6[%c128, %c0_14], %13 {strides = array<i32>} : memref<448x128xf32, #tpu.memory_space<vmem>>, vector<64x128xf32>,
    %c192 = arith.constant 192 : index
    %c0_15 = arith.constant 0 : index
    %15 = vector.load %arg6[%c192, %c0_15] : memref<448x128xf32, #tpu.memory_space<vmem>>, vector<64x128xf32>
    tpu.vector_store %arg6[%c192, %c0_15], %8 {strides = array<i32>} : memref<448x128xf32, #tpu.memory_space<vmem>>, vector<64x128xf32>,
    %c127_i32 = arith.constant 127 : i32
    %16 = tpu.dynamic_rotate %8 by %c127_i32 dim 1 : vector<64x128xf32>, i32 -> vector<64x128xf32>
    %c256 = arith.constant 256 : index
    %c0_16 = arith.constant 0 : index
    %17 = vector.load %arg6[%c256, %c0_16] : memref<448x128xf32, #tpu.memory_space<vmem>>, vector<64x128xf32>
    tpu.vector_store %arg6[%c256, %c0_16], %16 {strides = array<i32>} : memref<448x128xf32, #tpu.memory_space<vmem>>, vector<64x128xf32>,
    %c126_i32 = arith.constant 126 : i32
    %18 = tpu.dynamic_rotate %8 by %c126_i32 dim 1 : vector<64x128xf32>, i32 -> vector<64x128xf32>
    %c320 = arith.constant 320 : index
    %c0_17 = arith.constant 0 : index
    %19 = vector.load %arg6[%c320, %c0_17] : memref<448x128xf32, #tpu.memory_space<vmem>>, vector<64x128xf32>
    tpu.vector_store %arg6[%c320, %c0_17], %18 {strides = array<i32>} : memref<448x128xf32, #tpu.memory_space<vmem>>, vector<64x128xf32>,
    %c125_i32 = arith.constant 125 : i32
    %20 = tpu.dynamic_rotate %8 by %c125_i32 dim 1 : vector<64x128xf32>, i32 -> vector<64x128xf32>
    %c384 = arith.constant 384 : index
    %c0_18 = arith.constant 0 : index
    %21 = vector.load %arg6[%c384, %c0_18] : memref<448x128xf32, #tpu.memory_space<vmem>>, vector<64x128xf32>
    tpu.vector_store %arg6[%c384, %c0_18], %20 {strides = array<i32>} : memref<448x128xf32, #tpu.memory_space<vmem>>, vector<64x128xf32>,
    %cst_19 = arith.constant 0.000000e+00 : f32
    %22 = vector.broadcast %cst_19 : f32 to vector<16x128xf32>
    %cst_20 = arith.constant 0.000000e+00 : f32
    %23 = vector.broadcast %cst_20 : f32 to vector<16x128xf32>
    %cst_21 = arith.constant 0.000000e+00 : f32
    %24 = vector.broadcast %cst_21 : f32 to vector<16x128xf32>
    %cst_22 = arith.constant 0.000000e+00 : f32
    %25 = vector.broadcast %cst_22 : f32 to vector<16x128xf32>
    %c5 = arith.constant 5 : index
    %c0_23 = arith.constant 0 : index
    %26 = vector.load %arg6[%c5, %c0_23] : memref<448x128xf32, #tpu.memory_space<vmem>>, vector<16x128xf32>
    %c37 = arith.constant 37 : index
    %c0_24 = arith.constant 0 : index
    %27 = vector.load %arg6[%c37, %c0_24] : memref<448x128xf32, #tpu.memory_space<vmem>>, vector<16x128xf32>
    %c0_25 = arith.constant 0 : index
    %28 = memref.load %arg1[%c0_25] : memref<98xf32, #tpu.memory_space<smem>>
    %c1 = arith.constant 1 : index
    %29 = memref.load %arg1[%c1] : memref<98xf32, #tpu.memory_space<smem>>
    %30 = vector.broadcast %28 : f32 to vector<16x128xf32>
    %31 = arith.mulf %26, %30 : vector<16x128xf32>
    %32 = vector.broadcast %29 : f32 to vector<16x128xf32>
    %33 = arith.mulf %27, %32 : vector<16x128xf32>
    %34 = arith.addf %31, %33 : vector<16x128xf32>
    %35 = arith.addf %22, %34 : vector<16x128xf32>
    %c69 = arith.constant 69 : index
    %c0_26 = arith.constant 0 : index
    %36 = vector.load %arg6[%c69, %c0_26] : memref<448x128xf32, #tpu.memory_space<vmem>>, vector<16x128xf32>
    %c101 = arith.constant 101 : index
    %c0_27 = arith.constant 0 : index
    %37 = vector.load %arg6[%c101, %c0_27] : memref<448x128xf32, #tpu.memory_space<vmem>>, vector<16x128xf32>
    %c2 = arith.constant 2 : index
    %38 = memref.load %arg1[%c2] : memref<98xf32, #tpu.memory_space<smem>>
    %c3 = arith.constant 3 : index
    %39 = memref.load %arg1[%c3] : memref<98xf32, #tpu.memory_space<smem>>
    %40 = vector.broadcast %38 : f32 to vector<16x128xf32>
    %41 = arith.mulf %36, %40 : vector<16x128xf32>
    %42 = vector.broadcast %39 : f32 to vector<16x128xf32>
    %43 = arith.mulf %37, %42 : vector<16x128xf32>
    %44 = arith.addf %41, %43 : vector<16x128xf32>
    %45 = arith.addf %23, %44 : vector<16x128xf32>
    %c133 = arith.constant 133 : index
    %c0_28 = arith.constant 0 : index
    %46 = vector.load %arg6[%c133, %c0_28] : memref<448x128xf32, #tpu.memory_space<vmem>>, vector<16x128xf32>
    %c165 = arith.constant 165 : index
    %c0_29 = arith.constant 0 : index
    %47 = vector.load %arg6[%c165, %c0_29] : memref<448x128xf32, #tpu.memory_space<vmem>>, vector<16x128xf32>
    %c4 = arith.constant 4 : index
    %48 = memref.load %arg1[%c4] : memref<98xf32, #tpu.memory_space<smem>>
    %c5_30 = arith.constant 5 : index
    %49 = memref.load %arg1[%c5_30] : memref<98xf32, #tpu.memory_space<smem>>
    %50 = vector.broadcast %48 : f32 to vector<16x128xf32>
    %51 = arith.mulf %46, %50 : vector<16x128xf32>
    %52 = vector.broadcast %49 : f32 to vector<16x128xf32>
    %53 = arith.mulf %47, %52 : vector<16x128xf32>
    %54 = arith.addf %51, %53 : vector<16x128xf32>
    %55 = arith.addf %24, %54 : vector<16x128xf32>
    %c197 = arith.constant 197 : index
    %c0_31 = arith.constant 0 : index
    %56 = vector.load %arg6[%c197, %c0_31] : memref<448x128xf32, #tpu.memory_space<vmem>>, vector<16x128xf32>
    %c229 = arith.constant 229 : index
    %c0_32 = arith.constant 0 : index
    %57 = vector.load %arg6[%c229, %c0_32] : memref<448x128xf32, #tpu.memory_space<vmem>>, vector<16x128xf32>
    %c6 = arith.constant 6 : index
    %58 = memref.load %arg1[%c6] : memref<98xf32, #tpu.memory_space<smem>>
    %c7 = arith.constant 7 : index
    %59 = memref.load %arg1[%c7] : memref<98xf32, #tpu.memory_space<smem>>
    %60 = vector.broadcast %58 : f32 to vector<16x128xf32>
    %61 = arith.mulf %56, %60 : vector<16x128xf32>
    %62 = vector.broadcast %59 : f32 to vector<16x128xf32>
    %63 = arith.mulf %57, %62 : vector<16x128xf32>
    %64 = arith.addf %61, %63 : vector<16x128xf32>
    %65 = arith.addf %25, %64 : vector<16x128xf32>
    %c261 = arith.constant 261 : index
    %c0_33 = arith.constant 0 : index
    %66 = vector.load %arg6[%c261, %c0_33] : memref<448x128xf32, #tpu.memory_space<vmem>>, vector<16x128xf32>
    %c293 = arith.constant 293 : index
    %c0_34 = arith.constant 0 : index
    %67 = vector.load %arg6[%c293, %c0_34] : memref<448x128xf32, #tpu.memory_space<vmem>>, vector<16x128xf32>
    %c8_35 = arith.constant 8 : index
    %68 = memref.load %arg1[%c8_35] : memref<98xf32, #tpu.memory_space<smem>>
    %c9 = arith.constant 9 : index
    %69 = memref.load %arg1[%c9] : memref<98xf32, #tpu.memory_space<smem>>
    %70 = vector.broadcast %68 : f32 to vector<16x128xf32>
    %71 = arith.mulf %66, %70 : vector<16x128xf32>
    %72 = vector.broadcast %69 : f32 to vector<16x128xf32>
    %73 = arith.mulf %67, %72 : vector<16x128xf32>
    %74 = arith.addf %71, %73 : vector<16x128xf32>
    %75 = arith.addf %35, %74 : vector<16x128xf32>
    %c325 = arith.constant 325 : index
    %c0_36 = arith.constant 0 : index
    %76 = vector.load %arg6[%c325, %c0_36] : memref<448x128xf32, #tpu.memory_space<vmem>>, vector<16x128xf32>
    %c357 = arith.constant 357 : index
    %c0_37 = arith.constant 0 : index
    %77 = vector.load %arg6[%c357, %c0_37] : memref<448x128xf32, #tpu.memory_space<vmem>>, vector<16x128xf32>
    %c10 = arith.constant 10 : index
    %78 = memref.load %arg1[%c10] : memref<98xf32, #tpu.memory_space<smem>>
    %c11 = arith.constant 11 : index
    %79 = memref.load %arg1[%c11] : memref<98xf32, #tpu.memory_space<smem>>
    %80 = vector.broadcast %78 : f32 to vector<16x128xf32>
    %81 = arith.mulf %76, %80 : vector<16x128xf32>
    %82 = vector.broadcast %79 : f32 to vector<16x128xf32>
    %83 = arith.mulf %77, %82 : vector<16x128xf32>
    %84 = arith.addf %81, %83 : vector<16x128xf32>
    %85 = arith.addf %45, %84 : vector<16x128xf32>
    %c389 = arith.constant 389 : index
    %c0_38 = arith.constant 0 : index
    %86 = vector.load %arg6[%c389, %c0_38] : memref<448x128xf32, #tpu.memory_space<vmem>>, vector<16x128xf32>
    %c421 = arith.constant 421 : index
    %c0_39 = arith.constant 0 : index
    %87 = vector.load %arg6[%c421, %c0_39] : memref<448x128xf32, #tpu.memory_space<vmem>>, vector<16x128xf32>
    %c12 = arith.constant 12 : index
    %88 = memref.load %arg1[%c12] : memref<98xf32, #tpu.memory_space<smem>>
    %c13 = arith.constant 13 : index
    %89 = memref.load %arg1[%c13] : memref<98xf32, #tpu.memory_space<smem>>
    %90 = vector.broadcast %88 : f32 to vector<16x128xf32>
    %91 = arith.mulf %86, %90 : vector<16x128xf32>
    %92 = vector.broadcast %89 : f32 to vector<16x128xf32>
    %93 = arith.mulf %87, %92 : vector<16x128xf32>
    %94 = arith.addf %91, %93 : vector<16x128xf32>
    %95 = arith.addf %55, %94 : vector<16x128xf32>
    %c6_40 = arith.constant 6 : index
    %c0_41 = arith.constant 0 : index
    %96 = vector.load %arg6[%c6_40, %c0_41] : memref<448x128xf32, #tpu.memory_space<vmem>>, vector<16x128xf32>
    %c38 = arith.constant 38 : index
    %c0_42 = arith.constant 0 : index
    %97 = vector.load %arg6[%c38, %c0_42] : memref<448x128xf32, #tpu.memory_space<vmem>>, vector<16x128xf32>
    %c14 = arith.constant 14 : index
    %98 = memref.load %arg1[%c14] : memref<98xf32, #tpu.memory_space<smem>>
    %c15 = arith.constant 15 : index
    %99 = memref.load %arg1[%c15] : memref<98xf32, #tpu.memory_space<smem>>
    %100 = vector.broadcast %98 : f32 to vector<16x128xf32>
    %101 = arith.mulf %96, %100 : vector<16x128xf32>
    %102 = vector.broadcast %99 : f32 to vector<16x128xf32>
    %103 = arith.mulf %97, %102 : vector<16x128xf32>
    %104 = arith.addf %101, %103 : vector<16x128xf32>
    %105 = arith.addf %65, %104 : vector<16x128xf32>
    %c70 = arith.constant 70 : index
    %c0_43 = arith.constant 0 : index
    %106 = vector.load %arg6[%c70, %c0_43] : memref<448x128xf32, #tpu.memory_space<vmem>>, vector<16x128xf32>
    %c102 = arith.constant 102 : index
    %c0_44 = arith.constant 0 : index
    %107 = vector.load %arg6[%c102, %c0_44] : memref<448x128xf32, #tpu.memory_space<vmem>>, vector<16x128xf32>
    %c16 = arith.constant 16 : index
    %108 = memref.load %arg1[%c16] : memref<98xf32, #tpu.memory_space<smem>>
    %c17 = arith.constant 17 : index
    %109 = memref.load %arg1[%c17] : memref<98xf32, #tpu.memory_space<smem>>
    %110 = vector.broadcast %108 : f32 to vector<16x128xf32>
    %111 = arith.mulf %106, %110 : vector<16x128xf32>
    %112 = vector.broadcast %109 : f32 to vector<16x128xf32>
    %113 = arith.mulf %107, %112 : vector<16x128xf32>
    %114 = arith.addf %111, %113 : vector<16x128xf32>
    %115 = arith.addf %75, %114 : vector<16x128xf32>
    %c134 = arith.constant 134 : index
    %c0_45 = arith.constant 0 : index
    %116 = vector.load %arg6[%c134, %c0_45] : memref<448x128xf32, #tpu.memory_space<vmem>>, vector<16x128xf32>
    %c166 = arith.constant 166 : index
    %c0_46 = arith.constant 0 : index
    %117 = vector.load %arg6[%c166, %c0_46] : memref<448x128xf32, #tpu.memory_space<vmem>>, vector<16x128xf32>
    %c18 = arith.constant 18 : index
    %118 = memref.load %arg1[%c18] : memref<98xf32, #tpu.memory_space<smem>>
    %c19 = arith.constant 19 : index
    %119 = memref.load %arg1[%c19] : memref<98xf32, #tpu.memory_space<smem>>
    %120 = vector.broadcast %118 : f32 to vector<16x128xf32>
    %121 = arith.mulf %116, %120 : vector<16x128xf32>
    %122 = vector.broadcast %119 : f32 to vector<16x128xf32>
    %123 = arith.mulf %117, %122 : vector<16x128xf32>
    %124 = arith.addf %121, %123 : vector<16x128xf32>
    %125 = arith.addf %85, %124 : vector<16x128xf32>
    %c198 = arith.constant 198 : index
    %c0_47 = arith.constant 0 : index
    %126 = vector.load %arg6[%c198, %c0_47] : memref<448x128xf32, #tpu.memory_space<vmem>>, vector<16x128xf32>
    %c230 = arith.constant 230 : index
    %c0_48 = arith.constant 0 : index
    %127 = vector.load %arg6[%c230, %c0_48] : memref<448x128xf32, #tpu.memory_space<vmem>>, vector<16x128xf32>
    %c20 = arith.constant 20 : index
    %128 = memref.load %arg1[%c20] : memref<98xf32, #tpu.memory_space<smem>>
    %c21 = arith.constant 21 : index
    %129 = memref.load %arg1[%c21] : memref<98xf32, #tpu.memory_space<smem>>
    %130 = vector.broadcast %128 : f32 to vector<16x128xf32>
    %131 = arith.mulf %126, %130 : vector<16x128xf32>
    %132 = vector.broadcast %129 : f32 to vector<16x128xf32>
    %133 = arith.mulf %127, %132 : vector<16x128xf32>
    %134 = arith.addf %131, %133 : vector<16x128xf32>
    %135 = arith.addf %95, %134 : vector<16x128xf32>
    %c262 = arith.constant 262 : index
    %c0_49 = arith.constant 0 : index
    %136 = vector.load %arg6[%c262, %c0_49] : memref<448x128xf32, #tpu.memory_space<vmem>>, vector<16x128xf32>
    %c294 = arith.constant 294 : index
    %c0_50 = arith.constant 0 : index
    %137 = vector.load %arg6[%c294, %c0_50] : memref<448x128xf32, #tpu.memory_space<vmem>>, vector<16x128xf32>
    %c22 = arith.constant 22 : index
    %138 = memref.load %arg1[%c22] : memref<98xf32, #tpu.memory_space<smem>>
    %c23 = arith.constant 23 : index
    %139 = memref.load %arg1[%c23] : memref<98xf32, #tpu.memory_space<smem>>
    %140 = vector.broadcast %138 : f32 to vector<16x128xf32>
    %141 = arith.mulf %136, %140 : vector<16x128xf32>
    %142 = vector.broadcast %139 : f32 to vector<16x128xf32>
    %143 = arith.mulf %137, %142 : vector<16x128xf32>
    %144 = arith.addf %141, %143 : vector<16x128xf32>
    %145 = arith.addf %105, %144 : vector<16x128xf32>
    %c326 = arith.constant 326 : index
    %c0_51 = arith.constant 0 : index
    %146 = vector.load %arg6[%c326, %c0_51] : memref<448x128xf32, #tpu.memory_space<vmem>>, vector<16x128xf32>
    %c358 = arith.constant 358 : index
    %c0_52 = arith.constant 0 : index
    %147 = vector.load %arg6[%c358, %c0_52] : memref<448x128xf32, #tpu.memory_space<vmem>>, vector<16x128xf32>
    %c24 = arith.constant 24 : index
    %148 = memref.load %arg1[%c24] : memref<98xf32, #tpu.memory_space<smem>>
    %c25 = arith.constant 25 : index
    %149 = memref.load %arg1[%c25] : memref<98xf32, #tpu.memory_space<smem>>
    %150 = vector.broadcast %148 : f32 to vector<16x128xf32>
    %151 = arith.mulf %146, %150 : vector<16x128xf32>
    %152 = vector.broadcast %149 : f32 to vector<16x128xf32>
    %153 = arith.mulf %147, %152 : vector<16x128xf32>
    %154 = arith.addf %151, %153 : vector<16x128xf32>
    %155 = arith.addf %115, %154 : vector<16x128xf32>
    %c390 = arith.constant 390 : index
    %c0_53 = arith.constant 0 : index
    %156 = vector.load %arg6[%c390, %c0_53] : memref<448x128xf32, #tpu.memory_space<vmem>>, vector<16x128xf32>
    %c422 = arith.constant 422 : index
    %c0_54 = arith.constant 0 : index
    %157 = vector.load %arg6[%c422, %c0_54] : memref<448x128xf32, #tpu.memory_space<vmem>>, vector<16x128xf32>
    %c26 = arith.constant 26 : index
    %158 = memref.load %arg1[%c26] : memref<98xf32, #tpu.memory_space<smem>>
    %c27 = arith.constant 27 : index
    %159 = memref.load %arg1[%c27] : memref<98xf32, #tpu.memory_space<smem>>
    %160 = vector.broadcast %158 : f32 to vector<16x128xf32>
    %161 = arith.mulf %156, %160 : vector<16x128xf32>
    %162 = vector.broadcast %159 : f32 to vector<16x128xf32>
    %163 = arith.mulf %157, %162 : vector<16x128xf32>
    %164 = arith.addf %161, %163 : vector<16x128xf32>
    %165 = arith.addf %125, %164 : vector<16x128xf32>
    %c7_55 = arith.constant 7 : index
    %c0_56 = arith.constant 0 : index
    %166 = vector.load %arg6[%c7_55, %c0_56] : memref<448x128xf32, #tpu.memory_space<vmem>>, vector<16x128xf32>
    %c39 = arith.constant 39 : index
    %c0_57 = arith.constant 0 : index
    %167 = vector.load %arg6[%c39, %c0_57] : memref<448x128xf32, #tpu.memory_space<vmem>>, vector<16x128xf32>
    %c28 = arith.constant 28 : index
    %168 = memref.load %arg1[%c28] : memref<98xf32, #tpu.memory_space<smem>>
    %c29 = arith.constant 29 : index
    %169 = memref.load %arg1[%c29] : memref<98xf32, #tpu.memory_space<smem>>
    %170 = vector.broadcast %168 : f32 to vector<16x128xf32>
    %171 = arith.mulf %166, %170 : vector<16x128xf32>
    %172 = vector.broadcast %169 : f32 to vector<16x128xf32>
    %173 = arith.mulf %167, %172 : vector<16x128xf32>
    %174 = arith.addf %171, %173 : vector<16x128xf32>
    %175 = arith.addf %135, %174 : vector<16x128xf32>
    %c71 = arith.constant 71 : index
    %c0_58 = arith.constant 0 : index
    %176 = vector.load %arg6[%c71, %c0_58] : memref<448x128xf32, #tpu.memory_space<vmem>>, vector<16x128xf32>
    %c103 = arith.constant 103 : index
    %c0_59 = arith.constant 0 : index
    %177 = vector.load %arg6[%c103, %c0_59] : memref<448x128xf32, #tpu.memory_space<vmem>>, vector<16x128xf32>
    %c30 = arith.constant 30 : index
    %178 = memref.load %arg1[%c30] : memref<98xf32, #tpu.memory_space<smem>>
    %c31 = arith.constant 31 : index
    %179 = memref.load %arg1[%c31] : memref<98xf32, #tpu.memory_space<smem>>
    %180 = vector.broadcast %178 : f32 to vector<16x128xf32>
    %181 = arith.mulf %176, %180 : vector<16x128xf32>
    %182 = vector.broadcast %179 : f32 to vector<16x128xf32>
    %183 = arith.mulf %177, %182 : vector<16x128xf32>
    %184 = arith.addf %181, %183 : vector<16x128xf32>
    %185 = arith.addf %145, %184 : vector<16x128xf32>
    %c135 = arith.constant 135 : index
    %c0_60 = arith.constant 0 : index
    %186 = vector.load %arg6[%c135, %c0_60] : memref<448x128xf32, #tpu.memory_space<vmem>>, vector<16x128xf32>
    %c167 = arith.constant 167 : index
    %c0_61 = arith.constant 0 : index
    %187 = vector.load %arg6[%c167, %c0_61] : memref<448x128xf32, #tpu.memory_space<vmem>>, vector<16x128xf32>
    %c32 = arith.constant 32 : index
    %188 = memref.load %arg1[%c32] : memref<98xf32, #tpu.memory_space<smem>>
    %c33 = arith.constant 33 : index
    %189 = memref.load %arg1[%c33] : memref<98xf32, #tpu.memory_space<smem>>
    %190 = vector.broadcast %188 : f32 to vector<16x128xf32>
    %191 = arith.mulf %186, %190 : vector<16x128xf32>
    %192 = vector.broadcast %189 : f32 to vector<16x128xf32>
    %193 = arith.mulf %187, %192 : vector<16x128xf32>
    %194 = arith.addf %191, %193 : vector<16x128xf32>
    %195 = arith.addf %155, %194 : vector<16x128xf32>
    %c199 = arith.constant 199 : index
    %c0_62 = arith.constant 0 : index
    %196 = vector.load %arg6[%c199, %c0_62] : memref<448x128xf32, #tpu.memory_space<vmem>>, vector<16x128xf32>
    %c231 = arith.constant 231 : index
    %c0_63 = arith.constant 0 : index
    %197 = vector.load %arg6[%c231, %c0_63] : memref<448x128xf32, #tpu.memory_space<vmem>>, vector<16x128xf32>
    %c34 = arith.constant 34 : index
    %198 = memref.load %arg1[%c34] : memref<98xf32, #tpu.memory_space<smem>>
    %c35 = arith.constant 35 : index
    %199 = memref.load %arg1[%c35] : memref<98xf32, #tpu.memory_space<smem>>
    %200 = vector.broadcast %198 : f32 to vector<16x128xf32>
    %201 = arith.mulf %196, %200 : vector<16x128xf32>
    %202 = vector.broadcast %199 : f32 to vector<16x128xf32>
    %203 = arith.mulf %197, %202 : vector<16x128xf32>
    %204 = arith.addf %201, %203 : vector<16x128xf32>
    %205 = arith.addf %165, %204 : vector<16x128xf32>
    %c263 = arith.constant 263 : index
    %c0_64 = arith.constant 0 : index
    %206 = vector.load %arg6[%c263, %c0_64] : memref<448x128xf32, #tpu.memory_space<vmem>>, vector<16x128xf32>
    %c295 = arith.constant 295 : index
    %c0_65 = arith.constant 0 : index
    %207 = vector.load %arg6[%c295, %c0_65] : memref<448x128xf32, #tpu.memory_space<vmem>>, vector<16x128xf32>
    %c36 = arith.constant 36 : index
    %208 = memref.load %arg1[%c36] : memref<98xf32, #tpu.memory_space<smem>>
    %c37_66 = arith.constant 37 : index
    %209 = memref.load %arg1[%c37_66] : memref<98xf32, #tpu.memory_space<smem>>
    %210 = vector.broadcast %208 : f32 to vector<16x128xf32>
    %211 = arith.mulf %206, %210 : vector<16x128xf32>
    %212 = vector.broadcast %209 : f32 to vector<16x128xf32>
    %213 = arith.mulf %207, %212 : vector<16x128xf32>
    %214 = arith.addf %211, %213 : vector<16x128xf32>
    %215 = arith.addf %175, %214 : vector<16x128xf32>
    %c327 = arith.constant 327 : index
    %c0_67 = arith.constant 0 : index
    %216 = vector.load %arg6[%c327, %c0_67] : memref<448x128xf32, #tpu.memory_space<vmem>>, vector<16x128xf32>
    %c359 = arith.constant 359 : index
    %c0_68 = arith.constant 0 : index
    %217 = vector.load %arg6[%c359, %c0_68] : memref<448x128xf32, #tpu.memory_space<vmem>>, vector<16x128xf32>
    %c38_69 = arith.constant 38 : index
    %218 = memref.load %arg1[%c38_69] : memref<98xf32, #tpu.memory_space<smem>>
    %c39_70 = arith.constant 39 : index
    %219 = memref.load %arg1[%c39_70] : memref<98xf32, #tpu.memory_space<smem>>
    %220 = vector.broadcast %218 : f32 to vector<16x128xf32>
    %221 = arith.mulf %216, %220 : vector<16x128xf32>
    %222 = vector.broadcast %219 : f32 to vector<16x128xf32>
    %223 = arith.mulf %217, %222 : vector<16x128xf32>
    %224 = arith.addf %221, %223 : vector<16x128xf32>
    %225 = arith.addf %185, %224 : vector<16x128xf32>
    %c391 = arith.constant 391 : index
    %c0_71 = arith.constant 0 : index
    %226 = vector.load %arg6[%c391, %c0_71] : memref<448x128xf32, #tpu.memory_space<vmem>>, vector<16x128xf32>
    %c423 = arith.constant 423 : index
    %c0_72 = arith.constant 0 : index
    %227 = vector.load %arg6[%c423, %c0_72] : memref<448x128xf32, #tpu.memory_space<vmem>>, vector<16x128xf32>
    %c40_73 = arith.constant 40 : index
    %228 = memref.load %arg1[%c40_73] : memref<98xf32, #tpu.memory_space<smem>>
    %c41 = arith.constant 41 : index
    %229 = memref.load %arg1[%c41] : memref<98xf32, #tpu.memory_space<smem>>
    %230 = vector.broadcast %228 : f32 to vector<16x128xf32>
    %231 = arith.mulf %226, %230 : vector<16x128xf32>
    %232 = vector.broadcast %229 : f32 to vector<16x128xf32>
    %233 = arith.mulf %227, %232 : vector<16x128xf32>
    %234 = arith.addf %231, %233 : vector<16x128xf32>
    %235 = arith.addf %195, %234 : vector<16x128xf32>
    %c8_74 = arith.constant 8 : index
    %c0_75 = arith.constant 0 : index
    %236 = vector.load %arg6[%c8_74, %c0_75] : memref<448x128xf32, #tpu.memory_space<vmem>>, vector<16x128xf32>
    %c40_76 = arith.constant 40 : index
    %c0_77 = arith.constant 0 : index
    %237 = vector.load %arg6[%c40_76, %c0_77] : memref<448x128xf32, #tpu.memory_space<vmem>>, vector<16x128xf32>
    %c42 = arith.constant 42 : index
    %238 = memref.load %arg1[%c42] : memref<98xf32, #tpu.memory_space<smem>>
    %c43 = arith.constant 43 : index
    %239 = memref.load %arg1[%c43] : memref<98xf32, #tpu.memory_space<smem>>
    %240 = vector.broadcast %238 : f32 to vector<16x128xf32>
    %241 = arith.mulf %236, %240 : vector<16x128xf32>
    %242 = vector.broadcast %239 : f32 to vector<16x128xf32>
    %243 = arith.mulf %237, %242 : vector<16x128xf32>
    %244 = arith.addf %241, %243 : vector<16x128xf32>
    %245 = arith.addf %205, %244 : vector<16x128xf32>
    %c72 = arith.constant 72 : index
    %c0_78 = arith.constant 0 : index
    %246 = vector.load %arg6[%c72, %c0_78] : memref<448x128xf32, #tpu.memory_space<vmem>>, vector<16x128xf32>
    %c104 = arith.constant 104 : index
    %c0_79 = arith.constant 0 : index
    %247 = vector.load %arg6[%c104, %c0_79] : memref<448x128xf32, #tpu.memory_space<vmem>>, vector<16x128xf32>
    %c44 = arith.constant 44 : index
    %248 = memref.load %arg1[%c44] : memref<98xf32, #tpu.memory_space<smem>>
    %c45 = arith.constant 45 : index
    %249 = memref.load %arg1[%c45] : memref<98xf32, #tpu.memory_space<smem>>
    %250 = vector.broadcast %248 : f32 to vector<16x128xf32>
    %251 = arith.mulf %246, %250 : vector<16x128xf32>
    %252 = vector.broadcast %249 : f32 to vector<16x128xf32>
    %253 = arith.mulf %247, %252 : vector<16x128xf32>
    %254 = arith.addf %251, %253 : vector<16x128xf32>
    %255 = arith.addf %215, %254 : vector<16x128xf32>
    %c136 = arith.constant 136 : index
    %c0_80 = arith.constant 0 : index
    %256 = vector.load %arg6[%c136, %c0_80] : memref<448x128xf32, #tpu.memory_space<vmem>>, vector<16x128xf32>
    %c168 = arith.constant 168 : index
    %c0_81 = arith.constant 0 : index
    %257 = vector.load %arg6[%c168, %c0_81] : memref<448x128xf32, #tpu.memory_space<vmem>>, vector<16x128xf32>
    %c46 = arith.constant 46 : index
    %258 = memref.load %arg1[%c46] : memref<98xf32, #tpu.memory_space<smem>>
    %c47 = arith.constant 47 : index
    %259 = memref.load %arg1[%c47] : memref<98xf32, #tpu.memory_space<smem>>
    %260 = vector.broadcast %258 : f32 to vector<16x128xf32>
    %261 = arith.mulf %256, %260 : vector<16x128xf32>
    %262 = vector.broadcast %259 : f32 to vector<16x128xf32>
    %263 = arith.mulf %257, %262 : vector<16x128xf32>
    %264 = arith.addf %261, %263 : vector<16x128xf32>
    %265 = arith.addf %225, %264 : vector<16x128xf32>
    %c200 = arith.constant 200 : index
    %c0_82 = arith.constant 0 : index
    %266 = vector.load %arg6[%c200, %c0_82] : memref<448x128xf32, #tpu.memory_space<vmem>>, vector<16x128xf32>
    %c232 = arith.constant 232 : index
    %c0_83 = arith.constant 0 : index
    %267 = vector.load %arg6[%c232, %c0_83] : memref<448x128xf32, #tpu.memory_space<vmem>>, vector<16x128xf32>
    %c48 = arith.constant 48 : index
    %268 = memref.load %arg1[%c48] : memref<98xf32, #tpu.memory_space<smem>>
    %c49 = arith.constant 49 : index
    %269 = memref.load %arg1[%c49] : memref<98xf32, #tpu.memory_space<smem>>
    %270 = vector.broadcast %268 : f32 to vector<16x128xf32>
    %271 = arith.mulf %266, %270 : vector<16x128xf32>
    %272 = vector.broadcast %269 : f32 to vector<16x128xf32>
    %273 = arith.mulf %267, %272 : vector<16x128xf32>
    %274 = arith.addf %271, %273 : vector<16x128xf32>
    %275 = arith.addf %235, %274 : vector<16x128xf32>
    %c264 = arith.constant 264 : index
    %c0_84 = arith.constant 0 : index
    %276 = vector.load %arg6[%c264, %c0_84] : memref<448x128xf32, #tpu.memory_space<vmem>>, vector<16x128xf32>
    %c296 = arith.constant 296 : index
    %c0_85 = arith.constant 0 : index
    %277 = vector.load %arg6[%c296, %c0_85] : memref<448x128xf32, #tpu.memory_space<vmem>>, vector<16x128xf32>
    %c50 = arith.constant 50 : index
    %278 = memref.load %arg1[%c50] : memref<98xf32, #tpu.memory_space<smem>>
    %c51 = arith.constant 51 : index
    %279 = memref.load %arg1[%c51] : memref<98xf32, #tpu.memory_space<smem>>
    %280 = vector.broadcast %278 : f32 to vector<16x128xf32>
    %281 = arith.mulf %276, %280 : vector<16x128xf32>
    %282 = vector.broadcast %279 : f32 to vector<16x128xf32>
    %283 = arith.mulf %277, %282 : vector<16x128xf32>
    %284 = arith.addf %281, %283 : vector<16x128xf32>
    %285 = arith.addf %245, %284 : vector<16x128xf32>
    %c328 = arith.constant 328 : index
    %c0_86 = arith.constant 0 : index
    %286 = vector.load %arg6[%c328, %c0_86] : memref<448x128xf32, #tpu.memory_space<vmem>>, vector<16x128xf32>
    %c360 = arith.constant 360 : index
    %c0_87 = arith.constant 0 : index
    %287 = vector.load %arg6[%c360, %c0_87] : memref<448x128xf32, #tpu.memory_space<vmem>>, vector<16x128xf32>
    %c52 = arith.constant 52 : index
    %288 = memref.load %arg1[%c52] : memref<98xf32, #tpu.memory_space<smem>>
    %c53 = arith.constant 53 : index
    %289 = memref.load %arg1[%c53] : memref<98xf32, #tpu.memory_space<smem>>
    %290 = vector.broadcast %288 : f32 to vector<16x128xf32>
    %291 = arith.mulf %286, %290 : vector<16x128xf32>
    %292 = vector.broadcast %289 : f32 to vector<16x128xf32>
    %293 = arith.mulf %287, %292 : vector<16x128xf32>
    %294 = arith.addf %291, %293 : vector<16x128xf32>
    %295 = arith.addf %255, %294 : vector<16x128xf32>
    %c392 = arith.constant 392 : index
    %c0_88 = arith.constant 0 : index
    %296 = vector.load %arg6[%c392, %c0_88] : memref<448x128xf32, #tpu.memory_space<vmem>>, vector<16x128xf32>
    %c424 = arith.constant 424 : index
    %c0_89 = arith.constant 0 : index
    %297 = vector.load %arg6[%c424, %c0_89] : memref<448x128xf32, #tpu.memory_space<vmem>>, vector<16x128xf32>
    %c54 = arith.constant 54 : index
    %298 = memref.load %arg1[%c54] : memref<98xf32, #tpu.memory_space<smem>>
    %c55 = arith.constant 55 : index
    %299 = memref.load %arg1[%c55] : memref<98xf32, #tpu.memory_space<smem>>
    %300 = vector.broadcast %298 : f32 to vector<16x128xf32>
    %301 = arith.mulf %296, %300 : vector<16x128xf32>
    %302 = vector.broadcast %299 : f32 to vector<16x128xf32>
    %303 = arith.mulf %297, %302 : vector<16x128xf32>
    %304 = arith.addf %301, %303 : vector<16x128xf32>
    %305 = arith.addf %265, %304 : vector<16x128xf32>
    %c9_90 = arith.constant 9 : index
    %c0_91 = arith.constant 0 : index
    %306 = vector.load %arg6[%c9_90, %c0_91] : memref<448x128xf32, #tpu.memory_space<vmem>>, vector<16x128xf32>
    %c41_92 = arith.constant 41 : index
    %c0_93 = arith.constant 0 : index
    %307 = vector.load %arg6[%c41_92, %c0_93] : memref<448x128xf32, #tpu.memory_space<vmem>>, vector<16x128xf32>
    %c56 = arith.constant 56 : index
    %308 = memref.load %arg1[%c56] : memref<98xf32, #tpu.memory_space<smem>>
    %c57 = arith.constant 57 : index
    %309 = memref.load %arg1[%c57] : memref<98xf32, #tpu.memory_space<smem>>
    %310 = vector.broadcast %308 : f32 to vector<16x128xf32>
    %311 = arith.mulf %306, %310 : vector<16x128xf32>
    %312 = vector.broadcast %309 : f32 to vector<16x128xf32>
    %313 = arith.mulf %307, %312 : vector<16x128xf32>
    %314 = arith.addf %311, %313 : vector<16x128xf32>
    %315 = arith.addf %275, %314 : vector<16x128xf32>
    %c73 = arith.constant 73 : index
    %c0_94 = arith.constant 0 : index
    %316 = vector.load %arg6[%c73, %c0_94] : memref<448x128xf32, #tpu.memory_space<vmem>>, vector<16x128xf32>
    %c105 = arith.constant 105 : index
    %c0_95 = arith.constant 0 : index
    %317 = vector.load %arg6[%c105, %c0_95] : memref<448x128xf32, #tpu.memory_space<vmem>>, vector<16x128xf32>
    %c58 = arith.constant 58 : index
    %318 = memref.load %arg1[%c58] : memref<98xf32, #tpu.memory_space<smem>>
    %c59 = arith.constant 59 : index
    %319 = memref.load %arg1[%c59] : memref<98xf32, #tpu.memory_space<smem>>
    %320 = vector.broadcast %318 : f32 to vector<16x128xf32>
    %321 = arith.mulf %316, %320 : vector<16x128xf32>
    %322 = vector.broadcast %319 : f32 to vector<16x128xf32>
    %323 = arith.mulf %317, %322 : vector<16x128xf32>
    %324 = arith.addf %321, %323 : vector<16x128xf32>
    %325 = arith.addf %285, %324 : vector<16x128xf32>
    %c137 = arith.constant 137 : index
    %c0_96 = arith.constant 0 : index
    %326 = vector.load %arg6[%c137, %c0_96] : memref<448x128xf32, #tpu.memory_space<vmem>>, vector<16x128xf32>
    %c169 = arith.constant 169 : index
    %c0_97 = arith.constant 0 : index
    %327 = vector.load %arg6[%c169, %c0_97] : memref<448x128xf32, #tpu.memory_space<vmem>>, vector<16x128xf32>
    %c60 = arith.constant 60 : index
    %328 = memref.load %arg1[%c60] : memref<98xf32, #tpu.memory_space<smem>>
    %c61 = arith.constant 61 : index
    %329 = memref.load %arg1[%c61] : memref<98xf32, #tpu.memory_space<smem>>
    %330 = vector.broadcast %328 : f32 to vector<16x128xf32>
    %331 = arith.mulf %326, %330 : vector<16x128xf32>
    %332 = vector.broadcast %329 : f32 to vector<16x128xf32>
    %333 = arith.mulf %327, %332 : vector<16x128xf32>
    %334 = arith.addf %331, %333 : vector<16x128xf32>
    %335 = arith.addf %295, %334 : vector<16x128xf32>
    %c201 = arith.constant 201 : index
    %c0_98 = arith.constant 0 : index
    %336 = vector.load %arg6[%c201, %c0_98] : memref<448x128xf32, #tpu.memory_space<vmem>>, vector<16x128xf32>
    %c233 = arith.constant 233 : index
    %c0_99 = arith.constant 0 : index
    %337 = vector.load %arg6[%c233, %c0_99] : memref<448x128xf32, #tpu.memory_space<vmem>>, vector<16x128xf32>
    %c62 = arith.constant 62 : index
    %338 = memref.load %arg1[%c62] : memref<98xf32, #tpu.memory_space<smem>>
    %c63 = arith.constant 63 : index
    %339 = memref.load %arg1[%c63] : memref<98xf32, #tpu.memory_space<smem>>
    %340 = vector.broadcast %338 : f32 to vector<16x128xf32>
    %341 = arith.mulf %336, %340 : vector<16x128xf32>
    %342 = vector.broadcast %339 : f32 to vector<16x128xf32>
    %343 = arith.mulf %337, %342 : vector<16x128xf32>
    %344 = arith.addf %341, %343 : vector<16x128xf32>
    %345 = arith.addf %305, %344 : vector<16x128xf32>
    %c265 = arith.constant 265 : index
    %c0_100 = arith.constant 0 : index
    %346 = vector.load %arg6[%c265, %c0_100] : memref<448x128xf32, #tpu.memory_space<vmem>>, vector<16x128xf32>
    %c297 = arith.constant 297 : index
    %c0_101 = arith.constant 0 : index
    %347 = vector.load %arg6[%c297, %c0_101] : memref<448x128xf32, #tpu.memory_space<vmem>>, vector<16x128xf32>
    %c64_102 = arith.constant 64 : index
    %348 = memref.load %arg1[%c64_102] : memref<98xf32, #tpu.memory_space<smem>>
    %c65 = arith.constant 65 : index
    %349 = memref.load %arg1[%c65] : memref<98xf32, #tpu.memory_space<smem>>
    %350 = vector.broadcast %348 : f32 to vector<16x128xf32>
    %351 = arith.mulf %346, %350 : vector<16x128xf32>
    %352 = vector.broadcast %349 : f32 to vector<16x128xf32>
    %353 = arith.mulf %347, %352 : vector<16x128xf32>
    %354 = arith.addf %351, %353 : vector<16x128xf32>
    %355 = arith.addf %315, %354 : vector<16x128xf32>
    %c329 = arith.constant 329 : index
    %c0_103 = arith.constant 0 : index
    %356 = vector.load %arg6[%c329, %c0_103] : memref<448x128xf32, #tpu.memory_space<vmem>>, vector<16x128xf32>
    %c361 = arith.constant 361 : index
    %c0_104 = arith.constant 0 : index
    %357 = vector.load %arg6[%c361, %c0_104] : memref<448x128xf32, #tpu.memory_space<vmem>>, vector<16x128xf32>
    %c66 = arith.constant 66 : index
    %358 = memref.load %arg1[%c66] : memref<98xf32, #tpu.memory_space<smem>>
    %c67 = arith.constant 67 : index
    %359 = memref.load %arg1[%c67] : memref<98xf32, #tpu.memory_space<smem>>
    %360 = vector.broadcast %358 : f32 to vector<16x128xf32>
    %361 = arith.mulf %356, %360 : vector<16x128xf32>
    %362 = vector.broadcast %359 : f32 to vector<16x128xf32>
    %363 = arith.mulf %357, %362 : vector<16x128xf32>
    %364 = arith.addf %361, %363 : vector<16x128xf32>
    %365 = arith.addf %325, %364 : vector<16x128xf32>
    %c393 = arith.constant 393 : index
    %c0_105 = arith.constant 0 : index
    %366 = vector.load %arg6[%c393, %c0_105] : memref<448x128xf32, #tpu.memory_space<vmem>>, vector<16x128xf32>
    %c425 = arith.constant 425 : index
    %c0_106 = arith.constant 0 : index
    %367 = vector.load %arg6[%c425, %c0_106] : memref<448x128xf32, #tpu.memory_space<vmem>>, vector<16x128xf32>
    %c68 = arith.constant 68 : index
    %368 = memref.load %arg1[%c68] : memref<98xf32, #tpu.memory_space<smem>>
    %c69_107 = arith.constant 69 : index
    %369 = memref.load %arg1[%c69_107] : memref<98xf32, #tpu.memory_space<smem>>
    %370 = vector.broadcast %368 : f32 to vector<16x128xf32>
    %371 = arith.mulf %366, %370 : vector<16x128xf32>
    %372 = vector.broadcast %369 : f32 to vector<16x128xf32>
    %373 = arith.mulf %367, %372 : vector<16x128xf32>
    %374 = arith.addf %371, %373 : vector<16x128xf32>
    %375 = arith.addf %335, %374 : vector<16x128xf32>
    %c10_108 = arith.constant 10 : index
    %c0_109 = arith.constant 0 : index
    %376 = vector.load %arg6[%c10_108, %c0_109] : memref<448x128xf32, #tpu.memory_space<vmem>>, vector<16x128xf32>
    %c42_110 = arith.constant 42 : index
    %c0_111 = arith.constant 0 : index
    %377 = vector.load %arg6[%c42_110, %c0_111] : memref<448x128xf32, #tpu.memory_space<vmem>>, vector<16x128xf32>
    %c70_112 = arith.constant 70 : index
    %378 = memref.load %arg1[%c70_112] : memref<98xf32, #tpu.memory_space<smem>>
    %c71_113 = arith.constant 71 : index
    %379 = memref.load %arg1[%c71_113] : memref<98xf32, #tpu.memory_space<smem>>
    %380 = vector.broadcast %378 : f32 to vector<16x128xf32>
    %381 = arith.mulf %376, %380 : vector<16x128xf32>
    %382 = vector.broadcast %379 : f32 to vector<16x128xf32>
    %383 = arith.mulf %377, %382 : vector<16x128xf32>
    %384 = arith.addf %381, %383 : vector<16x128xf32>
    %385 = arith.addf %345, %384 : vector<16x128xf32>
    %c74 = arith.constant 74 : index
    %c0_114 = arith.constant 0 : index
    %386 = vector.load %arg6[%c74, %c0_114] : memref<448x128xf32, #tpu.memory_space<vmem>>, vector<16x128xf32>
    %c106 = arith.constant 106 : index
    %c0_115 = arith.constant 0 : index
    %387 = vector.load %arg6[%c106, %c0_115] : memref<448x128xf32, #tpu.memory_space<vmem>>, vector<16x128xf32>
    %c72_116 = arith.constant 72 : index
    %388 = memref.load %arg1[%c72_116] : memref<98xf32, #tpu.memory_space<smem>>
    %c73_117 = arith.constant 73 : index
    %389 = memref.load %arg1[%c73_117] : memref<98xf32, #tpu.memory_space<smem>>
    %390 = vector.broadcast %388 : f32 to vector<16x128xf32>
    %391 = arith.mulf %386, %390 : vector<16x128xf32>
    %392 = vector.broadcast %389 : f32 to vector<16x128xf32>
    %393 = arith.mulf %387, %392 : vector<16x128xf32>
    %394 = arith.addf %391, %393 : vector<16x128xf32>
    %395 = arith.addf %355, %394 : vector<16x128xf32>
    %c138 = arith.constant 138 : index
    %c0_118 = arith.constant 0 : index
    %396 = vector.load %arg6[%c138, %c0_118] : memref<448x128xf32, #tpu.memory_space<vmem>>, vector<16x128xf32>
    %c170 = arith.constant 170 : index
    %c0_119 = arith.constant 0 : index
    %397 = vector.load %arg6[%c170, %c0_119] : memref<448x128xf32, #tpu.memory_space<vmem>>, vector<16x128xf32>
    %c74_120 = arith.constant 74 : index
    %398 = memref.load %arg1[%c74_120] : memref<98xf32, #tpu.memory_space<smem>>
    %c75 = arith.constant 75 : index
    %399 = memref.load %arg1[%c75] : memref<98xf32, #tpu.memory_space<smem>>
    %400 = vector.broadcast %398 : f32 to vector<16x128xf32>
    %401 = arith.mulf %396, %400 : vector<16x128xf32>
    %402 = vector.broadcast %399 : f32 to vector<16x128xf32>
    %403 = arith.mulf %397, %402 : vector<16x128xf32>
    %404 = arith.addf %401, %403 : vector<16x128xf32>
    %405 = arith.addf %365, %404 : vector<16x128xf32>
    %c202 = arith.constant 202 : index
    %c0_121 = arith.constant 0 : index
    %406 = vector.load %arg6[%c202, %c0_121] : memref<448x128xf32, #tpu.memory_space<vmem>>, vector<16x128xf32>
    %c234 = arith.constant 234 : index
    %c0_122 = arith.constant 0 : index
    %407 = vector.load %arg6[%c234, %c0_122] : memref<448x128xf32, #tpu.memory_space<vmem>>, vector<16x128xf32>
    %c76 = arith.constant 76 : index
    %408 = memref.load %arg1[%c76] : memref<98xf32, #tpu.memory_space<smem>>
    %c77 = arith.constant 77 : index
    %409 = memref.load %arg1[%c77] : memref<98xf32, #tpu.memory_space<smem>>
    %410 = vector.broadcast %408 : f32 to vector<16x128xf32>
    %411 = arith.mulf %406, %410 : vector<16x128xf32>
    %412 = vector.broadcast %409 : f32 to vector<16x128xf32>
    %413 = arith.mulf %407, %412 : vector<16x128xf32>
    %414 = arith.addf %411, %413 : vector<16x128xf32>
    %415 = arith.addf %375, %414 : vector<16x128xf32>
    %c266 = arith.constant 266 : index
    %c0_123 = arith.constant 0 : index
    %416 = vector.load %arg6[%c266, %c0_123] : memref<448x128xf32, #tpu.memory_space<vmem>>, vector<16x128xf32>
    %c298 = arith.constant 298 : index
    %c0_124 = arith.constant 0 : index
    %417 = vector.load %arg6[%c298, %c0_124] : memref<448x128xf32, #tpu.memory_space<vmem>>, vector<16x128xf32>
    %c78 = arith.constant 78 : index
    %418 = memref.load %arg1[%c78] : memref<98xf32, #tpu.memory_space<smem>>
    %c79 = arith.constant 79 : index
    %419 = memref.load %arg1[%c79] : memref<98xf32, #tpu.memory_space<smem>>
    %420 = vector.broadcast %418 : f32 to vector<16x128xf32>
    %421 = arith.mulf %416, %420 : vector<16x128xf32>
    %422 = vector.broadcast %419 : f32 to vector<16x128xf32>
    %423 = arith.mulf %417, %422 : vector<16x128xf32>
    %424 = arith.addf %421, %423 : vector<16x128xf32>
    %425 = arith.addf %385, %424 : vector<16x128xf32>
    %c330 = arith.constant 330 : index
    %c0_125 = arith.constant 0 : index
    %426 = vector.load %arg6[%c330, %c0_125] : memref<448x128xf32, #tpu.memory_space<vmem>>, vector<16x128xf32>
    %c362 = arith.constant 362 : index
    %c0_126 = arith.constant 0 : index
    %427 = vector.load %arg6[%c362, %c0_126] : memref<448x128xf32, #tpu.memory_space<vmem>>, vector<16x128xf32>
    %c80 = arith.constant 80 : index
    %428 = memref.load %arg1[%c80] : memref<98xf32, #tpu.memory_space<smem>>
    %c81 = arith.constant 81 : index
    %429 = memref.load %arg1[%c81] : memref<98xf32, #tpu.memory_space<smem>>
    %430 = vector.broadcast %428 : f32 to vector<16x128xf32>
    %431 = arith.mulf %426, %430 : vector<16x128xf32>
    %432 = vector.broadcast %429 : f32 to vector<16x128xf32>
    %433 = arith.mulf %427, %432 : vector<16x128xf32>
    %434 = arith.addf %431, %433 : vector<16x128xf32>
    %435 = arith.addf %395, %434 : vector<16x128xf32>
    %c394 = arith.constant 394 : index
    %c0_127 = arith.constant 0 : index
    %436 = vector.load %arg6[%c394, %c0_127] : memref<448x128xf32, #tpu.memory_space<vmem>>, vector<16x128xf32>
    %c426 = arith.constant 426 : index
    %c0_128 = arith.constant 0 : index
    %437 = vector.load %arg6[%c426, %c0_128] : memref<448x128xf32, #tpu.memory_space<vmem>>, vector<16x128xf32>
    %c82 = arith.constant 82 : index
    %438 = memref.load %arg1[%c82] : memref<98xf32, #tpu.memory_space<smem>>
    %c83 = arith.constant 83 : index
    %439 = memref.load %arg1[%c83] : memref<98xf32, #tpu.memory_space<smem>>
    %440 = vector.broadcast %438 : f32 to vector<16x128xf32>
    %441 = arith.mulf %436, %440 : vector<16x128xf32>
    %442 = vector.broadcast %439 : f32 to vector<16x128xf32>
    %443 = arith.mulf %437, %442 : vector<16x128xf32>
    %444 = arith.addf %441, %443 : vector<16x128xf32>
    %445 = arith.addf %405, %444 : vector<16x128xf32>
    %c11_129 = arith.constant 11 : index
    %c0_130 = arith.constant 0 : index
    %446 = vector.load %arg6[%c11_129, %c0_130] : memref<448x128xf32, #tpu.memory_space<vmem>>, vector<16x128xf32>
    %c43_131 = arith.constant 43 : index
    %c0_132 = arith.constant 0 : index
    %447 = vector.load %arg6[%c43_131, %c0_132] : memref<448x128xf32, #tpu.memory_space<vmem>>, vector<16x128xf32>
    %c84 = arith.constant 84 : index
    %448 = memref.load %arg1[%c84] : memref<98xf32, #tpu.memory_space<smem>>
    %c85 = arith.constant 85 : index
    %449 = memref.load %arg1[%c85] : memref<98xf32, #tpu.memory_space<smem>>
    %450 = vector.broadcast %448 : f32 to vector<16x128xf32>
    %451 = arith.mulf %446, %450 : vector<16x128xf32>
    %452 = vector.broadcast %449 : f32 to vector<16x128xf32>
    %453 = arith.mulf %447, %452 : vector<16x128xf32>
    %454 = arith.addf %451, %453 : vector<16x128xf32>
    %455 = arith.addf %415, %454 : vector<16x128xf32>
    %c75_133 = arith.constant 75 : index
    %c0_134 = arith.constant 0 : index
    %456 = vector.load %arg6[%c75_133, %c0_134] : memref<448x128xf32, #tpu.memory_space<vmem>>, vector<16x128xf32>
    %c107 = arith.constant 107 : index
    %c0_135 = arith.constant 0 : index
    %457 = vector.load %arg6[%c107, %c0_135] : memref<448x128xf32, #tpu.memory_space<vmem>>, vector<16x128xf32>
    %c86 = arith.constant 86 : index
    %458 = memref.load %arg1[%c86] : memref<98xf32, #tpu.memory_space<smem>>
    %c87 = arith.constant 87 : index
    %459 = memref.load %arg1[%c87] : memref<98xf32, #tpu.memory_space<smem>>
    %460 = vector.broadcast %458 : f32 to vector<16x128xf32>
    %461 = arith.mulf %456, %460 : vector<16x128xf32>
    %462 = vector.broadcast %459 : f32 to vector<16x128xf32>
    %463 = arith.mulf %457, %462 : vector<16x128xf32>
    %464 = arith.addf %461, %463 : vector<16x128xf32>
    %465 = arith.addf %425, %464 : vector<16x128xf32>
    %c139 = arith.constant 139 : index
    %c0_136 = arith.constant 0 : index
    %466 = vector.load %arg6[%c139, %c0_136] : memref<448x128xf32, #tpu.memory_space<vmem>>, vector<16x128xf32>
    %c171 = arith.constant 171 : index
    %c0_137 = arith.constant 0 : index
    %467 = vector.load %arg6[%c171, %c0_137] : memref<448x128xf32, #tpu.memory_space<vmem>>, vector<16x128xf32>
    %c88 = arith.constant 88 : index
    %468 = memref.load %arg1[%c88] : memref<98xf32, #tpu.memory_space<smem>>
    %c89 = arith.constant 89 : index
    %469 = memref.load %arg1[%c89] : memref<98xf32, #tpu.memory_space<smem>>
    %470 = vector.broadcast %468 : f32 to vector<16x128xf32>
    %471 = arith.mulf %466, %470 : vector<16x128xf32>
    %472 = vector.broadcast %469 : f32 to vector<16x128xf32>
    %473 = arith.mulf %467, %472 : vector<16x128xf32>
    %474 = arith.addf %471, %473 : vector<16x128xf32>
    %475 = arith.addf %435, %474 : vector<16x128xf32>
    %c203 = arith.constant 203 : index
    %c0_138 = arith.constant 0 : index
    %476 = vector.load %arg6[%c203, %c0_138] : memref<448x128xf32, #tpu.memory_space<vmem>>, vector<16x128xf32>
    %c235 = arith.constant 235 : index
    %c0_139 = arith.constant 0 : index
    %477 = vector.load %arg6[%c235, %c0_139] : memref<448x128xf32, #tpu.memory_space<vmem>>, vector<16x128xf32>
    %c90 = arith.constant 90 : index
    %478 = memref.load %arg1[%c90] : memref<98xf32, #tpu.memory_space<smem>>
    %c91 = arith.constant 91 : index
    %479 = memref.load %arg1[%c91] : memref<98xf32, #tpu.memory_space<smem>>
    %480 = vector.broadcast %478 : f32 to vector<16x128xf32>
    %481 = arith.mulf %476, %480 : vector<16x128xf32>
    %482 = vector.broadcast %479 : f32 to vector<16x128xf32>
    %483 = arith.mulf %477, %482 : vector<16x128xf32>
    %484 = arith.addf %481, %483 : vector<16x128xf32>
    %485 = arith.addf %445, %484 : vector<16x128xf32>
    %c267 = arith.constant 267 : index
    %c0_140 = arith.constant 0 : index
    %486 = vector.load %arg6[%c267, %c0_140] : memref<448x128xf32, #tpu.memory_space<vmem>>, vector<16x128xf32>
    %c299 = arith.constant 299 : index
    %c0_141 = arith.constant 0 : index
    %487 = vector.load %arg6[%c299, %c0_141] : memref<448x128xf32, #tpu.memory_space<vmem>>, vector<16x128xf32>
    %c92 = arith.constant 92 : index
    %488 = memref.load %arg1[%c92] : memref<98xf32, #tpu.memory_space<smem>>
    %c93 = arith.constant 93 : index
    %489 = memref.load %arg1[%c93] : memref<98xf32, #tpu.memory_space<smem>>
    %490 = vector.broadcast %488 : f32 to vector<16x128xf32>
    %491 = arith.mulf %486, %490 : vector<16x128xf32>
    %492 = vector.broadcast %489 : f32 to vector<16x128xf32>
    %493 = arith.mulf %487, %492 : vector<16x128xf32>
    %494 = arith.addf %491, %493 : vector<16x128xf32>
    %495 = arith.addf %455, %494 : vector<16x128xf32>
    %c331 = arith.constant 331 : index
    %c0_142 = arith.constant 0 : index
    %496 = vector.load %arg6[%c331, %c0_142] : memref<448x128xf32, #tpu.memory_space<vmem>>, vector<16x128xf32>
    %c363 = arith.constant 363 : index
    %c0_143 = arith.constant 0 : index
    %497 = vector.load %arg6[%c363, %c0_143] : memref<448x128xf32, #tpu.memory_space<vmem>>, vector<16x128xf32>
    %c94 = arith.constant 94 : index
    %498 = memref.load %arg1[%c94] : memref<98xf32, #tpu.memory_space<smem>>
    %c95 = arith.constant 95 : index
    %499 = memref.load %arg1[%c95] : memref<98xf32, #tpu.memory_space<smem>>
    %500 = vector.broadcast %498 : f32 to vector<16x128xf32>
    %501 = arith.mulf %496, %500 : vector<16x128xf32>
    %502 = vector.broadcast %499 : f32 to vector<16x128xf32>
    %503 = arith.mulf %497, %502 : vector<16x128xf32>
    %504 = arith.addf %501, %503 : vector<16x128xf32>
    %505 = arith.addf %465, %504 : vector<16x128xf32>
    %c395 = arith.constant 395 : index
    %c0_144 = arith.constant 0 : index
    %506 = vector.load %arg6[%c395, %c0_144] : memref<448x128xf32, #tpu.memory_space<vmem>>, vector<16x128xf32>
    %c427 = arith.constant 427 : index
    %c0_145 = arith.constant 0 : index
    %507 = vector.load %arg6[%c427, %c0_145] : memref<448x128xf32, #tpu.memory_space<vmem>>, vector<16x128xf32>
    %c96 = arith.constant 96 : index
    %508 = memref.load %arg1[%c96] : memref<98xf32, #tpu.memory_space<smem>>
    %c97 = arith.constant 97 : index
    %509 = memref.load %arg1[%c97] : memref<98xf32, #tpu.memory_space<smem>>
    %510 = vector.broadcast %508 : f32 to vector<16x128xf32>
    %511 = arith.mulf %506, %510 : vector<16x128xf32>
    %512 = vector.broadcast %509 : f32 to vector<16x128xf32>
    %513 = arith.mulf %507, %512 : vector<16x128xf32>
    %514 = arith.addf %511, %513 : vector<16x128xf32>
    %515 = arith.addf %475, %514 : vector<16x128xf32>
    %516 = arith.addf %515, %485 : vector<16x128xf32>
    %517 = arith.addf %495, %505 : vector<16x128xf32>
    %518 = arith.addf %516, %517 : vector<16x128xf32>
    %519 = vector.extract_strided_slice %518 {offsets = [0, 0], sizes = [16, 16], strides = [1, 1]} : vector<16x128xf32> to vector<16x16xf32>
    %520 = arith.negf %519 : vector<16x16xf32>
    %521 = math.exp %520 : vector<16x16xf32>
    %cst_146 = arith.constant 1.000000e+00 : f32
    %522 = vector.broadcast %cst_146 : f32 to vector<16x16xf32>
    %523 = arith.addf %522, %521 : vector<16x16xf32>
    %524 = arith.divf %522, %523 : vector<16x16xf32>
    %c0_147 = arith.constant 0 : index
    %c0_148 = arith.constant 0 : index
    %c0_149 = arith.constant 0 : index
    %525 = vector.load %arg4[%c0_147, %c0_148, %c0_149] : memref<1x16x16xf32, #tpu.memory_space<vmem>>, vector<1x16x16xf32>
    %526 = vector.shape_cast %525 : vector<1x16x16xf32> to vector<16x16xf32>
    %527 = vector.shape_cast %524 : vector<16x16xf32> to vector<1x16x16xf32>
    tpu.vector_store %arg4[%c0_147, %c0_148, %c0_149], %527 {strides = array<i32>} : memref<1x16x16xf32, #tpu.memory_space<vmem>>, vector<1x16x16xf32>,
    return
  }
  func.func @transform_0(%arg0: i32) -> i32 {
    %c0_i32 = arith.constant 0 : i32
    %c0_i32_0 = arith.constant 0 : i32
    return %c0_i32 : i32
  }
  func.func @transform_1(%arg0: i32) -> (i32, i32, i32) {
    %c0_i32 = arith.constant 0 : i32
    %c0_i32_0 = arith.constant 0 : i32
    %c0_i32_1 = arith.constant 0 : i32
    return %arg0, %c0_i32, %c0_i32_0 : i32, i32, i32
  }
  func.func @transform_2(%arg0: i32) -> (i32, i32, i32) {
    %c0_i32 = arith.constant 0 : i32
    %c0_i32_0 = arith.constant 0 : i32
    %c0_i32_1 = arith.constant 0 : i32
    return %arg0, %c0_i32, %c0_i32_0 : i32, i32, i32
  }
  func.func @transform_3(%arg0: i32) -> (i32, i32, i32) {
    %c0_i32 = arith.constant 0 : i32
    %c0_i32_0 = arith.constant 0 : i32
    %c0_i32_1 = arith.constant 0 : i32
    return %arg0, %c0_i32, %c0_i32_0 : i32, i32, i32
  }
}

</mosaic_0001>

<llo_original>
// kernel: conv_cbam_forward.7
$region0: #{conv_cbam_forward.7}
  #allocation0 [shape = 'u32[]', space=smem, size = 0x4, offset = 0x4, fixed_abs, tag = 'smem constant byte address 0x4 - core index']
  #allocation1 [shape = 'u32[144,128]{1,0:T(1,128)}', space=vmem, size = 0x12000, scoped, tag = 'internal scratch']
  %s0 = inlined_call_operand.hbm [shape: bf16[2,16,16,32], index: 0, kind: input, shape index: {}]
  %s1 = inlined_call_operand.hbm [shape: f32[2,1,32], index: 1, kind: input, shape index: {}]
  %s2 = inlined_call_operand.hbm [shape: f32[2,16,16], index: 2, kind: input, shape index: {}]
  %s3 = inlined_call_operand.hbm [shape: f32[2,16,16,32], index: 3, kind: output, shape index: {}]
  %s4 = sld [smem:[#allocation0]]
  $region57: #{conv_cbam_forward.7} parent=0
    _
  %s6 = ssub.s32 1, %s4
  %s7 = scalar_select 0, %s6, %s4
  $region1: #{conv_cbam_forward.7} parent=0
    #allocation2 [shape = 'u8[65536]{0}', space=vmem, size = 0x10000, scoped, tag = 'input window, operand 0']
    #allocation3 [shape = 's32[2]{0}', space=sflag, size = 0x8, scoped, tag = 'scoped memory for conv_cbam_forward.7']
    #allocation4 [shape = 's32[2]{0}', space=sflag, size = 0x8, scoped, tag = 'scoped memory for conv_cbam_forward.7']
    #allocation5 [shape = 'u8[1024]{0}', space=vmem, size = 0x400, scoped, tag = 'input window, operand 1']
    #allocation6 [shape = 's32[2]{0}', space=sflag, size = 0x8, scoped, tag = 'scoped memory for conv_cbam_forward.7']
    #allocation7 [shape = 'u8[8192]{0}', space=vmem, size = 0x2000, scoped, tag = 'input window, operand 2']
    #allocation8 [shape = 'u8[131072]{0}', space=vmem, size = 0x20000, scoped, tag = 'output window, operand 0']
    %8 = vsyncpa [#allocation3], 0
    %s9 = scalar_lea.sflag [#allocation3], 1
    %10 = vsyncpa %s9, 0
    %11 = vsyncpa [#allocation6], 0
    %s12 = scalar_lea.sflag [#allocation6], 1
    %13 = vsyncpa %s12, 0
    %14 = vsyncpa [#allocation4], 0
    %s15 = scalar_lea.sflag [#allocation4], 1
    %16 = vsyncpa %s15, 0
    loop: start=0, step=1, limit=6
    $region2: #{conv_cbam_forward.7} parent=1 // loop_pre_header
      _
    $region3: #{conv_cbam_forward.7} parent=1 // loop_header
      %s18 = sphi 0, %s22
      %p19 = scmp.ge.s32.totalorder %s18, 6
      %s25 = sphi 0, %s37
      %s26 = sphi 0, %s33
      %s27 = sphi 0, %s25
      %s28 = sphi 0, %s26
      %s29 = sphi 0, %s27
      %s30 = sphi 0, %s28
      %s42 = sphi 0, %s44
      %s45 = sphi 0, %s42
      %s46 = sphi 0, %s45
      %s62 = sphi 0, %s46
      %s68 = sphi 0, %s70
      %s71 = sphi 0, %s68
      %s72 = sphi 0, %s71
      %s88 = sphi 0, %s72
      %s96 = sphi 0, %s98
      %s99 = sphi 0, %s96
      %s100 = sphi 0, %s99
      %s116 = sphi 0, %s100
      %s124 = sphi 0, %s126
      %s127 = sphi 0, %s124
      %s128 = sphi 0, %s127
      %s144 = sphi 0, %s128
    $region4: #{conv_cbam_forward.7} parent=1 // loop_header_branch
      %21 = sbr.rel (%p19) target = $region8
    $region5: #{conv_cbam_forward.7} parent=1 // loop_body
      %s23 = ssub.s32 %s18, 1
      %s24 = ssub.s32 %s18, 2
      %s31 = sadd.s32 1, %s26
      %p32 = scmp.ge.s32.totalorder %s31, 2
      %s33 = scalar_select %p32, 0, %s31
      %s34 = sadd.s32 1, %s25
      %s35 = scalar_select %p32, %s34, %s25
      %p36 = scmp.ge.s32.totalorder %s35, 2
      %s37 = scalar_select %p36, 0, %s35
      %s38 = ssub.s32 %s25, %s37
      %s39 = ssub.s32 %s26, %s33
      %s40 = sor.u32 %s38, %s39
      %p41 = scmp.eq.s32.totalorder %s40, 0
      %s43 = sadd.s32 %s42, 1
      %s44 = scalar_select %p41, %s42, %s43
      %p47 = pneg %p41
      %p48 = scmp.eq.s32.totalorder %s18, 3
      %p49 = por %p47, %p48
      %p50 = scmp.ne.s32.totalorder %s42, %s45
      %p51 = scmp.eq.s32.totalorder %s18, 0
      %p52 = por %p50, %p51
      %p53 = scmp.ne.s32.totalorder %s42, %s45
      %p54 = scmp.eq.s32.totalorder %s23, 3
      %p55 = por %p53, %p54
      %p56 = scmp.ne.s32.totalorder %s45, %s46
      %p57 = scmp.eq.s32.totalorder %s23, 0
      %p58 = por %p56, %p57
      %p59 = scmp.ne.s32.totalorder %s45, %s46
      %p60 = scmp.eq.s32.totalorder %s24, 3
      %p61 = por %p59, %p60
      %p63 = scmp.ne.s32.totalorder %s46, %s62
      %p64 = scmp.eq.s32.totalorder %s24, 0
      %p65 = por %p63, %p64
      %s66 = ssub.s32 %s25, %s37
      %p67 = scmp.eq.s32.totalorder %s66, 0
      %s69 = sadd.s32 %s68, 1
      %s70 = scalar_select %p67, %s68, %s69
      %p73 = pneg %p67
      %p74 = scmp.eq.s32.totalorder %s18, 3
      %p75 = por %p73, %p74
      %p76 = scmp.ne.s32.totalorder %s68, %s71
      %p77 = scmp.eq.s32.totalorder %s18, 0
      %p78 = por %p76, %p77
      %p79 = scmp.ne.s32.totalorder %s68, %s71
      %p80 = scmp.eq.s32.totalorder %s23, 3
      %p81 = por %p79, %p80
      %p82 = scmp.ne.s32.totalorder %s71, %s72
      %p83 = scmp.eq.s32.totalorder %s23, 0
      %p84 = por %p82, %p83
      %p85 = scmp.ne.s32.totalorder %s71, %s72
      %p86 = scmp.eq.s32.totalorder %s24, 3
      %p87 = por %p85, %p86
      %p89 = scmp.ne.s32.totalorder %s72, %s88
      %p90 = scmp.eq.s32.totalorder %s24, 0
      %p91 = por %p89, %p90
      %s92 = ssub.s32 %s25, %s37
      %s93 = ssub.s32 %s26, %s33
      %s94 = sor.u32 %s92, %s93
      %p95 = scmp.eq.s32.totalorder %s94, 0
      %s97 = sadd.s32 %s96, 1
      %s98 = scalar_select %p95, %s96, %s97
      %p101 = pneg %p95
      %p102 = scmp.eq.s32.totalorder %s18, 3
      %p103 = por %p101, %p102
      %p104 = scmp.ne.s32.totalorder %s96, %s99
      %p105 = scmp.eq.s32.totalorder %s18, 0
      %p106 = por %p104, %p105
      %p107 = scmp.ne.s32.totalorder %s96, %s99
      %p108 = scmp.eq.s32.totalorder %s23, 3
      %p109 = por %p107, %p108
      %p110 = scmp.ne.s32.totalorder %s99, %s100
      %p111 = scmp.eq.s32.totalorder %s23, 0
      %p112 = por %p110, %p111
      %p113 = scmp.ne.s32.totalorder %s99, %s100
      %p114 = scmp.eq.s32.totalorder %s24, 3
      %p115 = por %p113, %p114
      %p117 = scmp.ne.s32.totalorder %s100, %s116
      %p118 = scmp.eq.s32.totalorder %s24, 0
      %p119 = por %p117, %p118
      %s120 = ssub.s32 %s25, %s37
      %s121 = ssub.s32 %s26, %s33
      %s122 = sor.u32 %s120, %s121
      %p123 = scmp.eq.s32.totalorder %s122, 0
      %s125 = sadd.s32 %s124, 1
      %s126 = scalar_select %p123, %s124, %s125
      %p129 = pneg %p123
      %p130 = scmp.eq.s32.totalorder %s18, 3
      %p131 = por %p129, %p130
      %p132 = scmp.ne.s32.totalorder %s124, %s127
      %p133 = scmp.eq.s32.totalorder %s18, 0
      %p134 = por %p132, %p133
      %p135 = scmp.ne.s32.totalorder %s124, %s127
      %p136 = scmp.eq.s32.totalorder %s23, 3
      %p137 = por %p135, %p136
      %p138 = scmp.ne.s32.totalorder %s127, %s128
      %p139 = scmp.eq.s32.totalorder %s23, 0
      %p140 = por %p138, %p139
      %p141 = scmp.ne.s32.totalorder %s127, %s128
      %p142 = scmp.eq.s32.totalorder %s24, 3
      %p143 = por %p141, %p142
      %p145 = scmp.ne.s32.totalorder %s128, %s144
      %p146 = scmp.eq.s32.totalorder %s24, 0
      %p147 = por %p145, %p146
      %p148 = scmp.le.s32.totalorder 1, %s18
      %p149 = scmp.lt.s32.totalorder %s18, 5
      %p150 = pnand %p148, %p149
      %p151 = pneg %p150
      // Predicated region
      $region9: #{conv_cbam_forward.7} parent=5 // pred_check
        _
      $region10: #{conv_cbam_forward.7} parent=5 // pred_check_branch
        %153 = sbr.rel (%p150) target = $region12
      $region11: #{conv_cbam_forward.7} parent=5 // pred_region
        %s154 = ssub.s32 %s18, 1
      $region12: #{conv_cbam_forward.7} parent=5 // pred_fallthru
        _
      %p155 = scmp.lt.s32.totalorder %s18, 4
      // Predicated region
      $region13: #{conv_cbam_forward.7} parent=5 // pred_check
        %p156 = pneg %p155
      $region14: #{conv_cbam_forward.7} parent=5 // pred_check_branch
        %158 = sbr.rel (%p156) target = $region16
      $region15: #{conv_cbam_forward.7} parent=5 // pred_region
        // Predicated region
        $region17: #{conv_cbam_forward.7} parent=15 // pred_check
          %p159 = pneg %p52
        $region18: #{conv_cbam_forward.7} parent=15 // pred_check_branch
          %161 = sbr.rel (%p159) target = $region20
        $region19: #{conv_cbam_forward.7} parent=15 // pred_region
          %s162 = sand.u32 %s42, 1
          %s163 = scalar_lea.sflag [#allocation3], %s162
          %s164 = sand.u32 %s42, 1
          %s165 = smul.addr %s164, 64
          %s166 = scalar_lea.vmem [#allocation2], %s165
          %s167 = smul.u32 8, %s26
          %s169 = ssub.s32 1024, 1024
          %170 = vsyncadd %s163, %s169
          %s171 = smul.addr %s167, 2
          %s172 = smul.addr %s25, 32
          %s173 = sadd.s32 %s171, %s172
          %s174 = smul.addr %s173, 64
          %s175 = scalar_lea.hbm %s0, %s174
          %s176 = sshll.u32 %s166, 4
          %s177 = int_to_ptr.vmem [resolvable:$true] %s176
          %182 = dma.hbm_to_vmem [thread:$0]  %s175, 1024, %s177, %s163, 64, 64, 4
        $region20: #{conv_cbam_forward.7} parent=15 // pred_fallthru
          _
        // Predicated region
        $region21: #{conv_cbam_forward.7} parent=15 // pred_check
          %p183 = pneg %p78
        $region22: #{conv_cbam_forward.7} parent=15 // pred_check_branch
          %185 = sbr.rel (%p183) target = $region24
        $region23: #{conv_cbam_forward.7} parent=15 // pred_region
          %s186 = sand.u32 %s18, 1
          %s187 = scalar_lea.sflag [#allocation6], %s186
          %s188 = sand.u32 %s68, 1
          %s189 = scalar_lea.vmem [#allocation5], %s188
          %s191 = ssub.s32 16, 16
          %192 = vsyncadd %s187, %s191
          %s193 = smul.addr %s25, 16
          %s194 = scalar_lea.hbm %s1, %s193
          %s196 = sshll.u32 %s189, 4
          %s197 = int_to_ptr.vmem [resolvable:$true] %s196
          %199 = dma.hbm_to_vmem [thread:$0]  %s194, 16, %s197, %s187
        $region24: #{conv_cbam_forward.7} parent=15 // pred_fallthru
          _
        // Predicated region
        $region25: #{conv_cbam_forward.7} parent=15 // pred_check
          %p200 = pneg %p106
        $region26: #{conv_cbam_forward.7} parent=15 // pred_check_branch
          %202 = sbr.rel (%p200) target = $region28
        $region27: #{conv_cbam_forward.7} parent=15 // pred_region
          %s203 = sand.u32 %s18, 1
          %s204 = scalar_lea.sflag [#allocation6], %s203
          %s205 = sand.u32 %s96, 1
          %s206 = smul.addr %s205, 8
          %s207 = scalar_lea.vmem [#allocation7], %s206
          %s209 = ssub.s32 128, 128
          %210 = vsyncadd %s204, %s209
          %s211 = smul.addr %s25, 2
          %s212 = sadd.s32 %s26, %s211
          %s213 = smul.addr %s212, 128
          %s214 = scalar_lea.hbm %s2, %s213
          %s216 = sshll.u32 %s207, 4
          %s217 = int_to_ptr.vmem [resolvable:$true] %s216
          %219 = dma.hbm_to_vmem [thread:$0]  %s214, 128, %s217, %s204
        $region28: #{conv_cbam_forward.7} parent=15 // pred_fallthru
          _
      $region16: #{conv_cbam_forward.7} parent=5 // pred_fallthru
        _
      %p220 = scmp.le.s32.totalorder 1, %s18
      %p221 = scmp.lt.s32.totalorder %s18, 5
      %p222 = pnand %p220, %p221
      %p223 = pneg %p222
      // Predicated region
      $region29: #{conv_cbam_forward.7} parent=5 // pred_check
        _
      $region30: #{conv_cbam_forward.7} parent=5 // pred_check_branch
        %225 = sbr.rel (%p222) target = $region32
      $region31: #{conv_cbam_forward.7} parent=5 // pred_region
        %s226 = ssub.s32 %s18, 1
        %s227 = sand.u32 %s45, 1
        %s228 = scalar_lea.sflag [#allocation3], %s227
        %s229 = sand.u32 %s45, 1
        %s230 = smul.addr %s229, 64
        %s231 = scalar_lea.vmem [#allocation2], %s230
        // Predicated region
        $region33: #{conv_cbam_forward.7} parent=31 // pred_check
          %p232 = pneg %p58
        $region34: #{conv_cbam_forward.7} parent=31 // pred_check_branch
          %234 = sbr.rel (%p232) target = $region36
        $region35: #{conv_cbam_forward.7} parent=31 // pred_region
          %235 = dma.done %s228, 1024
        $region36: #{conv_cbam_forward.7} parent=31 // pred_fallthru
          _
        %s236 = sand.u32 %s23, 1
        %s237 = scalar_lea.sflag [#allocation6], %s236
        %s238 = sand.u32 %s71, 1
        %s239 = scalar_lea.vmem [#allocation5], %s238
        // Predicated region
        $region37: #{conv_cbam_forward.7} parent=31 // pred_check
          %p240 = pneg %p84
        $region38: #{conv_cbam_forward.7} parent=31 // pred_check_branch
          %242 = sbr.rel (%p240) target = $region40
        $region39: #{conv_cbam_forward.7} parent=31 // pred_region
          %243 = dma.done %s237, 16
        $region40: #{conv_cbam_forward.7} parent=31 // pred_fallthru
          _
        %s244 = sand.u32 %s23, 1
        %s245 = scalar_lea.sflag [#allocation6], %s244
        %s246 = sand.u32 %s99, 1
        %s247 = smul.addr %s246, 8
        %s248 = scalar_lea.vmem [#allocation7], %s247
        // Predicated region
        $region41: #{conv_cbam_forward.7} parent=31 // pred_check
          %p249 = pneg %p112
        $region42: #{conv_cbam_forward.7} parent=31 // pred_check_branch
          %251 = sbr.rel (%p249) target = $region44
        $region43: #{conv_cbam_forward.7} parent=31 // pred_region
          %252 = dma.done %s245, 128
        $region44: #{conv_cbam_forward.7} parent=31 // pred_fallthru
          _
        %s253 = sand.u32 %s45, 1
        %s254 = scalar_lea.sflag [#allocation3], %s253
        %s255 = sand.u32 %s45, 1
        %s256 = smul.addr %s255, 64
        %s257 = scalar_lea.vmem [#allocation2], %s256
        %p258 = pneg %p58
        %p259 = pneg %p55
        %s260 = sand.u32 %s23, 1
        %s261 = scalar_lea.sflag [#allocation6], %s260
        %s262 = sand.u32 %s71, 1
        %s263 = scalar_lea.vmem [#allocation5], %s262
        %p264 = pneg %p84
        %p265 = pneg %p81
        %s266 = sand.u32 %s23, 1
        %s267 = scalar_lea.sflag [#allocation6], %s266
        %s268 = sand.u32 %s99, 1
        %s269 = smul.addr %s268, 8
        %s270 = scalar_lea.vmem [#allocation7], %s269
        %p271 = pneg %p112
        %p272 = pneg %p109
        %p273 = pneg %p140
        %p274 = pneg %p137
        %s275 = sand.u32 %s127, 1
        %s276 = scalar_lea.sflag [#allocation4], %s275
        %s277 = sand.u32 %s127, 1
        %s278 = smul.addr %s277, 128
        %s279 = scalar_lea.vmem [#allocation8], %s278
        %s280 = smul.u32 8, %s28
        %s281 = smul.u32 8, %s28
        %v282 = vld [vmem:[%s231] sm:$0xf]
        %v283 = vld [vmem:[%s231 + $0x4] sm:$0xf]
        %v284 = vld [vmem:[%s231 + $0x8] sm:$0xf]
        %v285 = vld [vmem:[%s231 + $0xc] sm:$0xf]
        %v286 = vld [vmem:[%s231 + $0x10] sm:$0xf]
        %v287 = vld [vmem:[%s231 + $0x14] sm:$0xf]
        %v288 = vld [vmem:[%s231 + $0x18] sm:$0xf]
        %v289 = vld [vmem:[%s231 + $0x1c] sm:$0xf]
        %v290 = vld [vmem:[%s231 + $0x20] sm:$0xf]
        %v291 = vld [vmem:[%s231 + $0x24] sm:$0xf]
        %v292 = vld [vmem:[%s231 + $0x28] sm:$0xf]
        %v293 = vld [vmem:[%s231 + $0x2c] sm:$0xf]
        %v294 = vld [vmem:[%s231 + $0x30] sm:$0xf]
        %v295 = vld [vmem:[%s231 + $0x34] sm:$0xf]
        %v296 = vld [vmem:[%s231 + $0x38] sm:$0xf]
        %v297 = vld [vmem:[%s231 + $0x3c] sm:$0xf]
        %v298 = vunpack.c.l.bf16 %v282
        %v299 = vunpack.c.l.bf16 %v283
        %v300 = vunpack.c.l.bf16 %v284
        %v301 = vunpack.c.l.bf16 %v285
        %v302 = vunpack.c.l.bf16 %v286
        %v303 = vunpack.c.l.bf16 %v287
        %v304 = vunpack.c.l.bf16 %v288
        %v305 = vunpack.c.l.bf16 %v289
        %v306 = vunpack.c.l.bf16 %v290
        %v307 = vunpack.c.l.bf16 %v291
        %v308 = vunpack.c.l.bf16 %v292
        %v309 = vunpack.c.l.bf16 %v293
        %v310 = vunpack.c.l.bf16 %v294
        %v311 = vunpack.c.l.bf16 %v295
        %v312 = vunpack.c.l.bf16 %v296
        %v313 = vunpack.c.l.bf16 %v297
        %v314 = vld [vmem:[%s239] sm:$0x1]
        %v315 = vld [vmem:[%s248] sm:$0xff]
        %v317 = vlaneseq
        %v318 = vshrl.u32 %v317, 7
        %v319 = vsub.s32 0, %v318
        %v320 = vrot.slane %v314, %v319
        %v322 = vmul.f32 %v298, %v320
        %v323 = vmul.f32 %v299, %v320
        %v324 = vmul.f32 %v300, %v320
        %v325 = vmul.f32 %v301, %v320
        %v326 = vmul.f32 %v302, %v320
        %v327 = vmul.f32 %v303, %v320
        %v328 = vmul.f32 %v304, %v320
        %v329 = vmul.f32 %v305, %v320
        %v330 = vmul.f32 %v306, %v320
        %v331 = vmul.f32 %v307, %v320
        %v332 = vmul.f32 %v308, %v320
        %v333 = vmul.f32 %v309, %v320
        %v334 = vmul.f32 %v310, %v320
        %v335 = vmul.f32 %v311, %v320
        %v336 = vmul.f32 %v312, %v320
        %v337 = vmul.f32 %v313, %v320
        %v338 = vlaneseq
        %v339 = vshrl.u32 %v338, 7
        %v340 = vsub.s32 0, %v339
        %v341 = vrot.slane %v315, %v340
        %343 = vbcast.lane.b32.xlu0 %v341, 256
        %v344 = vpop.permute.xlu0 %343
        %s346 = sor.u32 256, 8
        %347 = vbcast.lane.b32.xlu0 %v341, %s346
        %v348 = vpop.permute.xlu0 %347
        %v349 = vlaneseq
        %v350 = vshrl.u32 %v349, 7
        %v351 = vsub.s32 1, %v350
        %v352 = vrot.slane %v315, %v351
        %354 = vbcast.lane.b32.xlu0 %v352, 256
        %v355 = vpop.permute.xlu0 %354
        %s357 = sor.u32 256, 8
        %358 = vbcast.lane.b32.xlu0 %v352, %s357
        %v359 = vpop.permute.xlu0 %358
        %v360 = vlaneseq
        %v361 = vshrl.u32 %v360, 7
        %v362 = vsub.s32 2, %v361
        %v363 = vrot.slane %v315, %v362
        %365 = vbcast.lane.b32.xlu0 %v363, 256
        %v366 = vpop.permute.xlu0 %365
        %s368 = sor.u32 256, 8
        %369 = vbcast.lane.b32.xlu0 %v363, %s368
        %v370 = vpop.permute.xlu0 %369
        %v371 = vlaneseq
        %v372 = vshrl.u32 %v371, 7
        %v373 = vsub.s32 3, %v372
        %v374 = vrot.slane %v315, %v373
        %376 = vbcast.lane.b32.xlu0 %v374, 256
        %v377 = vpop.permute.xlu0 %376
        %s379 = sor.u32 256, 8
        %380 = vbcast.lane.b32.xlu0 %v374, %s379
        %v381 = vpop.permute.xlu0 %380
        %v382 = vlaneseq
        %v383 = vshrl.u32 %v382, 7
        %v384 = vsub.s32 4, %v383
        %v385 = vrot.slane %v315, %v384
        %387 = vbcast.lane.b32.xlu0 %v385, 256
        %v388 = vpop.permute.xlu0 %387
        %s390 = sor.u32 256, 8
        %391 = vbcast.lane.b32.xlu0 %v385, %s390
        %v392 = vpop.permute.xlu0 %391
        %v393 = vlaneseq
        %v394 = vshrl.u32 %v393, 7
        %v395 = vsub.s32 5, %v394
        %v396 = vrot.slane %v315, %v395
        %398 = vbcast.lane.b32.xlu0 %v396, 256
        %v399 = vpop.permute.xlu0 %398
        %s401 = sor.u32 256, 8
        %402 = vbcast.lane.b32.xlu0 %v396, %s401
        %v403 = vpop.permute.xlu0 %402
        %v404 = vlaneseq
        %v405 = vshrl.u32 %v404, 7
        %v406 = vsub.s32 6, %v405
        %v407 = vrot.slane %v315, %v406
        %409 = vbcast.lane.b32.xlu0 %v407, 256
        %v410 = vpop.permute.xlu0 %409
        %s412 = sor.u32 256, 8
        %413 = vbcast.lane.b32.xlu0 %v407, %s412
        %v414 = vpop.permute.xlu0 %413
        %v415 = vlaneseq
        %v416 = vshrl.u32 %v415, 7
        %v417 = vsub.s32 7, %v416
        %v418 = vrot.slane %v315, %v417
        %420 = vbcast.lane.b32.xlu0 %v418, 256
        %v421 = vpop.permute.xlu0 %420
        %s423 = sor.u32 256, 8
        %424 = vbcast.lane.b32.xlu0 %v418, %s423
        %v425 = vpop.permute.xlu0 %424
        %v426 = vmul.f32 %v322, %v344
        %v427 = vmul.f32 %v323, %v348
        %v428 = vmul.f32 %v324, %v355
        %v429 = vmul.f32 %v325, %v359
        %v430 = vmul.f32 %v326, %v366
        %v431 = vmul.f32 %v327, %v370
        %v432 = vmul.f32 %v328, %v377
        %v433 = vmul.f32 %v329, %v381
        %v434 = vmul.f32 %v330, %v388
        %v435 = vmul.f32 %v331, %v392
        %v436 = vmul.f32 %v332, %v399
        %v437 = vmul.f32 %v333, %v403
        %v438 = vmul.f32 %v334, %v410
        %v439 = vmul.f32 %v335, %v414
        %v440 = vmul.f32 %v336, %v421
        %v441 = vmul.f32 %v337, %v425
        %vm442 = vcmask 261120
        %443 = vst.msk [vmem:[%s279] sm:$0xff] %vm442, %v426
        %444 = vst.msk [vmem:[%s279 + $0x8] sm:$0xff] %vm442, %v427
        %445 = vst.msk [vmem:[%s279 + $0x10] sm:$0xff] %vm442, %v428
        %446 = vst.msk [vmem:[%s279 + $0x18] sm:$0xff] %vm442, %v429
        %447 = vst.msk [vmem:[%s279 + $0x20] sm:$0xff] %vm442, %v430
        %448 = vst.msk [vmem:[%s279 + $0x28] sm:$0xff] %vm442, %v431
        %449 = vst.msk [vmem:[%s279 + $0x30] sm:$0xff] %vm442, %v432
        %450 = vst.msk [vmem:[%s279 + $0x38] sm:$0xff] %vm442, %v433
        %451 = vst.msk [vmem:[%s279 + $0x40] sm:$0xff] %vm442, %v434
        %452 = vst.msk [vmem:[%s279 + $0x48] sm:$0xff] %vm442, %v435
        %453 = vst.msk [vmem:[%s279 + $0x50] sm:$0xff] %vm442, %v436
        %454 = vst.msk [vmem:[%s279 + $0x58] sm:$0xff] %vm442, %v437
        %455 = vst.msk [vmem:[%s279 + $0x60] sm:$0xff] %vm442, %v438
        %456 = vst.msk [vmem:[%s279 + $0x68] sm:$0xff] %vm442, %v439
        %457 = vst.msk [vmem:[%s279 + $0x70] sm:$0xff] %vm442, %v440
        %458 = vst.msk [vmem:[%s279 + $0x78] sm:$0xff] %vm442, %v441
        %s459 = sand.u32 %s127, 1
        %s460 = scalar_lea.sflag [#allocation4], %s459
        %s461 = sand.u32 %s127, 1
        %s462 = smul.addr %s461, 128
        %s463 = scalar_lea.vmem [#allocation8], %s462
        // Predicated region
        $region45: #{conv_cbam_forward.7} parent=31 // pred_check
          %p464 = pneg %p137
        $region46: #{conv_cbam_forward.7} parent=31 // pred_check_branch
          %466 = sbr.rel (%p464) target = $region48
        $region47: #{conv_cbam_forward.7} parent=31 // pred_region
          %s467 = smul.u32 8, %s28
          %s469 = ssub.s32 2048, 2048
          %470 = vsyncadd %s460, %s469
          %s471 = smul.addr %s467, 2
          %s472 = smul.addr %s27, 32
          %s473 = sadd.s32 %s471, %s472
          %s474 = smul.addr %s473, 128
          %s475 = scalar_lea.hbm %s3, %s474
          %s476 = sshll.u32 %s463, 4
          %s477 = int_to_ptr.vmem [resolvable:$true] %s476
          %482 = dma.vmem_to_hbm [thread:$0]  %s477, 2048, %s475, %s460, 128, 128, 8
        $region48: #{conv_cbam_forward.7} parent=31 // pred_fallthru
          _
      $region32: #{conv_cbam_forward.7} parent=5 // pred_fallthru
        _
      %p483 = scmp.le.s32.totalorder 2, %s18
      // Predicated region
      $region49: #{conv_cbam_forward.7} parent=5 // pred_check
        %p484 = pneg %p483
      $region50: #{conv_cbam_forward.7} parent=5 // pred_check_branch
        %486 = sbr.rel (%p484) target = $region52
      $region51: #{conv_cbam_forward.7} parent=5 // pred_region
        %s487 = ssub.s32 %s18, 2
        // Predicated region
        $region53: #{conv_cbam_forward.7} parent=51 // pred_check
          %p488 = pneg %p143
        $region54: #{conv_cbam_forward.7} parent=51 // pred_check_branch
          %490 = sbr.rel (%p488) target = $region56
        $region55: #{conv_cbam_forward.7} parent=51 // pred_region
          %s491 = sand.u32 %s128, 1
          %s492 = scalar_lea.sflag [#allocation4], %s491
          %s493 = sand.u32 %s128, 1
          %s494 = smul.addr %s493, 128
          %s495 = scalar_lea.vmem [#allocation8], %s494
          %496 = dma.done %s492, 2048
        $region56: #{conv_cbam_forward.7} parent=51 // pred_fallthru
          _
      $region52: #{conv_cbam_forward.7} parent=5 // pred_fallthru
        _
    $region6: #{conv_cbam_forward.7} parent=1 // loop_footer
      %s22 = sadd.s32 1, %s18
    $region7: #{conv_cbam_forward.7} parent=1 // loop_footer_branch
      %17 = sbr.rel target = $region3
    $region8: #{conv_cbam_forward.7} parent=1 // loop_exit
      _
    %497 = vsyncpa [#allocation3], 1
    %s498 = scalar_lea.sflag [#allocation3], 1
    %499 = vsyncpa %s498, 1
    %500 = vsyncpa [#allocation6], 1
    %s501 = scalar_lea.sflag [#allocation6], 1
    %502 = vsyncpa %s501, 1
    %503 = vsyncpa [#allocation4], 1
    %s504 = scalar_lea.sflag [#allocation4], 1
    %505 = vsyncpa %s504, 1

// kernel: conv_cbam_forward.4
$region0: #{conv_cbam_forward.4}
  #allocation0 [shape = 'u32[]', space=smem, size = 0x4, offset = 0x4, fixed_abs, tag = 'smem constant byte address 0x4 - core index']
  #allocation1 [shape = 'u32[144,128]{1,0:T(1,128)}', space=vmem, size = 0x12000, scoped, tag = 'internal scratch']
  %s0 = inlined_call_operand.hbm [shape: bf16[2,256,4], index: 0, kind: input, shape index: {}]
  %s1 = inlined_call_operand.hbm [shape: bf16[4,32], index: 1, kind: input, shape index: {}]
  %s2 = inlined_call_operand.hbm [shape: f32[1,32], index: 2, kind: input, shape index: {}]
  %s3 = inlined_call_operand.hbm [shape: f32[1,32], index: 3, kind: input, shape index: {}]
  %s4 = inlined_call_operand.hbm [shape: bf16[2,256,32], index: 4, kind: output, shape index: {0}]
  %s5 = inlined_call_operand.hbm [shape: f32[2,2,1,32], index: 5, kind: output, shape index: {1}]
  %s6 = inlined_call_operand.hbm [shape: f32[2,2,1,32], index: 6, kind: output, shape index: {2}]
  %7 = xla_tuple %s4, %s5, %s6
  %s8 = sld [smem:[#allocation0]]
  $region81: #{conv_cbam_forward.4} parent=0
    _
  %s10 = ssub.s32 1, %s8
  %s11 = scalar_select 0, %s10, %s8
  $region1: #{conv_cbam_forward.4} parent=0
    #allocation2 [shape = 'u8[65536]{0}', space=vmem, size = 0x10000, scoped, tag = 'input window, operand 0']
    #allocation3 [shape = 's32[2]{0}', space=sflag, size = 0x8, scoped, tag = 'scoped memory for conv_cbam_forward.4']
    #allocation4 [shape = 's32[2]{0}', space=sflag, size = 0x8, scoped, tag = 'scoped memory for conv_cbam_forward.4']
    #allocation5 [shape = 'u8[1024]{0}', space=vmem, size = 0x400, scoped, tag = 'input window, operand 1, single buffered']
    #allocation6 [shape = 's32[1]{0}', space=sflag, size = 0x4, scoped, tag = 'scoped memory for conv_cbam_forward.4']
    #allocation7 [shape = 'u8[512]{0}', space=vmem, size = 0x400, scoped, tag = 'input window, operand 2, single buffered']
    #allocation8 [shape = 'u8[512]{0}', space=vmem, size = 0x400, scoped, tag = 'input window, operand 3, single buffered']
    #allocation9 [shape = 's32[1]{0}', space=sflag, size = 0x4, scoped, tag = 'scoped memory for conv_cbam_forward.4']
    #allocation10 [shape = 'u8[65536]{0}', space=vmem, size = 0x10000, scoped, tag = 'output window, operand 0']
    #allocation11 [shape = 'u8[1024]{0}', space=vmem, size = 0x400, scoped, tag = 'output window, operand 1']
    #allocation12 [shape = 's32[2]{0}', space=sflag, size = 0x8, scoped, tag = 'scoped memory for conv_cbam_forward.4']
    #allocation13 [shape = 'u8[1024]{0}', space=vmem, size = 0x400, scoped, tag = 'output window, operand 2']
    %12 = vsyncpa [#allocation3], 0
    %s13 = scalar_lea.sflag [#allocation3], 1
    %14 = vsyncpa %s13, 0
    %15 = vsyncpa [#allocation6], 0
    %16 = vsyncpa [#allocation9], 0
    %17 = vsyncpa [#allocation4], 0
    %s18 = scalar_lea.sflag [#allocation4], 1
    %19 = vsyncpa %s18, 0
    %20 = vsyncpa [#allocation12], 0
    %s21 = scalar_lea.sflag [#allocation12], 1
    %22 = vsyncpa %s21, 0
    loop: start=0, step=1, limit=6
    $region2: #{conv_cbam_forward.4} parent=1 // loop_pre_header
      _
    $region3: #{conv_cbam_forward.4} parent=1 // loop_header
      %s24 = sphi 0, %s28
      %p25 = scmp.ge.s32.totalorder %s24, 6
      %s31 = sphi 0, %s43
      %s32 = sphi 0, %s39
      %s33 = sphi 0, %s31
      %s34 = sphi 0, %s32
      %s35 = sphi 0, %s33
      %s36 = sphi 0, %s34
      %s48 = sphi 0, %s50
      %s51 = sphi 0, %s48
      %s52 = sphi 0, %s51
      %s68 = sphi 0, %s52
      %s72 = sphi 0, %s72
      %s74 = sphi 0, %s72
      %s75 = sphi 0, %s74
      %s89 = sphi 0, %s75
      %s93 = sphi 0, %s93
      %s95 = sphi 0, %s93
      %s96 = sphi 0, %s95
      %s110 = sphi 0, %s96
      %s114 = sphi 0, %s114
      %s116 = sphi 0, %s114
      %s117 = sphi 0, %s116
      %s131 = sphi 0, %s117
      %s139 = sphi 0, %s141
      %s142 = sphi 0, %s139
      %s143 = sphi 0, %s142
      %s159 = sphi 0, %s143
      %s167 = sphi 0, %s169
      %s170 = sphi 0, %s167
      %s171 = sphi 0, %s170
      %s187 = sphi 0, %s171
      %s195 = sphi 0, %s197
      %s198 = sphi 0, %s195
      %s199 = sphi 0, %s198
      %s215 = sphi 0, %s199
    $region4: #{conv_cbam_forward.4} parent=1 // loop_header_branch
      %27 = sbr.rel (%p25) target = $region8
    $region5: #{conv_cbam_forward.4} parent=1 // loop_body
      %s29 = ssub.s32 %s24, 1
      %s30 = ssub.s32 %s24, 2
      %s37 = sadd.s32 1, %s32
      %p38 = scmp.ge.s32.totalorder %s37, 2
      %s39 = scalar_select %p38, 0, %s37
      %s40 = sadd.s32 1, %s31
      %s41 = scalar_select %p38, %s40, %s31
      %p42 = scmp.ge.s32.totalorder %s41, 2
      %s43 = scalar_select %p42, 0, %s41
      %s44 = ssub.s32 %s31, %s43
      %s45 = ssub.s32 %s32, %s39
      %s46 = sor.u32 %s44, %s45
      %p47 = scmp.eq.s32.totalorder %s46, 0
      %s49 = sadd.s32 %s48, 1
      %s50 = scalar_select %p47, %s48, %s49
      %p53 = pneg %p47
      %p54 = scmp.eq.s32.totalorder %s24, 3
      %p55 = por %p53, %p54
      %p56 = scmp.ne.s32.totalorder %s48, %s51
      %p57 = scmp.eq.s32.totalorder %s24, 0
      %p58 = por %p56, %p57
      %p59 = scmp.ne.s32.totalorder %s48, %s51
      %p60 = scmp.eq.s32.totalorder %s29, 3
      %p61 = por %p59, %p60
      %p62 = scmp.ne.s32.totalorder %s51, %s52
      %p63 = scmp.eq.s32.totalorder %s29, 0
      %p64 = por %p62, %p63
      %p65 = scmp.ne.s32.totalorder %s51, %s52
      %p66 = scmp.eq.s32.totalorder %s30, 3
      %p67 = por %p65, %p66
      %p69 = scmp.ne.s32.totalorder %s52, %s68
      %p70 = scmp.eq.s32.totalorder %s30, 0
      %p71 = por %p69, %p70
      %s73 = sadd.s32 %s72, 1
      %p76 = scmp.eq.s32.totalorder %s24, 3
      %p77 = scmp.ne.s32.totalorder %s72, %s74
      %p78 = scmp.eq.s32.totalorder %s24, 0
      %p79 = por %p77, %p78
      %p80 = scmp.ne.s32.totalorder %s72, %s74
      %p81 = scmp.eq.s32.totalorder %s29, 3
      %p82 = por %p80, %p81
      %p83 = scmp.ne.s32.totalorder %s74, %s75
      %p84 = scmp.eq.s32.totalorder %s29, 0
      %p85 = por %p83, %p84
      %p86 = scmp.ne.s32.totalorder %s74, %s75
      %p87 = scmp.eq.s32.totalorder %s30, 3
      %p88 = por %p86, %p87
      %p90 = scmp.ne.s32.totalorder %s75, %s89
      %p91 = scmp.eq.s32.totalorder %s30, 0
      %p92 = por %p90, %p91
      %s94 = sadd.s32 %s93, 1
      %p97 = scmp.eq.s32.totalorder %s24, 3
      %p98 = scmp.ne.s32.totalorder %s93, %s95
      %p99 = scmp.eq.s32.totalorder %s24, 0
      %p100 = por %p98, %p99
      %p101 = scmp.ne.s32.totalorder %s93, %s95
      %p102 = scmp.eq.s32.totalorder %s29, 3
      %p103 = por %p101, %p102
      %p104 = scmp.ne.s32.totalorder %s95, %s96
      %p105 = scmp.eq.s32.totalorder %s29, 0
      %p106 = por %p104, %p105
      %p107 = scmp.ne.s32.totalorder %s95, %s96
      %p108 = scmp.eq.s32.totalorder %s30, 3
      %p109 = por %p107, %p108
      %p111 = scmp.ne.s32.totalorder %s96, %s110
      %p112 = scmp.eq.s32.totalorder %s30, 0
      %p113 = por %p111, %p112
      %s115 = sadd.s32 %s114, 1
      %p118 = scmp.eq.s32.totalorder %s24, 3
      %p119 = scmp.ne.s32.totalorder %s114, %s116
      %p120 = scmp.eq.s32.totalorder %s24, 0
      %p121 = por %p119, %p120
      %p122 = scmp.ne.s32.totalorder %s114, %s116
      %p123 = scmp.eq.s32.totalorder %s29, 3
      %p124 = por %p122, %p123
      %p125 = scmp.ne.s32.totalorder %s116, %s117
      %p126 = scmp.eq.s32.totalorder %s29, 0
      %p127 = por %p125, %p126
      %p128 = scmp.ne.s32.totalorder %s116, %s117
      %p129 = scmp.eq.s32.totalorder %s30, 3
      %p130 = por %p128, %p129
      %p132 = scmp.ne.s32.totalorder %s117, %s131
      %p133 = scmp.eq.s32.totalorder %s30, 0
      %p134 = por %p132, %p133
      %s135 = ssub.s32 %s31, %s43
      %s136 = ssub.s32 %s32, %s39
      %s137 = sor.u32 %s135, %s136
      %p138 = scmp.eq.s32.totalorder %s137, 0
      %s140 = sadd.s32 %s139, 1
      %s141 = scalar_select %p138, %s139, %s140
      %p144 = pneg %p138
      %p145 = scmp.eq.s32.totalorder %s24, 3
      %p146 = por %p144, %p145
      %p147 = scmp.ne.s32.totalorder %s139, %s142
      %p148 = scmp.eq.s32.totalorder %s24, 0
      %p149 = por %p147, %p148
      %p150 = scmp.ne.s32.totalorder %s139, %s142
      %p151 = scmp.eq.s32.totalorder %s29, 3
      %p152 = por %p150, %p151
      %p153 = scmp.ne.s32.totalorder %s142, %s143
      %p154 = scmp.eq.s32.totalorder %s29, 0
      %p155 = por %p153, %p154
      %p156 = scmp.ne.s32.totalorder %s142, %s143
      %p157 = scmp.eq.s32.totalorder %s30, 3
      %p158 = por %p156, %p157
      %p160 = scmp.ne.s32.totalorder %s143, %s159
      %p161 = scmp.eq.s32.totalorder %s30, 0
      %p162 = por %p160, %p161
      %s163 = ssub.s32 %s31, %s43
      %s164 = ssub.s32 %s32, %s39
      %s165 = sor.u32 %s163, %s164
      %p166 = scmp.eq.s32.totalorder %s165, 0
      %s168 = sadd.s32 %s167, 1
      %s169 = scalar_select %p166, %s167, %s168
      %p172 = pneg %p166
      %p173 = scmp.eq.s32.totalorder %s24, 3
      %p174 = por %p172, %p173
      %p175 = scmp.ne.s32.totalorder %s167, %s170
      %p176 = scmp.eq.s32.totalorder %s24, 0
      %p177 = por %p175, %p176
      %p178 = scmp.ne.s32.totalorder %s167, %s170
      %p179 = scmp.eq.s32.totalorder %s29, 3
      %p180 = por %p178, %p179
      %p181 = scmp.ne.s32.totalorder %s170, %s171
      %p182 = scmp.eq.s32.totalorder %s29, 0
      %p183 = por %p181, %p182
      %p184 = scmp.ne.s32.totalorder %s170, %s171
      %p185 = scmp.eq.s32.totalorder %s30, 3
      %p186 = por %p184, %p185
      %p188 = scmp.ne.s32.totalorder %s171, %s187
      %p189 = scmp.eq.s32.totalorder %s30, 0
      %p190 = por %p188, %p189
      %s191 = ssub.s32 %s31, %s43
      %s192 = ssub.s32 %s32, %s39
      %s193 = sor.u32 %s191, %s192
      %p194 = scmp.eq.s32.totalorder %s193, 0
      %s196 = sadd.s32 %s195, 1
      %s197 = scalar_select %p194, %s195, %s196
      %p200 = pneg %p194
      %p201 = scmp.eq.s32.totalorder %s24, 3
      %p202 = por %p200, %p201
      %p203 = scmp.ne.s32.totalorder %s195, %s198
      %p204 = scmp.eq.s32.totalorder %s24, 0
      %p205 = por %p203, %p204
      %p206 = scmp.ne.s32.totalorder %s195, %s198
      %p207 = scmp.eq.s32.totalorder %s29, 3
      %p208 = por %p206, %p207
      %p209 = scmp.ne.s32.totalorder %s198, %s199
      %p210 = scmp.eq.s32.totalorder %s29, 0
      %p211 = por %p209, %p210
      %p212 = scmp.ne.s32.totalorder %s198, %s199
      %p213 = scmp.eq.s32.totalorder %s30, 3
      %p214 = por %p212, %p213
      %p216 = scmp.ne.s32.totalorder %s199, %s215
      %p217 = scmp.eq.s32.totalorder %s30, 0
      %p218 = por %p216, %p217
      %p219 = scmp.le.s32.totalorder 1, %s24
      %p220 = scmp.lt.s32.totalorder %s24, 5
      %p221 = pnand %p219, %p220
      %p222 = pneg %p221
      // Predicated region
      $region9: #{conv_cbam_forward.4} parent=5 // pred_check
        _
      $region10: #{conv_cbam_forward.4} parent=5 // pred_check_branch
        %224 = sbr.rel (%p221) target = $region12
      $region11: #{conv_cbam_forward.4} parent=5 // pred_region
        %s225 = ssub.s32 %s24, 1
        // Predicated region
        $region13: #{conv_cbam_forward.4} parent=11 // pred_check
          %p226 = pneg %p85
        $region14: #{conv_cbam_forward.4} parent=11 // pred_check_branch
          %228 = sbr.rel (%p226) target = $region16
        $region15: #{conv_cbam_forward.4} parent=11 // pred_region
          %s230 = ssub.s32 32, 32
          %231 = vsyncadd [#allocation6], %s230
          %s233 = sshll.u32 [#allocation5], 4
          %s234 = int_to_ptr.vmem [resolvable:$true] %s233
          %236 = dma.hbm_to_vmem [thread:$0]  %s1, 32, %s234, [#allocation6]
        $region16: #{conv_cbam_forward.4} parent=11 // pred_fallthru
          _
        // Predicated region
        $region17: #{conv_cbam_forward.4} parent=11 // pred_check
          %p237 = pneg %p106
        $region18: #{conv_cbam_forward.4} parent=11 // pred_check_branch
          %239 = sbr.rel (%p237) target = $region20
        $region19: #{conv_cbam_forward.4} parent=11 // pred_region
          %s241 = ssub.s32 16, 16
          %242 = vsyncadd [#allocation6], %s241
          %s244 = sshll.u32 [#allocation7], 4
          %s245 = int_to_ptr.vmem [resolvable:$true] %s244
          %247 = dma.hbm_to_vmem [thread:$0]  %s2, 16, %s245, [#allocation6]
        $region20: #{conv_cbam_forward.4} parent=11 // pred_fallthru
          _
        // Predicated region
        $region21: #{conv_cbam_forward.4} parent=11 // pred_check
          %p248 = pneg %p127
        $region22: #{conv_cbam_forward.4} parent=11 // pred_check_branch
          %250 = sbr.rel (%p248) target = $region24
        $region23: #{conv_cbam_forward.4} parent=11 // pred_region
          %s252 = ssub.s32 16, 16
          %253 = vsyncadd [#allocation9], %s252
          %s255 = sshll.u32 [#allocation8], 4
          %s256 = int_to_ptr.vmem [resolvable:$true] %s255
          %258 = dma.hbm_to_vmem [thread:$0]  %s3, 16, %s256, [#allocation9]
        $region24: #{conv_cbam_forward.4} parent=11 // pred_fallthru
          _
      $region12: #{conv_cbam_forward.4} parent=5 // pred_fallthru
        _
      %p259 = scmp.lt.s32.totalorder %s24, 4
      // Predicated region
      $region25: #{conv_cbam_forward.4} parent=5 // pred_check
        %p260 = pneg %p259
      $region26: #{conv_cbam_forward.4} parent=5 // pred_check_branch
        %262 = sbr.rel (%p260) target = $region28
      $region27: #{conv_cbam_forward.4} parent=5 // pred_region
        // Predicated region
        $region29: #{conv_cbam_forward.4} parent=27 // pred_check
          %p263 = pneg %p58
        $region30: #{conv_cbam_forward.4} parent=27 // pred_check_branch
          %265 = sbr.rel (%p263) target = $region32
        $region31: #{conv_cbam_forward.4} parent=27 // pred_region
          %s266 = sand.u32 %s48, 1
          %s267 = scalar_lea.sflag [#allocation3], %s266
          %s268 = sand.u32 %s48, 1
          %s269 = smul.addr %s268, 64
          %s270 = scalar_lea.vmem [#allocation2], %s269
          %s271 = smul.u32 16, %s32
          %s273 = ssub.s32 1024, 1024
          %274 = vsyncadd %s267, %s273
          %s275 = smul.addr %s31, 32
          %s276 = sadd.s32 %s271, %s275
          %s277 = smul.addr %s276, 64
          %s278 = scalar_lea.hbm %s0, %s277
          %s279 = sshll.u32 %s270, 4
          %s280 = int_to_ptr.vmem [resolvable:$true] %s279
          %285 = dma.hbm_to_vmem [thread:$0]  %s278, 1024, %s280, %s267, 64, 64, 4
        $region32: #{conv_cbam_forward.4} parent=27 // pred_fallthru
          _
      $region28: #{conv_cbam_forward.4} parent=5 // pred_fallthru
        _
      %p286 = scmp.le.s32.totalorder 1, %s24
      %p287 = scmp.lt.s32.totalorder %s24, 5
      %p288 = pnand %p286, %p287
      %p289 = pneg %p288
      // Predicated region
      $region33: #{conv_cbam_forward.4} parent=5 // pred_check
        _
      $region34: #{conv_cbam_forward.4} parent=5 // pred_check_branch
        %291 = sbr.rel (%p288) target = $region36
      $region35: #{conv_cbam_forward.4} parent=5 // pred_region
        %s292 = ssub.s32 %s24, 1
        %s293 = sand.u32 %s51, 1
        %s294 = scalar_lea.sflag [#allocation3], %s293
        %s295 = sand.u32 %s51, 1
        %s296 = smul.addr %s295, 64
        %s297 = scalar_lea.vmem [#allocation2], %s296
        // Predicated region
        $region37: #{conv_cbam_forward.4} parent=35 // pred_check
          %p298 = pneg %p64
        $region38: #{conv_cbam_forward.4} parent=35 // pred_check_branch
          %300 = sbr.rel (%p298) target = $region40
        $region39: #{conv_cbam_forward.4} parent=35 // pred_region
          %301 = dma.done %s294, 1024
        $region40: #{conv_cbam_forward.4} parent=35 // pred_fallthru
          _
        // Predicated region
        $region41: #{conv_cbam_forward.4} parent=35 // pred_check
          %p302 = pneg %p85
        $region42: #{conv_cbam_forward.4} parent=35 // pred_check_branch
          %304 = sbr.rel (%p302) target = $region44
        $region43: #{conv_cbam_forward.4} parent=35 // pred_region
          %305 = dma.done [#allocation6], 32
        $region44: #{conv_cbam_forward.4} parent=35 // pred_fallthru
          _
        // Predicated region
        $region45: #{conv_cbam_forward.4} parent=35 // pred_check
          %p306 = pneg %p106
        $region46: #{conv_cbam_forward.4} parent=35 // pred_check_branch
          %308 = sbr.rel (%p306) target = $region48
        $region47: #{conv_cbam_forward.4} parent=35 // pred_region
          %309 = dma.done [#allocation6], 16
        $region48: #{conv_cbam_forward.4} parent=35 // pred_fallthru
          _
        // Predicated region
        $region49: #{conv_cbam_forward.4} parent=35 // pred_check
          %p310 = pneg %p127
        $region50: #{conv_cbam_forward.4} parent=35 // pred_check_branch
          %312 = sbr.rel (%p310) target = $region52
        $region51: #{conv_cbam_forward.4} parent=35 // pred_region
          %313 = dma.done [#allocation9], 16
        $region52: #{conv_cbam_forward.4} parent=35 // pred_fallthru
          _
        %s314 = sand.u32 %s51, 1
        %s315 = scalar_lea.sflag [#allocation3], %s314
        %s316 = sand.u32 %s51, 1
        %s317 = smul.addr %s316, 64
        %s318 = scalar_lea.vmem [#allocation2], %s317
        %p319 = pneg %p64
        %p320 = pneg %p61
        %p321 = pneg %p85
        %p322 = pneg %p82
        %p323 = pneg %p106
        %p324 = pneg %p103
        %p325 = pneg %p127
        %p326 = pneg %p124
        %p327 = pneg %p155
        %p328 = pneg %p152
        %s329 = sand.u32 %s142, 1
        %s330 = scalar_lea.sflag [#allocation4], %s329
        %s331 = sand.u32 %s142, 1
        %s332 = smul.addr %s331, 64
        %s333 = scalar_lea.vmem [#allocation10], %s332
        %p334 = pneg %p183
        %p335 = pneg %p180
        %s336 = sand.u32 %s29, 1
        %s337 = scalar_lea.sflag [#allocation12], %s336
        %s338 = sand.u32 %s170, 1
        %s339 = scalar_lea.vmem [#allocation11], %s338
        %p340 = pneg %p211
        %p341 = pneg %p208
        %s342 = sand.u32 %s29, 1
        %s343 = scalar_lea.sflag [#allocation12], %s342
        %s344 = sand.u32 %s198, 1
        %s345 = scalar_lea.vmem [#allocation13], %s344
        %s346 = smul.u32 16, %s34
        %s347 = smul.u32 16, %s34
        %v348 = vld [vmem:[%s297] sm:$0xf]
        %v349 = vld [vmem:[%s297 + $0x4] sm:$0xf]
        %v350 = vld [vmem:[%s297 + $0x8] sm:$0xf]
        %v351 = vld [vmem:[%s297 + $0xc] sm:$0xf]
        %v352 = vld [vmem:[%s297 + $0x10] sm:$0xf]
        %v353 = vld [vmem:[%s297 + $0x14] sm:$0xf]
        %v354 = vld [vmem:[%s297 + $0x18] sm:$0xf]
        %v355 = vld [vmem:[%s297 + $0x1c] sm:$0xf]
        %v356 = vld [vmem:[%s297 + $0x20] sm:$0xf]
        %v357 = vld [vmem:[%s297 + $0x24] sm:$0xf]
        %v358 = vld [vmem:[%s297 + $0x28] sm:$0xf]
        %v359 = vld [vmem:[%s297 + $0x2c] sm:$0xf]
        %v360 = vld [vmem:[%s297 + $0x30] sm:$0xf]
        %v361 = vld [vmem:[%s297 + $0x34] sm:$0xf]
        %v362 = vld [vmem:[%s297 + $0x38] sm:$0xf]
        %v363 = vld [vmem:[%s297 + $0x3c] sm:$0xf]
        %v364 = vld [vmem:[#allocation5] sm:$0x3]
        %v365 = vunpack.c.l.bf16 %v348
        %v366 = vunpack.c.l.bf16 %v349
        %v367 = vunpack.c.l.bf16 %v350
        %v368 = vunpack.c.l.bf16 %v351
        %v369 = vunpack.c.l.bf16 %v352
        %v370 = vunpack.c.l.bf16 %v353
        %v371 = vunpack.c.l.bf16 %v354
        %v372 = vunpack.c.l.bf16 %v355
        %v373 = vunpack.c.l.bf16 %v356
        %v374 = vunpack.c.l.bf16 %v357
        %v375 = vunpack.c.l.bf16 %v358
        %v376 = vunpack.c.l.bf16 %v359
        %v377 = vunpack.c.l.bf16 %v360
        %v378 = vunpack.c.l.bf16 %v361
        %v379 = vunpack.c.l.bf16 %v362
        %v380 = vunpack.c.l.bf16 %v363
        %v381 = vunpack.c.l.bf16 %v364
        %383 = vset.pattern.permute.xlu0 0
        %384 = vperm.xlu0 %383, %v365
        %v385 = vpop.permute.xlu0 %384
        %388 = vset.pattern.permute.xlu0 0
        %389 = vperm.xlu0 %388, %v366
        %v390 = vpop.permute.xlu0 %389
        %393 = vset.pattern.permute.xlu0 0
        %394 = vperm.xlu0 %393, %v367
        %v395 = vpop.permute.xlu0 %394
        %398 = vset.pattern.permute.xlu0 0
        %399 = vperm.xlu0 %398, %v368
        %v400 = vpop.permute.xlu0 %399
        %403 = vset.pattern.permute.xlu0 0
        %404 = vperm.xlu0 %403, %v369
        %v405 = vpop.permute.xlu0 %404
        %408 = vset.pattern.permute.xlu0 0
        %409 = vperm.xlu0 %408, %v370
        %v410 = vpop.permute.xlu0 %409
        %413 = vset.pattern.permute.xlu0 0
        %414 = vperm.xlu0 %413, %v371
        %v415 = vpop.permute.xlu0 %414
        %418 = vset.pattern.permute.xlu0 0
        %419 = vperm.xlu0 %418, %v372
        %v420 = vpop.permute.xlu0 %419
        %423 = vset.pattern.permute.xlu0 0
        %424 = vperm.xlu0 %423, %v373
        %v425 = vpop.permute.xlu0 %424
        %428 = vset.pattern.permute.xlu0 0
        %429 = vperm.xlu0 %428, %v374
        %v430 = vpop.permute.xlu0 %429
        %433 = vset.pattern.permute.xlu0 0
        %434 = vperm.xlu0 %433, %v375
        %v435 = vpop.permute.xlu0 %434
        %438 = vset.pattern.permute.xlu0 0
        %439 = vperm.xlu0 %438, %v376
        %v440 = vpop.permute.xlu0 %439
        %443 = vset.pattern.permute.xlu0 0
        %444 = vperm.xlu0 %443, %v377
        %v445 = vpop.permute.xlu0 %444
        %448 = vset.pattern.permute.xlu0 0
        %449 = vperm.xlu0 %448, %v378
        %v450 = vpop.permute.xlu0 %449
        %453 = vset.pattern.permute.xlu0 0
        %454 = vperm.xlu0 %453, %v379
        %v455 = vpop.permute.xlu0 %454
        %458 = vset.pattern.permute.xlu0 0
        %459 = vperm.xlu0 %458, %v380
        %v460 = vpop.permute.xlu0 %459
        %v462 = vlaneseq
        %v463 = vshrl.u32 %v462, 7
        %v464 = vsub.s32 0, %v463
        %v465 = vrot.slane %v381, %v464
        %v466 = vmul.f32 %v385, %v465
        %v467 = vmul.f32 %v390, %v465
        %v468 = vmul.f32 %v395, %v465
        %v469 = vmul.f32 %v400, %v465
        %v470 = vmul.f32 %v405, %v465
        %v471 = vmul.f32 %v410, %v465
        %v472 = vmul.f32 %v415, %v465
        %v473 = vmul.f32 %v420, %v465
        %v474 = vmul.f32 %v425, %v465
        %v475 = vmul.f32 %v430, %v465
        %v476 = vmul.f32 %v435, %v465
        %v477 = vmul.f32 %v440, %v465
        %v478 = vmul.f32 %v445, %v465
        %v479 = vmul.f32 %v450, %v465
        %v480 = vmul.f32 %v455, %v465
        %v481 = vmul.f32 %v460, %v465
        %482 = vset.pattern.permute.xlu0 1
        %483 = vperm.xlu0 %482, %v365
        %v484 = vpop.permute.xlu0 %483
        %486 = vset.pattern.permute.xlu0 1
        %487 = vperm.xlu0 %486, %v366
        %v488 = vpop.permute.xlu0 %487
        %490 = vset.pattern.permute.xlu0 1
        %491 = vperm.xlu0 %490, %v367
        %v492 = vpop.permute.xlu0 %491
        %494 = vset.pattern.permute.xlu0 1
        %495 = vperm.xlu0 %494, %v368
        %v496 = vpop.permute.xlu0 %495
        %498 = vset.pattern.permute.xlu0 1
        %499 = vperm.xlu0 %498, %v369
        %v500 = vpop.permute.xlu0 %499
        %502 = vset.pattern.permute.xlu0 1
        %503 = vperm.xlu0 %502, %v370
        %v504 = vpop.permute.xlu0 %503
        %506 = vset.pattern.permute.xlu0 1
        %507 = vperm.xlu0 %506, %v371
        %v508 = vpop.permute.xlu0 %507
        %510 = vset.pattern.permute.xlu0 1
        %511 = vperm.xlu0 %510, %v372
        %v512 = vpop.permute.xlu0 %511
        %514 = vset.pattern.permute.xlu0 1
        %515 = vperm.xlu0 %514, %v373
        %v516 = vpop.permute.xlu0 %515
        %518 = vset.pattern.permute.xlu0 1
        %519 = vperm.xlu0 %518, %v374
        %v520 = vpop.permute.xlu0 %519
        %522 = vset.pattern.permute.xlu0 1
        %523 = vperm.xlu0 %522, %v375
        %v524 = vpop.permute.xlu0 %523
        %526 = vset.pattern.permute.xlu0 1
        %527 = vperm.xlu0 %526, %v376
        %v528 = vpop.permute.xlu0 %527
        %530 = vset.pattern.permute.xlu0 1
        %531 = vperm.xlu0 %530, %v377
        %v532 = vpop.permute.xlu0 %531
        %534 = vset.pattern.permute.xlu0 1
        %535 = vperm.xlu0 %534, %v378
        %v536 = vpop.permute.xlu0 %535
        %538 = vset.pattern.permute.xlu0 1
        %539 = vperm.xlu0 %538, %v379
        %v540 = vpop.permute.xlu0 %539
        %542 = vset.pattern.permute.xlu0 1
        %543 = vperm.xlu0 %542, %v380
        %v544 = vpop.permute.xlu0 %543
        %v546 = vlaneseq
        %v547 = vshrl.u32 %v546, 7
        %v548 = vsub.s32 1, %v547
        %v549 = vrot.slane %v381, %v548
        %v550 = vmul.f32 %v484, %v549
        %v551 = vmul.f32 %v488, %v549
        %v552 = vmul.f32 %v492, %v549
        %v553 = vmul.f32 %v496, %v549
        %v554 = vmul.f32 %v500, %v549
        %v555 = vmul.f32 %v504, %v549
        %v556 = vmul.f32 %v508, %v549
        %v557 = vmul.f32 %v512, %v549
        %v558 = vmul.f32 %v516, %v549
        %v559 = vmul.f32 %v520, %v549
        %v560 = vmul.f32 %v524, %v549
        %v561 = vmul.f32 %v528, %v549
        %v562 = vmul.f32 %v532, %v549
        %v563 = vmul.f32 %v536, %v549
        %v564 = vmul.f32 %v540, %v549
        %v565 = vmul.f32 %v544, %v549
        %v566 = vadd.f32 %v466, %v550
        %v567 = vadd.f32 %v467, %v551
        %v568 = vadd.f32 %v468, %v552
        %v569 = vadd.f32 %v469, %v553
        %v570 = vadd.f32 %v470, %v554
        %v571 = vadd.f32 %v471, %v555
        %v572 = vadd.f32 %v472, %v556
        %v573 = vadd.f32 %v473, %v557
        %v574 = vadd.f32 %v474, %v558
        %v575 = vadd.f32 %v475, %v559
        %v576 = vadd.f32 %v476, %v560
        %v577 = vadd.f32 %v477, %v561
        %v578 = vadd.f32 %v478, %v562
        %v579 = vadd.f32 %v479, %v563
        %v580 = vadd.f32 %v480, %v564
        %v581 = vadd.f32 %v481, %v565
        %582 = vset.pattern.permute.xlu0 2
        %583 = vperm.xlu0 %582, %v365
        %v584 = vpop.permute.xlu0 %583
        %586 = vset.pattern.permute.xlu0 2
        %587 = vperm.xlu0 %586, %v366
        %v588 = vpop.permute.xlu0 %587
        %590 = vset.pattern.permute.xlu0 2
        %591 = vperm.xlu0 %590, %v367
        %v592 = vpop.permute.xlu0 %591
        %594 = vset.pattern.permute.xlu0 2
        %595 = vperm.xlu0 %594, %v368
        %v596 = vpop.permute.xlu0 %595
        %598 = vset.pattern.permute.xlu0 2
        %599 = vperm.xlu0 %598, %v369
        %v600 = vpop.permute.xlu0 %599
        %602 = vset.pattern.permute.xlu0 2
        %603 = vperm.xlu0 %602, %v370
        %v604 = vpop.permute.xlu0 %603
        %606 = vset.pattern.permute.xlu0 2
        %607 = vperm.xlu0 %606, %v371
        %v608 = vpop.permute.xlu0 %607
        %610 = vset.pattern.permute.xlu0 2
        %611 = vperm.xlu0 %610, %v372
        %v612 = vpop.permute.xlu0 %611
        %614 = vset.pattern.permute.xlu0 2
        %615 = vperm.xlu0 %614, %v373
        %v616 = vpop.permute.xlu0 %615
        %618 = vset.pattern.permute.xlu0 2
        %619 = vperm.xlu0 %618, %v374
        %v620 = vpop.permute.xlu0 %619
        %622 = vset.pattern.permute.xlu0 2
        %623 = vperm.xlu0 %622, %v375
        %v624 = vpop.permute.xlu0 %623
        %626 = vset.pattern.permute.xlu0 2
        %627 = vperm.xlu0 %626, %v376
        %v628 = vpop.permute.xlu0 %627
        %630 = vset.pattern.permute.xlu0 2
        %631 = vperm.xlu0 %630, %v377
        %v632 = vpop.permute.xlu0 %631
        %634 = vset.pattern.permute.xlu0 2
        %635 = vperm.xlu0 %634, %v378
        %v636 = vpop.permute.xlu0 %635
        %638 = vset.pattern.permute.xlu0 2
        %639 = vperm.xlu0 %638, %v379
        %v640 = vpop.permute.xlu0 %639
        %642 = vset.pattern.permute.xlu0 2
        %643 = vperm.xlu0 %642, %v380
        %v644 = vpop.permute.xlu0 %643
        %v646 = vlaneseq
        %v647 = vshrl.u32 %v646, 7
        %v648 = vsub.s32 2, %v647
        %v649 = vrot.slane %v381, %v648
        %v650 = vmul.f32 %v584, %v649
        %v651 = vmul.f32 %v588, %v649
        %v652 = vmul.f32 %v592, %v649
        %v653 = vmul.f32 %v596, %v649
        %v654 = vmul.f32 %v600, %v649
        %v655 = vmul.f32 %v604, %v649
        %v656 = vmul.f32 %v608, %v649
        %v657 = vmul.f32 %v612, %v649
        %v658 = vmul.f32 %v616, %v649
        %v659 = vmul.f32 %v620, %v649
        %v660 = vmul.f32 %v624, %v649
        %v661 = vmul.f32 %v628, %v649
        %v662 = vmul.f32 %v632, %v649
        %v663 = vmul.f32 %v636, %v649
        %v664 = vmul.f32 %v640, %v649
        %v665 = vmul.f32 %v644, %v649
        %v666 = vadd.f32 %v566, %v650
        %v667 = vadd.f32 %v567, %v651
        %v668 = vadd.f32 %v568, %v652
        %v669 = vadd.f32 %v569, %v653
        %v670 = vadd.f32 %v570, %v654
        %v671 = vadd.f32 %v571, %v655
        %v672 = vadd.f32 %v572, %v656
        %v673 = vadd.f32 %v573, %v657
        %v674 = vadd.f32 %v574, %v658
        %v675 = vadd.f32 %v575, %v659
        %v676 = vadd.f32 %v576, %v660
        %v677 = vadd.f32 %v577, %v661
        %v678 = vadd.f32 %v578, %v662
        %v679 = vadd.f32 %v579, %v663
        %v680 = vadd.f32 %v580, %v664
        %v681 = vadd.f32 %v581, %v665
        %682 = vset.pattern.permute.xlu0 3
        %683 = vperm.xlu0 %682, %v365
        %v684 = vpop.permute.xlu0 %683
        %686 = vset.pattern.permute.xlu0 3
        %687 = vperm.xlu0 %686, %v366
        %v688 = vpop.permute.xlu0 %687
        %690 = vset.pattern.permute.xlu0 3
        %691 = vperm.xlu0 %690, %v367
        %v692 = vpop.permute.xlu0 %691
        %694 = vset.pattern.permute.xlu0 3
        %695 = vperm.xlu0 %694, %v368
        %v696 = vpop.permute.xlu0 %695
        %698 = vset.pattern.permute.xlu0 3
        %699 = vperm.xlu0 %698, %v369
        %v700 = vpop.permute.xlu0 %699
        %702 = vset.pattern.permute.xlu0 3
        %703 = vperm.xlu0 %702, %v370
        %v704 = vpop.permute.xlu0 %703
        %706 = vset.pattern.permute.xlu0 3
        %707 = vperm.xlu0 %706, %v371
        %v708 = vpop.permute.xlu0 %707
        %710 = vset.pattern.permute.xlu0 3
        %711 = vperm.xlu0 %710, %v372
        %v712 = vpop.permute.xlu0 %711
        %714 = vset.pattern.permute.xlu0 3
        %715 = vperm.xlu0 %714, %v373
        %v716 = vpop.permute.xlu0 %715
        %718 = vset.pattern.permute.xlu0 3
        %719 = vperm.xlu0 %718, %v374
        %v720 = vpop.permute.xlu0 %719
        %722 = vset.pattern.permute.xlu0 3
        %723 = vperm.xlu0 %722, %v375
        %v724 = vpop.permute.xlu0 %723
        %726 = vset.pattern.permute.xlu0 3
        %727 = vperm.xlu0 %726, %v376
        %v728 = vpop.permute.xlu0 %727
        %730 = vset.pattern.permute.xlu0 3
        %731 = vperm.xlu0 %730, %v377
        %v732 = vpop.permute.xlu0 %731
        %734 = vset.pattern.permute.xlu0 3
        %735 = vperm.xlu0 %734, %v378
        %v736 = vpop.permute.xlu0 %735
        %738 = vset.pattern.permute.xlu0 3
        %739 = vperm.xlu0 %738, %v379
        %v740 = vpop.permute.xlu0 %739
        %742 = vset.pattern.permute.xlu0 3
        %743 = vperm.xlu0 %742, %v380
        %v744 = vpop.permute.xlu0 %743
        %v746 = vlaneseq
        %v747 = vshrl.u32 %v746, 7
        %v748 = vsub.s32 3, %v747
        %v749 = vrot.slane %v381, %v748
        %v750 = vmul.f32 %v684, %v749
        %v751 = vmul.f32 %v688, %v749
        %v752 = vmul.f32 %v692, %v749
        %v753 = vmul.f32 %v696, %v749
        %v754 = vmul.f32 %v700, %v749
        %v755 = vmul.f32 %v704, %v749
        %v756 = vmul.f32 %v708, %v749
        %v757 = vmul.f32 %v712, %v749
        %v758 = vmul.f32 %v716, %v749
        %v759 = vmul.f32 %v720, %v749
        %v760 = vmul.f32 %v724, %v749
        %v761 = vmul.f32 %v728, %v749
        %v762 = vmul.f32 %v732, %v749
        %v763 = vmul.f32 %v736, %v749
        %v764 = vmul.f32 %v740, %v749
        %v765 = vmul.f32 %v744, %v749
        %v766 = vadd.f32 %v666, %v750
        %v767 = vadd.f32 %v667, %v751
        %v768 = vadd.f32 %v668, %v752
        %v769 = vadd.f32 %v669, %v753
        %v770 = vadd.f32 %v670, %v754
        %v771 = vadd.f32 %v671, %v755
        %v772 = vadd.f32 %v672, %v756
        %v773 = vadd.f32 %v673, %v757
        %v774 = vadd.f32 %v674, %v758
        %v775 = vadd.f32 %v675, %v759
        %v776 = vadd.f32 %v676, %v760
        %v777 = vadd.f32 %v677, %v761
        %v778 = vadd.f32 %v678, %v762
        %v779 = vadd.f32 %v679, %v763
        %v780 = vadd.f32 %v680, %v764
        %v781 = vadd.f32 %v681, %v765
        %v782 = vld [vmem:[#allocation7] sm:$0x1]
        %v784 = vlaneseq
        %v785 = vshrl.u32 %v784, 7
        %v786 = vsub.s32 0, %v785
        %v787 = vrot.slane %v782, %v786
        %v789 = vmul.f32 %v766, %v787
        %v790 = vmul.f32 %v767, %v787
        %v791 = vmul.f32 %v768, %v787
        %v792 = vmul.f32 %v769, %v787
        %v793 = vmul.f32 %v770, %v787
        %v794 = vmul.f32 %v771, %v787
        %v795 = vmul.f32 %v772, %v787
        %v796 = vmul.f32 %v773, %v787
        %v797 = vmul.f32 %v774, %v787
        %v798 = vmul.f32 %v775, %v787
        %v799 = vmul.f32 %v776, %v787
        %v800 = vmul.f32 %v777, %v787
        %v801 = vmul.f32 %v778, %v787
        %v802 = vmul.f32 %v779, %v787
        %v803 = vmul.f32 %v780, %v787
        %v804 = vmul.f32 %v781, %v787
        %v805 = vld [vmem:[#allocation8] sm:$0x1]
        %v807 = vlaneseq
        %v808 = vshrl.u32 %v807, 7
        %v809 = vsub.s32 0, %v808
        %v810 = vrot.slane %v805, %v809
        %v812 = vadd.f32 %v789, %v810
        %v813 = vadd.f32 %v790, %v810
        %v814 = vadd.f32 %v791, %v810
        %v815 = vadd.f32 %v792, %v810
        %v816 = vadd.f32 %v793, %v810
        %v817 = vadd.f32 %v794, %v810
        %v818 = vadd.f32 %v795, %v810
        %v819 = vadd.f32 %v796, %v810
        %v820 = vadd.f32 %v797, %v810
        %v821 = vadd.f32 %v798, %v810
        %v822 = vadd.f32 %v799, %v810
        %v823 = vadd.f32 %v800, %v810
        %v824 = vadd.f32 %v801, %v810
        %v825 = vadd.f32 %v802, %v810
        %v826 = vadd.f32 %v803, %v810
        %v827 = vadd.f32 %v804, %v810
        %v828 = vadd.f32 %v812, 3.0
        %v829 = vadd.f32 %v813, 3.0
        %v830 = vadd.f32 %v814, 3.0
        %v831 = vadd.f32 %v815, 3.0
        %v832 = vadd.f32 %v816, 3.0
        %v833 = vadd.f32 %v817, 3.0
        %v834 = vadd.f32 %v818, 3.0
        %v835 = vadd.f32 %v819, 3.0
        %v836 = vadd.f32 %v820, 3.0
        %v837 = vadd.f32 %v821, 3.0
        %v838 = vadd.f32 %v822, 3.0
        %v839 = vadd.f32 %v823, 3.0
        %v840 = vadd.f32 %v824, 3.0
        %v841 = vadd.f32 %v825, 3.0
        %v842 = vadd.f32 %v826, 3.0
        %v843 = vadd.f32 %v827, 3.0
        %v844 = vmax.f32 %v828, 0.0
        %v845 = vmax.f32 %v829, 0.0
        %v846 = vmax.f32 %v830, 0.0
        %v847 = vmax.f32 %v831, 0.0
        %v848 = vmax.f32 %v832, 0.0
        %v849 = vmax.f32 %v833, 0.0
        %v850 = vmax.f32 %v834, 0.0
        %v851 = vmax.f32 %v835, 0.0
        %v852 = vmax.f32 %v836, 0.0
        %v853 = vmax.f32 %v837, 0.0
        %v854 = vmax.f32 %v838, 0.0
        %v855 = vmax.f32 %v839, 0.0
        %v856 = vmax.f32 %v840, 0.0
        %v857 = vmax.f32 %v841, 0.0
        %v858 = vmax.f32 %v842, 0.0
        %v859 = vmax.f32 %v843, 0.0
        %v860 = vmin.f32 %v844, 6.0
        %v861 = vmin.f32 %v845, 6.0
        %v862 = vmin.f32 %v846, 6.0
        %v863 = vmin.f32 %v847, 6.0
        %v864 = vmin.f32 %v848, 6.0
        %v865 = vmin.f32 %v849, 6.0
        %v866 = vmin.f32 %v850, 6.0
        %v867 = vmin.f32 %v851, 6.0
        %v868 = vmin.f32 %v852, 6.0
        %v869 = vmin.f32 %v853, 6.0
        %v870 = vmin.f32 %v854, 6.0
        %v871 = vmin.f32 %v855, 6.0
        %v872 = vmin.f32 %v856, 6.0
        %v873 = vmin.f32 %v857, 6.0
        %v874 = vmin.f32 %v858, 6.0
        %v875 = vmin.f32 %v859, 6.0
        %v876 = vmul.f32 %v812, %v860
        %v877 = vmul.f32 %v813, %v861
        %v878 = vmul.f32 %v814, %v862
        %v879 = vmul.f32 %v815, %v863
        %v880 = vmul.f32 %v816, %v864
        %v881 = vmul.f32 %v817, %v865
        %v882 = vmul.f32 %v818, %v866
        %v883 = vmul.f32 %v819, %v867
        %v884 = vmul.f32 %v820, %v868
        %v885 = vmul.f32 %v821, %v869
        %v886 = vmul.f32 %v822, %v870
        %v887 = vmul.f32 %v823, %v871
        %v888 = vmul.f32 %v824, %v872
        %v889 = vmul.f32 %v825, %v873
        %v890 = vmul.f32 %v826, %v874
        %v891 = vmul.f32 %v827, %v875
        %v892 = vmul.f32 %v876, 0.16666667
        %v893 = vmul.f32 %v877, 0.16666667
        %v894 = vmul.f32 %v878, 0.16666667
        %v895 = vmul.f32 %v879, 0.16666667
        %v896 = vmul.f32 %v880, 0.16666667
        %v897 = vmul.f32 %v881, 0.16666667
        %v898 = vmul.f32 %v882, 0.16666667
        %v899 = vmul.f32 %v883, 0.16666667
        %v900 = vmul.f32 %v884, 0.16666667
        %v901 = vmul.f32 %v885, 0.16666667
        %v902 = vmul.f32 %v886, 0.16666667
        %v903 = vmul.f32 %v887, 0.16666667
        %v904 = vmul.f32 %v888, 0.16666667
        %v905 = vmul.f32 %v889, 0.16666667
        %v906 = vmul.f32 %v890, 0.16666667
        %v907 = vmul.f32 %v891, 0.16666667
        %v908 = vpack.c.bf16 %v893, %v892
        %v909 = vpack.c.bf16 %v895, %v894
        %v910 = vpack.c.bf16 %v897, %v896
        %v911 = vpack.c.bf16 %v899, %v898
        %v912 = vpack.c.bf16 %v901, %v900
        %v913 = vpack.c.bf16 %v903, %v902
        %v914 = vpack.c.bf16 %v905, %v904
        %v915 = vpack.c.bf16 %v907, %v906
        %v924 = vunpack.c.l.b16 %v908
        %v925 = vunpack.c.h.b16 %v908
        %v926 = vunpack.c.l.b16 %v909
        %v927 = vunpack.c.h.b16 %v909
        %v928 = vunpack.c.l.b16 %v910
        %v929 = vunpack.c.h.b16 %v910
        %v930 = vunpack.c.l.b16 %v911
        %v931 = vunpack.c.h.b16 %v911
        %v932 = vunpack.c.l.b16 %v912
        %v933 = vunpack.c.h.b16 %v912
        %v934 = vunpack.c.l.b16 %v913
        %v935 = vunpack.c.h.b16 %v913
        %v936 = vunpack.c.l.b16 %v914
        %v937 = vunpack.c.h.b16 %v914
        %v938 = vunpack.c.l.b16 %v915
        %v939 = vunpack.c.h.b16 %v915
        %v940 = vpack.c.b16 %v924, %v924
        %v941 = vpack.c.b16 %v925, %v925
        %v942 = vpack.c.b16 %v926, %v926
        %v943 = vpack.c.b16 %v927, %v927
        %v944 = vpack.c.b16 %v928, %v928
        %v945 = vpack.c.b16 %v929, %v929
        %v946 = vpack.c.b16 %v930, %v930
        %v947 = vpack.c.b16 %v931, %v931
        %v948 = vpack.c.b16 %v932, %v932
        %v949 = vpack.c.b16 %v933, %v933
        %v950 = vpack.c.b16 %v934, %v934
        %v951 = vpack.c.b16 %v935, %v935
        %v952 = vpack.c.b16 %v936, %v936
        %v953 = vpack.c.b16 %v937, %v937
        %v954 = vpack.c.b16 %v938, %v938
        %v955 = vpack.c.b16 %v939, %v939
        %vm972 = vcmask 257024
        %973 = vst.msk [vmem:[%s333] sm:$0xf] %vm972, %v940
        %974 = vst.msk [vmem:[%s333 + $0x4] sm:$0xf] %vm972, %v941
        %975 = vst.msk [vmem:[%s333 + $0x8] sm:$0xf] %vm972, %v942
        %976 = vst.msk [vmem:[%s333 + $0xc] sm:$0xf] %vm972, %v943
        %977 = vst.msk [vmem:[%s333 + $0x10] sm:$0xf] %vm972, %v944
        %978 = vst.msk [vmem:[%s333 + $0x14] sm:$0xf] %vm972, %v945
        %979 = vst.msk [vmem:[%s333 + $0x18] sm:$0xf] %vm972, %v946
        %980 = vst.msk [vmem:[%s333 + $0x1c] sm:$0xf] %vm972, %v947
        %981 = vst.msk [vmem:[%s333 + $0x20] sm:$0xf] %vm972, %v948
        %982 = vst.msk [vmem:[%s333 + $0x24] sm:$0xf] %vm972, %v949
        %983 = vst.msk [vmem:[%s333 + $0x28] sm:$0xf] %vm972, %v950
        %984 = vst.msk [vmem:[%s333 + $0x2c] sm:$0xf] %vm972, %v951
        %985 = vst.msk [vmem:[%s333 + $0x30] sm:$0xf] %vm972, %v952
        %986 = vst.msk [vmem:[%s333 + $0x34] sm:$0xf] %vm972, %v953
        %987 = vst.msk [vmem:[%s333 + $0x38] sm:$0xf] %vm972, %v954
        %988 = vst.msk [vmem:[%s333 + $0x3c] sm:$0xf] %vm972, %v955
        %vm989 = vcmask 261120
        %v990 = vsel %vm989, %v892, 0.0
        %v991 = vsel %vm989, %v893, 0.0
        %v992 = vadd.f32 %v990, %v991
        %v993 = vsel %vm989, %v894, 0.0
        %v994 = vadd.f32 %v992, %v993
        %v995 = vsel %vm989, %v895, 0.0
        %v996 = vadd.f32 %v994, %v995
        %v997 = vsel %vm989, %v896, 0.0
        %v998 = vadd.f32 %v996, %v997
        %v999 = vsel %vm989, %v897, 0.0
        %v1000 = vadd.f32 %v998, %v999
        %v1001 = vsel %vm989, %v898, 0.0
        %v1002 = vadd.f32 %v1000, %v1001
        %v1003 = vsel %vm989, %v899, 0.0
        %v1004 = vadd.f32 %v1002, %v1003
        %v1005 = vsel %vm989, %v900, 0.0
        %v1006 = vadd.f32 %v1004, %v1005
        %v1007 = vsel %vm989, %v901, 0.0
        %v1008 = vadd.f32 %v1006, %v1007
        %v1009 = vsel %vm989, %v902, 0.0
        %v1010 = vadd.f32 %v1008, %v1009
        %v1011 = vsel %vm989, %v903, 0.0
        %v1012 = vadd.f32 %v1010, %v1011
        %v1013 = vsel %vm989, %v904, 0.0
        %v1014 = vadd.f32 %v1012, %v1013
        %v1015 = vsel %vm989, %v905, 0.0
        %v1016 = vadd.f32 %v1014, %v1015
        %v1017 = vsel %vm989, %v906, 0.0
        %v1018 = vadd.f32 %v1016, %v1017
        %v1019 = vsel %vm989, %v907, 0.0
        %v1020 = vadd.f32 %v1018, %v1019
        %v1021 = vrot.slane %v1020, 4
        %v1022 = vadd.f32 %v1020, %v1021
        %v1023 = vrot.slane %v1022, 2
        %v1024 = vadd.f32 %v1022, %v1023
        %v1025 = vrot.slane %v1024, 1
        %v1026 = vadd.f32 %v1024, %v1025
        %vm1027 = vcmask 253952
        %1028 = vst.msk [vmem:[%s339] sm:$0x1] %vm1027, %v1026
        %v1029 = vsel %vm989, %v892, -inf
        %v1030 = vsel %vm989, %v893, -inf
        %v1031 = vsel %vm989, %v894, -inf
        %v1032 = vsel %vm989, %v895, -inf
        %v1033 = vsel %vm989, %v896, -inf
        %v1034 = vmax.f32 %v1029, %v1033
        %v1035 = vsel %vm989, %v897, -inf
        %v1036 = vmax.f32 %v1030, %v1035
        %v1037 = vsel %vm989, %v898, -inf
        %v1038 = vmax.f32 %v1031, %v1037
        %v1039 = vsel %vm989, %v899, -inf
        %v1040 = vmax.f32 %v1032, %v1039
        %v1041 = vsel %vm989, %v900, -inf
        %v1042 = vmax.f32 %v1034, %v1041
        %v1043 = vsel %vm989, %v901, -inf
        %v1044 = vmax.f32 %v1036, %v1043
        %v1045 = vsel %vm989, %v902, -inf
        %v1046 = vmax.f32 %v1038, %v1045
        %v1047 = vsel %vm989, %v903, -inf
        %v1048 = vmax.f32 %v1040, %v1047
        %v1049 = vsel %vm989, %v904, -inf
        %v1050 = vmax.f32 %v1042, %v1049
        %v1051 = vsel %vm989, %v905, -inf
        %v1052 = vmax.f32 %v1044, %v1051
        %v1053 = vsel %vm989, %v906, -inf
        %v1054 = vmax.f32 %v1046, %v1053
        %v1055 = vsel %vm989, %v907, -inf
        %v1056 = vmax.f32 %v1048, %v1055
        %v1057 = vmax.f32 %v1050, %v1052
        %v1058 = vmax.f32 %v1054, %v1056
        %v1059 = vmax.f32 %v1057, %v1058
        %v1060 = vrot.slane %v1059, 4
        %v1061 = vmax.f32 %v1059, %v1060
        %v1062 = vrot.slane %v1061, 2
        %v1063 = vmax.f32 %v1061, %v1062
        %v1064 = vrot.slane %v1063, 1
        %v1065 = vmax.f32 %v1063, %v1064
        %1066 = vst.msk [vmem:[%s345] sm:$0x1] %vm1027, %v1065
        %s1067 = sand.u32 %s142, 1
        %s1068 = scalar_lea.sflag [#allocation4], %s1067
        %s1069 = sand.u32 %s142, 1
        %s1070 = smul.addr %s1069, 64
        %s1071 = scalar_lea.vmem [#allocation10], %s1070
        %s1072 = sand.u32 %s29, 1
        %s1073 = scalar_lea.sflag [#allocation12], %s1072
        %s1074 = sand.u32 %s170, 1
        %s1075 = scalar_lea.vmem [#allocation11], %s1074
        %s1076 = sand.u32 %s29, 1
        %s1077 = scalar_lea.sflag [#allocation12], %s1076
        %s1078 = sand.u32 %s198, 1
        %s1079 = scalar_lea.vmem [#allocation13], %s1078
        // Predicated region
        $region53: #{conv_cbam_forward.4} parent=35 // pred_check
          %p1080 = pneg %p152
        $region54: #{conv_cbam_forward.4} parent=35 // pred_check_branch
          %1082 = sbr.rel (%p1080) target = $region56
        $region55: #{conv_cbam_forward.4} parent=35 // pred_region
          %s1083 = smul.u32 16, %s34
          %s1085 = ssub.s32 1024, 1024
          %1086 = vsyncadd %s1068, %s1085
          %s1087 = smul.addr %s33, 32
          %s1088 = sadd.s32 %s1083, %s1087
          %s1089 = smul.addr %s1088, 64
          %s1090 = scalar_lea.hbm %s4, %s1089
          %s1091 = sshll.u32 %s1071, 4
          %s1092 = int_to_ptr.vmem [resolvable:$true] %s1091
          %1097 = dma.vmem_to_hbm [thread:$0]  %s1092, 1024, %s1090, %s1068, 64, 64, 4
        $region56: #{conv_cbam_forward.4} parent=35 // pred_fallthru
          _
        // Predicated region
        $region57: #{conv_cbam_forward.4} parent=35 // pred_check
          %p1098 = pneg %p180
        $region58: #{conv_cbam_forward.4} parent=35 // pred_check_branch
          %1100 = sbr.rel (%p1098) target = $region60
        $region59: #{conv_cbam_forward.4} parent=35 // pred_region
          %s1102 = ssub.s32 16, 16
          %1103 = vsyncadd %s1073, %s1102
          %s1104 = smul.addr %s33, 2
          %s1105 = sadd.s32 %s34, %s1104
          %s1106 = smul.addr %s1105, 16
          %s1107 = scalar_lea.hbm %s5, %s1106
          %s1109 = sshll.u32 %s1075, 4
          %s1110 = int_to_ptr.vmem [resolvable:$true] %s1109
          %1112 = dma.vmem_to_hbm [thread:$0]  %s1110, 16, %s1107, %s1073
        $region60: #{conv_cbam_forward.4} parent=35 // pred_fallthru
          _
        // Predicated region
        $region61: #{conv_cbam_forward.4} parent=35 // pred_check
          %p1113 = pneg %p208
        $region62: #{conv_cbam_forward.4} parent=35 // pred_check_branch
          %1115 = sbr.rel (%p1113) target = $region64
        $region63: #{conv_cbam_forward.4} parent=35 // pred_region
          %s1117 = ssub.s32 16, 16
          %1118 = vsyncadd %s1077, %s1117
          %s1119 = smul.addr %s33, 2
          %s1120 = sadd.s32 %s34, %s1119
          %s1121 = smul.addr %s1120, 16
          %s1122 = scalar_lea.hbm %s6, %s1121
          %s1124 = sshll.u32 %s1079, 4
          %s1125 = int_to_ptr.vmem [resolvable:$true] %s1124
          %1127 = dma.vmem_to_hbm [thread:$0]  %s1125, 16, %s1122, %s1077
        $region64: #{conv_cbam_forward.4} parent=35 // pred_fallthru
          _
      $region36: #{conv_cbam_forward.4} parent=5 // pred_fallthru
        _
      %p1128 = scmp.le.s32.totalorder 2, %s24
      // Predicated region
      $region65: #{conv_cbam_forward.4} parent=5 // pred_check
        %p1129 = pneg %p1128
      $region66: #{conv_cbam_forward.4} parent=5 // pred_check_branch
        %1131 = sbr.rel (%p1129) target = $region68
      $region67: #{conv_cbam_forward.4} parent=5 // pred_region
        %s1132 = ssub.s32 %s24, 2
        // Predicated region
        $region69: #{conv_cbam_forward.4} parent=67 // pred_check
          %p1133 = pneg %p158
        $region70: #{conv_cbam_forward.4} parent=67 // pred_check_branch
          %1135 = sbr.rel (%p1133) target = $region72
        $region71: #{conv_cbam_forward.4} parent=67 // pred_region
          %s1136 = sand.u32 %s143, 1
          %s1137 = scalar_lea.sflag [#allocation4], %s1136
          %s1138 = sand.u32 %s143, 1
          %s1139 = smul.addr %s1138, 64
          %s1140 = scalar_lea.vmem [#allocation10], %s1139
          %1141 = dma.done %s1137, 1024
        $region72: #{conv_cbam_forward.4} parent=67 // pred_fallthru
          _
        // Predicated region
        $region73: #{conv_cbam_forward.4} parent=67 // pred_check
          %p1142 = pneg %p186
        $region74: #{conv_cbam_forward.4} parent=67 // pred_check_branch
          %1144 = sbr.rel (%p1142) target = $region76
        $region75: #{conv_cbam_forward.4} parent=67 // pred_region
          %s1145 = sand.u32 %s30, 1
          %s1146 = scalar_lea.sflag [#allocation12], %s1145
          %s1147 = sand.u32 %s171, 1
          %s1148 = scalar_lea.vmem [#allocation11], %s1147
          %1149 = dma.done %s1146, 16
        $region76: #{conv_cbam_forward.4} parent=67 // pred_fallthru
          _
        // Predicated region
        $region77: #{conv_cbam_forward.4} parent=67 // pred_check
          %p1150 = pneg %p214
        $region78: #{conv_cbam_forward.4} parent=67 // pred_check_branch
          %1152 = sbr.rel (%p1150) target = $region80
        $region79: #{conv_cbam_forward.4} parent=67 // pred_region
          %s1153 = sand.u32 %s30, 1
          %s1154 = scalar_lea.sflag [#allocation12], %s1153
          %s1155 = sand.u32 %s199, 1
          %s1156 = scalar_lea.vmem [#allocation13], %s1155
          %1157 = dma.done %s1154, 16
        $region80: #{conv_cbam_forward.4} parent=67 // pred_fallthru
          _
      $region68: #{conv_cbam_forward.4} parent=5 // pred_fallthru
        _
    $region6: #{conv_cbam_forward.4} parent=1 // loop_footer
      %s28 = sadd.s32 1, %s24
    $region7: #{conv_cbam_forward.4} parent=1 // loop_footer_branch
      %23 = sbr.rel target = $region3
    $region8: #{conv_cbam_forward.4} parent=1 // loop_exit
      _
    %1158 = vsyncpa [#allocation3], 1
    %s1159 = scalar_lea.sflag [#allocation3], 1
    %1160 = vsyncpa %s1159, 1
    %1161 = vsyncpa [#allocation6], 1
    %1162 = vsyncpa [#allocation9], 1
    %1163 = vsyncpa [#allocation4], 1
    %s1164 = scalar_lea.sflag [#allocation4], 1
    %1165 = vsyncpa %s1164, 1
    %1166 = vsyncpa [#allocation12], 1
    %s1167 = scalar_lea.sflag [#allocation12], 1
    %1168 = vsyncpa %s1167, 1

// kernel: conv_cbam_forward.5
$region0: #{conv_cbam_forward.5}
  #allocation0 [shape = 'u32[]', space=smem, size = 0x4, offset = 0x4, fixed_abs, tag = 'smem constant byte address 0x4 - core index']
  #allocation1 [shape = 'u32[144,128]{1,0:T(1,128)}', space=vmem, size = 0x12000, scoped, tag = 'internal scratch']
  %s0 = inlined_call_operand.hbm [shape: bf16[2,16,16,32], index: 0, kind: input, shape index: {}]
  %s1 = inlined_call_operand.hbm [shape: f32[2,1,32], index: 1, kind: input, shape index: {}]
  %s2 = inlined_call_operand.hbm [shape: f32[2,16,16], index: 2, kind: output, shape index: {0}]
  %s3 = inlined_call_operand.hbm [shape: f32[2,16,16], index: 3, kind: output, shape index: {1}]
  %4 = xla_tuple %s2, %s3
  %s5 = sld [smem:[#allocation0]]
  $region57: #{conv_cbam_forward.5} parent=0
    _
  %s7 = ssub.s32 1, %s5
  %s8 = scalar_select 0, %s7, %s5
  $region1: #{conv_cbam_forward.5} parent=0
    #allocation2 [shape = 'u8[65536]{0}', space=vmem, size = 0x10000, scoped, tag = 'input window, operand 0']
    #allocation3 [shape = 's32[2]{0}', space=sflag, size = 0x8, scoped, tag = 'scoped memory for conv_cbam_forward.5']
    #allocation4 [shape = 's32[2]{0}', space=sflag, size = 0x8, scoped, tag = 'scoped memory for conv_cbam_forward.5']
    #allocation5 [shape = 'u8[1024]{0}', space=vmem, size = 0x400, scoped, tag = 'input window, operand 1']
    #allocation6 [shape = 's32[2]{0}', space=sflag, size = 0x8, scoped, tag = 'scoped memory for conv_cbam_forward.5']
    #allocation7 [shape = 'u8[8192]{0}', space=vmem, size = 0x2000, scoped, tag = 'output window, operand 0']
    #allocation8 [shape = 'u8[8192]{0}', space=vmem, size = 0x2000, scoped, tag = 'output window, operand 1']
    #allocation9 [shape = 's32[2]{0}', space=sflag, size = 0x8, scoped, tag = 'scoped memory for conv_cbam_forward.5']
    %9 = vsyncpa [#allocation3], 0
    %s10 = scalar_lea.sflag [#allocation3], 1
    %11 = vsyncpa %s10, 0
    %12 = vsyncpa [#allocation6], 0
    %s13 = scalar_lea.sflag [#allocation6], 1
    %14 = vsyncpa %s13, 0
    %15 = vsyncpa [#allocation4], 0
    %s16 = scalar_lea.sflag [#allocation4], 1
    %17 = vsyncpa %s16, 0
    %18 = vsyncpa [#allocation9], 0
    %s19 = scalar_lea.sflag [#allocation9], 1
    %20 = vsyncpa %s19, 0
    loop: start=0, step=1, limit=6
    $region2: #{conv_cbam_forward.5} parent=1 // loop_pre_header
      _
    $region3: #{conv_cbam_forward.5} parent=1 // loop_header
      %s22 = sphi 0, %s26
      %p23 = scmp.ge.s32.totalorder %s22, 6
      %s29 = sphi 0, %s41
      %s30 = sphi 0, %s37
      %s31 = sphi 0, %s29
      %s32 = sphi 0, %s30
      %s33 = sphi 0, %s31
      %s34 = sphi 0, %s32
      %s46 = sphi 0, %s48
      %s49 = sphi 0, %s46
      %s50 = sphi 0, %s49
      %s66 = sphi 0, %s50
      %s72 = sphi 0, %s74
      %s75 = sphi 0, %s72
      %s76 = sphi 0, %s75
      %s92 = sphi 0, %s76
      %s100 = sphi 0, %s102
      %s103 = sphi 0, %s100
      %s104 = sphi 0, %s103
      %s120 = sphi 0, %s104
      %s128 = sphi 0, %s130
      %s131 = sphi 0, %s128
      %s132 = sphi 0, %s131
      %s148 = sphi 0, %s132
    $region4: #{conv_cbam_forward.5} parent=1 // loop_header_branch
      %25 = sbr.rel (%p23) target = $region8
    $region5: #{conv_cbam_forward.5} parent=1 // loop_body
      %s27 = ssub.s32 %s22, 1
      %s28 = ssub.s32 %s22, 2
      %s35 = sadd.s32 1, %s30
      %p36 = scmp.ge.s32.totalorder %s35, 2
      %s37 = scalar_select %p36, 0, %s35
      %s38 = sadd.s32 1, %s29
      %s39 = scalar_select %p36, %s38, %s29
      %p40 = scmp.ge.s32.totalorder %s39, 2
      %s41 = scalar_select %p40, 0, %s39
      %s42 = ssub.s32 %s29, %s41
      %s43 = ssub.s32 %s30, %s37
      %s44 = sor.u32 %s42, %s43
      %p45 = scmp.eq.s32.totalorder %s44, 0
      %s47 = sadd.s32 %s46, 1
      %s48 = scalar_select %p45, %s46, %s47
      %p51 = pneg %p45
      %p52 = scmp.eq.s32.totalorder %s22, 3
      %p53 = por %p51, %p52
      %p54 = scmp.ne.s32.totalorder %s46, %s49
      %p55 = scmp.eq.s32.totalorder %s22, 0
      %p56 = por %p54, %p55
      %p57 = scmp.ne.s32.totalorder %s46, %s49
      %p58 = scmp.eq.s32.totalorder %s27, 3
      %p59 = por %p57, %p58
      %p60 = scmp.ne.s32.totalorder %s49, %s50
      %p61 = scmp.eq.s32.totalorder %s27, 0
      %p62 = por %p60, %p61
      %p63 = scmp.ne.s32.totalorder %s49, %s50
      %p64 = scmp.eq.s32.totalorder %s28, 3
      %p65 = por %p63, %p64
      %p67 = scmp.ne.s32.totalorder %s50, %s66
      %p68 = scmp.eq.s32.totalorder %s28, 0
      %p69 = por %p67, %p68
      %s70 = ssub.s32 %s29, %s41
      %p71 = scmp.eq.s32.totalorder %s70, 0
      %s73 = sadd.s32 %s72, 1
      %s74 = scalar_select %p71, %s72, %s73
      %p77 = pneg %p71
      %p78 = scmp.eq.s32.totalorder %s22, 3
      %p79 = por %p77, %p78
      %p80 = scmp.ne.s32.totalorder %s72, %s75
      %p81 = scmp.eq.s32.totalorder %s22, 0
      %p82 = por %p80, %p81
      %p83 = scmp.ne.s32.totalorder %s72, %s75
      %p84 = scmp.eq.s32.totalorder %s27, 3
      %p85 = por %p83, %p84
      %p86 = scmp.ne.s32.totalorder %s75, %s76
      %p87 = scmp.eq.s32.totalorder %s27, 0
      %p88 = por %p86, %p87
      %p89 = scmp.ne.s32.totalorder %s75, %s76
      %p90 = scmp.eq.s32.totalorder %s28, 3
      %p91 = por %p89, %p90
      %p93 = scmp.ne.s32.totalorder %s76, %s92
      %p94 = scmp.eq.s32.totalorder %s28, 0
      %p95 = por %p93, %p94
      %s96 = ssub.s32 %s29, %s41
      %s97 = ssub.s32 %s30, %s37
      %s98 = sor.u32 %s96, %s97
      %p99 = scmp.eq.s32.totalorder %s98, 0
      %s101 = sadd.s32 %s100, 1
      %s102 = scalar_select %p99, %s100, %s101
      %p105 = pneg %p99
      %p106 = scmp.eq.s32.totalorder %s22, 3
      %p107 = por %p105, %p106
      %p108 = scmp.ne.s32.totalorder %s100, %s103
      %p109 = scmp.eq.s32.totalorder %s22, 0
      %p110 = por %p108, %p109
      %p111 = scmp.ne.s32.totalorder %s100, %s103
      %p112 = scmp.eq.s32.totalorder %s27, 3
      %p113 = por %p111, %p112
      %p114 = scmp.ne.s32.totalorder %s103, %s104
      %p115 = scmp.eq.s32.totalorder %s27, 0
      %p116 = por %p114, %p115
      %p117 = scmp.ne.s32.totalorder %s103, %s104
      %p118 = scmp.eq.s32.totalorder %s28, 3
      %p119 = por %p117, %p118
      %p121 = scmp.ne.s32.totalorder %s104, %s120
      %p122 = scmp.eq.s32.totalorder %s28, 0
      %p123 = por %p121, %p122
      %s124 = ssub.s32 %s29, %s41
      %s125 = ssub.s32 %s30, %s37
      %s126 = sor.u32 %s124, %s125
      %p127 = scmp.eq.s32.totalorder %s126, 0
      %s129 = sadd.s32 %s128, 1
      %s130 = scalar_select %p127, %s128, %s129
      %p133 = pneg %p127
      %p134 = scmp.eq.s32.totalorder %s22, 3
      %p135 = por %p133, %p134
      %p136 = scmp.ne.s32.totalorder %s128, %s131
      %p137 = scmp.eq.s32.totalorder %s22, 0
      %p138 = por %p136, %p137
      %p139 = scmp.ne.s32.totalorder %s128, %s131
      %p140 = scmp.eq.s32.totalorder %s27, 3
      %p141 = por %p139, %p140
      %p142 = scmp.ne.s32.totalorder %s131, %s132
      %p143 = scmp.eq.s32.totalorder %s27, 0
      %p144 = por %p142, %p143
      %p145 = scmp.ne.s32.totalorder %s131, %s132
      %p146 = scmp.eq.s32.totalorder %s28, 3
      %p147 = por %p145, %p146
      %p149 = scmp.ne.s32.totalorder %s132, %s148
      %p150 = scmp.eq.s32.totalorder %s28, 0
      %p151 = por %p149, %p150
      %p152 = scmp.le.s32.totalorder 1, %s22
      %p153 = scmp.lt.s32.totalorder %s22, 5
      %p154 = pnand %p152, %p153
      %p155 = pneg %p154
      // Predicated region
      $region9: #{conv_cbam_forward.5} parent=5 // pred_check
        _
      $region10: #{conv_cbam_forward.5} parent=5 // pred_check_branch
        %157 = sbr.rel (%p154) target = $region12
      $region11: #{conv_cbam_forward.5} parent=5 // pred_region
        %s158 = ssub.s32 %s22, 1
      $region12: #{conv_cbam_forward.5} parent=5 // pred_fallthru
        _
      %p159 = scmp.lt.s32.totalorder %s22, 4
      // Predicated region
      $region13: #{conv_cbam_forward.5} parent=5 // pred_check
        %p160 = pneg %p159
      $region14: #{conv_cbam_forward.5} parent=5 // pred_check_branch
        %162 = sbr.rel (%p160) target = $region16
      $region15: #{conv_cbam_forward.5} parent=5 // pred_region
        // Predicated region
        $region17: #{conv_cbam_forward.5} parent=15 // pred_check
          %p163 = pneg %p56
        $region18: #{conv_cbam_forward.5} parent=15 // pred_check_branch
          %165 = sbr.rel (%p163) target = $region20
        $region19: #{conv_cbam_forward.5} parent=15 // pred_region
          %s166 = sand.u32 %s46, 1
          %s167 = scalar_lea.sflag [#allocation3], %s166
          %s168 = sand.u32 %s46, 1
          %s169 = smul.addr %s168, 64
          %s170 = scalar_lea.vmem [#allocation2], %s169
          %s171 = smul.u32 8, %s30
          %s173 = ssub.s32 1024, 1024
          %174 = vsyncadd %s167, %s173
          %s175 = smul.addr %s171, 2
          %s176 = smul.addr %s29, 32
          %s177 = sadd.s32 %s175, %s176
          %s178 = smul.addr %s177, 64
          %s179 = scalar_lea.hbm %s0, %s178
          %s180 = sshll.u32 %s170, 4
          %s181 = int_to_ptr.vmem [resolvable:$true] %s180
          %186 = dma.hbm_to_vmem [thread:$0]  %s179, 1024, %s181, %s167, 64, 64, 4
        $region20: #{conv_cbam_forward.5} parent=15 // pred_fallthru
          _
        // Predicated region
        $region21: #{conv_cbam_forward.5} parent=15 // pred_check
          %p187 = pneg %p82
        $region22: #{conv_cbam_forward.5} parent=15 // pred_check_branch
          %189 = sbr.rel (%p187) target = $region24
        $region23: #{conv_cbam_forward.5} parent=15 // pred_region
          %s190 = sand.u32 %s72, 1
          %s191 = scalar_lea.sflag [#allocation6], %s190
          %s192 = sand.u32 %s72, 1
          %s193 = scalar_lea.vmem [#allocation5], %s192
          %s195 = ssub.s32 16, 16
          %196 = vsyncadd %s191, %s195
          %s197 = smul.addr %s29, 16
          %s198 = scalar_lea.hbm %s1, %s197
          %s200 = sshll.u32 %s193, 4
          %s201 = int_to_ptr.vmem [resolvable:$true] %s200
          %203 = dma.hbm_to_vmem [thread:$0]  %s198, 16, %s201, %s191
        $region24: #{conv_cbam_forward.5} parent=15 // pred_fallthru
          _
      $region16: #{conv_cbam_forward.5} parent=5 // pred_fallthru
        _
      %p204 = scmp.le.s32.totalorder 1, %s22
      %p205 = scmp.lt.s32.totalorder %s22, 5
      %p206 = pnand %p204, %p205
      %p207 = pneg %p206
      // Predicated region
      $region25: #{conv_cbam_forward.5} parent=5 // pred_check
        _
      $region26: #{conv_cbam_forward.5} parent=5 // pred_check_branch
        %209 = sbr.rel (%p206) target = $region28
      $region27: #{conv_cbam_forward.5} parent=5 // pred_region
        %s210 = ssub.s32 %s22, 1
        %s211 = sand.u32 %s49, 1
        %s212 = scalar_lea.sflag [#allocation3], %s211
        %s213 = sand.u32 %s49, 1
        %s214 = smul.addr %s213, 64
        %s215 = scalar_lea.vmem [#allocation2], %s214
        // Predicated region
        $region29: #{conv_cbam_forward.5} parent=27 // pred_check
          %p216 = pneg %p62
        $region30: #{conv_cbam_forward.5} parent=27 // pred_check_branch
          %218 = sbr.rel (%p216) target = $region32
        $region31: #{conv_cbam_forward.5} parent=27 // pred_region
          %219 = dma.done %s212, 1024
        $region32: #{conv_cbam_forward.5} parent=27 // pred_fallthru
          _
        %s220 = sand.u32 %s75, 1
        %s221 = scalar_lea.sflag [#allocation6], %s220
        %s222 = sand.u32 %s75, 1
        %s223 = scalar_lea.vmem [#allocation5], %s222
        // Predicated region
        $region33: #{conv_cbam_forward.5} parent=27 // pred_check
          %p224 = pneg %p88
        $region34: #{conv_cbam_forward.5} parent=27 // pred_check_branch
          %226 = sbr.rel (%p224) target = $region36
        $region35: #{conv_cbam_forward.5} parent=27 // pred_region
          %227 = dma.done %s221, 16
        $region36: #{conv_cbam_forward.5} parent=27 // pred_fallthru
          _
        %s228 = sand.u32 %s49, 1
        %s229 = scalar_lea.sflag [#allocation3], %s228
        %s230 = sand.u32 %s49, 1
        %s231 = smul.addr %s230, 64
        %s232 = scalar_lea.vmem [#allocation2], %s231
        %p233 = pneg %p62
        %p234 = pneg %p59
        %s235 = sand.u32 %s75, 1
        %s236 = scalar_lea.sflag [#allocation6], %s235
        %s237 = sand.u32 %s75, 1
        %s238 = scalar_lea.vmem [#allocation5], %s237
        %p239 = pneg %p88
        %p240 = pneg %p85
        %p241 = pneg %p116
        %p242 = pneg %p113
        %s243 = sand.u32 %s103, 1
        %s244 = scalar_lea.sflag [#allocation4], %s243
        %s245 = sand.u32 %s103, 1
        %s246 = smul.addr %s245, 8
        %s247 = scalar_lea.vmem [#allocation7], %s246
        %p248 = pneg %p144
        %p249 = pneg %p141
        %s250 = sand.u32 %s131, 1
        %s251 = scalar_lea.sflag [#allocation9], %s250
        %s252 = sand.u32 %s131, 1
        %s253 = smul.addr %s252, 8
        %s254 = scalar_lea.vmem [#allocation8], %s253
        %s255 = smul.u32 8, %s32
        %v256 = vld [vmem:[%s215] sm:$0xf]
        %v257 = vld [vmem:[%s215 + $0x4] sm:$0xf]
        %v258 = vld [vmem:[%s215 + $0x8] sm:$0xf]
        %v259 = vld [vmem:[%s215 + $0xc] sm:$0xf]
        %v260 = vld [vmem:[%s215 + $0x10] sm:$0xf]
        %v261 = vld [vmem:[%s215 + $0x14] sm:$0xf]
        %v262 = vld [vmem:[%s215 + $0x18] sm:$0xf]
        %v263 = vld [vmem:[%s215 + $0x1c] sm:$0xf]
        %v264 = vld [vmem:[%s215 + $0x20] sm:$0xf]
        %v265 = vld [vmem:[%s215 + $0x24] sm:$0xf]
        %v266 = vld [vmem:[%s215 + $0x28] sm:$0xf]
        %v267 = vld [vmem:[%s215 + $0x2c] sm:$0xf]
        %v268 = vld [vmem:[%s215 + $0x30] sm:$0xf]
        %v269 = vld [vmem:[%s215 + $0x34] sm:$0xf]
        %v270 = vld [vmem:[%s215 + $0x38] sm:$0xf]
        %v271 = vld [vmem:[%s215 + $0x3c] sm:$0xf]
        %v272 = vunpack.c.l.bf16 %v256
        %v273 = vunpack.c.l.bf16 %v257
        %v274 = vunpack.c.l.bf16 %v258
        %v275 = vunpack.c.l.bf16 %v259
        %v276 = vunpack.c.l.bf16 %v260
        %v277 = vunpack.c.l.bf16 %v261
        %v278 = vunpack.c.l.bf16 %v262
        %v279 = vunpack.c.l.bf16 %v263
        %v280 = vunpack.c.l.bf16 %v264
        %v281 = vunpack.c.l.bf16 %v265
        %v282 = vunpack.c.l.bf16 %v266
        %v283 = vunpack.c.l.bf16 %v267
        %v284 = vunpack.c.l.bf16 %v268
        %v285 = vunpack.c.l.bf16 %v269
        %v286 = vunpack.c.l.bf16 %v270
        %v287 = vunpack.c.l.bf16 %v271
        %v288 = vld [vmem:[%s223] sm:$0x1]
        %v290 = vlaneseq
        %v291 = vshrl.u32 %v290, 7
        %v292 = vsub.s32 0, %v291
        %v293 = vrot.slane %v288, %v292
        %v295 = vmul.f32 %v272, %v293
        %v296 = vmul.f32 %v273, %v293
        %v297 = vmul.f32 %v274, %v293
        %v298 = vmul.f32 %v275, %v293
        %v299 = vmul.f32 %v276, %v293
        %v300 = vmul.f32 %v277, %v293
        %v301 = vmul.f32 %v278, %v293
        %v302 = vmul.f32 %v279, %v293
        %v303 = vmul.f32 %v280, %v293
        %v304 = vmul.f32 %v281, %v293
        %v305 = vmul.f32 %v282, %v293
        %v306 = vmul.f32 %v283, %v293
        %v307 = vmul.f32 %v284, %v293
        %v308 = vmul.f32 %v285, %v293
        %v309 = vmul.f32 %v286, %v293
        %v310 = vmul.f32 %v287, %v293
        %vm311 = vcmask 261120
        %v312 = vsel %vm311, %v295, 0.0
        %313 = vadd.xlane.f32.xlu0 %v312
        %v314 = vpop.xlane.xlu0 %313
        %v315 = vsel %vm311, %v296, 0.0
        %316 = vadd.xlane.f32.xlu0 %v315
        %v317 = vpop.xlane.xlu0 %316
        %v318 = vsel %vm311, %v297, 0.0
        %319 = vadd.xlane.f32.xlu0 %v318
        %v320 = vpop.xlane.xlu0 %319
        %v321 = vsel %vm311, %v298, 0.0
        %322 = vadd.xlane.f32.xlu0 %v321
        %v323 = vpop.xlane.xlu0 %322
        %v324 = vsel %vm311, %v299, 0.0
        %325 = vadd.xlane.f32.xlu0 %v324
        %v326 = vpop.xlane.xlu0 %325
        %v327 = vsel %vm311, %v300, 0.0
        %328 = vadd.xlane.f32.xlu0 %v327
        %v329 = vpop.xlane.xlu0 %328
        %v330 = vsel %vm311, %v301, 0.0
        %331 = vadd.xlane.f32.xlu0 %v330
        %v332 = vpop.xlane.xlu0 %331
        %v333 = vsel %vm311, %v302, 0.0
        %334 = vadd.xlane.f32.xlu0 %v333
        %v335 = vpop.xlane.xlu0 %334
        %v336 = vsel %vm311, %v303, 0.0
        %337 = vadd.xlane.f32.xlu0 %v336
        %v338 = vpop.xlane.xlu0 %337
        %v339 = vsel %vm311, %v304, 0.0
        %340 = vadd.xlane.f32.xlu0 %v339
        %v341 = vpop.xlane.xlu0 %340
        %v342 = vsel %vm311, %v305, 0.0
        %343 = vadd.xlane.f32.xlu0 %v342
        %v344 = vpop.xlane.xlu0 %343
        %v345 = vsel %vm311, %v306, 0.0
        %346 = vadd.xlane.f32.xlu0 %v345
        %v347 = vpop.xlane.xlu0 %346
        %v348 = vsel %vm311, %v307, 0.0
        %349 = vadd.xlane.f32.xlu0 %v348
        %v350 = vpop.xlane.xlu0 %349
        %v351 = vsel %vm311, %v308, 0.0
        %352 = vadd.xlane.f32.xlu0 %v351
        %v353 = vpop.xlane.xlu0 %352
        %v354 = vsel %vm311, %v309, 0.0
        %355 = vadd.xlane.f32.xlu0 %v354
        %v356 = vpop.xlane.xlu0 %355
        %v357 = vsel %vm311, %v310, 0.0
        %358 = vadd.xlane.f32.xlu0 %v357
        %v359 = vpop.xlane.xlu0 %358
        %v360 = vmul.f32 %v314, 0.03125
        %v361 = vmul.f32 %v317, 0.03125
        %v362 = vmul.f32 %v320, 0.03125
        %v363 = vmul.f32 %v323, 0.03125
        %v364 = vmul.f32 %v326, 0.03125
        %v365 = vmul.f32 %v329, 0.03125
        %v366 = vmul.f32 %v332, 0.03125
        %v367 = vmul.f32 %v335, 0.03125
        %v368 = vmul.f32 %v338, 0.03125
        %v369 = vmul.f32 %v341, 0.03125
        %v370 = vmul.f32 %v344, 0.03125
        %v371 = vmul.f32 %v347, 0.03125
        %v372 = vmul.f32 %v350, 0.03125
        %v373 = vmul.f32 %v353, 0.03125
        %v374 = vmul.f32 %v356, 0.03125
        %v375 = vmul.f32 %v359, 0.03125
        %v392 = vlaneseq
        %v393 = vand.u32 %v392, 127
        %v394 = vlaneseq
        %v395 = vshrl.u32 %v394, 7
        %v396 = vsub.s32 %v393, %v395
        %v397 = vrot.slane %v360, %v396
        %v398 = vadd.s32 %v393, 4294967288
        %v399 = vlaneseq
        %v400 = vshrl.u32 %v399, 7
        %v401 = vsub.s32 %v398, %v400
        %v402 = vrot.slane %v361, %v401
        %vm403 = vcmask 130112
        %v404 = vsel %vm403, %v402, %v397
        %v405 = vlaneseq
        %v406 = vshrl.u32 %v405, 7
        %v407 = vsub.s32 %v393, %v406
        %v408 = vrot.slane %v362, %v407
        %v409 = vlaneseq
        %v410 = vshrl.u32 %v409, 7
        %v411 = vsub.s32 %v398, %v410
        %v412 = vrot.slane %v363, %v411
        %v413 = vsel %vm403, %v412, %v408
        %v414 = vlaneseq
        %v415 = vshrl.u32 %v414, 7
        %v416 = vsub.s32 %v393, %v415
        %v417 = vrot.slane %v364, %v416
        %v418 = vlaneseq
        %v419 = vshrl.u32 %v418, 7
        %v420 = vsub.s32 %v398, %v419
        %v421 = vrot.slane %v365, %v420
        %v422 = vsel %vm403, %v421, %v417
        %v423 = vlaneseq
        %v424 = vshrl.u32 %v423, 7
        %v425 = vsub.s32 %v393, %v424
        %v426 = vrot.slane %v366, %v425
        %v427 = vlaneseq
        %v428 = vshrl.u32 %v427, 7
        %v429 = vsub.s32 %v398, %v428
        %v430 = vrot.slane %v367, %v429
        %v431 = vsel %vm403, %v430, %v426
        %v432 = vlaneseq
        %v433 = vshrl.u32 %v432, 7
        %v434 = vsub.s32 %v393, %v433
        %v435 = vrot.slane %v368, %v434
        %v436 = vlaneseq
        %v437 = vshrl.u32 %v436, 7
        %v438 = vsub.s32 %v398, %v437
        %v439 = vrot.slane %v369, %v438
        %v440 = vsel %vm403, %v439, %v435
        %v441 = vlaneseq
        %v442 = vshrl.u32 %v441, 7
        %v443 = vsub.s32 %v393, %v442
        %v444 = vrot.slane %v370, %v443
        %v445 = vlaneseq
        %v446 = vshrl.u32 %v445, 7
        %v447 = vsub.s32 %v398, %v446
        %v448 = vrot.slane %v371, %v447
        %v449 = vsel %vm403, %v448, %v444
        %v450 = vlaneseq
        %v451 = vshrl.u32 %v450, 7
        %v452 = vsub.s32 %v393, %v451
        %v453 = vrot.slane %v372, %v452
        %v454 = vlaneseq
        %v455 = vshrl.u32 %v454, 7
        %v456 = vsub.s32 %v398, %v455
        %v457 = vrot.slane %v373, %v456
        %v458 = vsel %vm403, %v457, %v453
        %v459 = vlaneseq
        %v460 = vshrl.u32 %v459, 7
        %v461 = vsub.s32 %v393, %v460
        %v462 = vrot.slane %v374, %v461
        %v463 = vlaneseq
        %v464 = vshrl.u32 %v463, 7
        %v465 = vsub.s32 %v398, %v464
        %v466 = vrot.slane %v375, %v465
        %v467 = vsel %vm403, %v466, %v462
        %vm468 = vcmask 1041409
        %v469 = vsel %vm468, %v413, %v404
        %vm470 = vcmask 1042434
        %v471 = vsel %vm470, %v422, %v469
        %vm472 = vcmask 1043459
        %v473 = vsel %vm472, %v431, %v471
        %vm474 = vcmask 1044484
        %v475 = vsel %vm474, %v440, %v473
        %vm476 = vcmask 1045509
        %v477 = vsel %vm476, %v449, %v475
        %vm478 = vcmask 1046534
        %v479 = vsel %vm478, %v458, %v477
        %vm480 = vcmask 1047559
        %v481 = vsel %vm480, %v467, %v479
        %vm483 = vcmask 130048
        %484 = vst.msk [vmem:[%s247] sm:$0xff] %vm483, %v481
        %v485 = vsel %vm311, %v295, -inf
        %486 = vmax.xlane.f32.xlu0 %v485
        %v487 = vpop.xlane.xlu0 %486
        %v488 = vsel %vm311, %v296, -inf
        %489 = vmax.xlane.f32.xlu0 %v488
        %v490 = vpop.xlane.xlu0 %489
        %v491 = vsel %vm311, %v297, -inf
        %492 = vmax.xlane.f32.xlu0 %v491
        %v493 = vpop.xlane.xlu0 %492
        %v494 = vsel %vm311, %v298, -inf
        %495 = vmax.xlane.f32.xlu0 %v494
        %v496 = vpop.xlane.xlu0 %495
        %v497 = vsel %vm311, %v299, -inf
        %498 = vmax.xlane.f32.xlu0 %v497
        %v499 = vpop.xlane.xlu0 %498
        %v500 = vsel %vm311, %v300, -inf
        %501 = vmax.xlane.f32.xlu0 %v500
        %v502 = vpop.xlane.xlu0 %501
        %v503 = vsel %vm311, %v301, -inf
        %504 = vmax.xlane.f32.xlu0 %v503
        %v505 = vpop.xlane.xlu0 %504
        %v506 = vsel %vm311, %v302, -inf
        %507 = vmax.xlane.f32.xlu0 %v506
        %v508 = vpop.xlane.xlu0 %507
        %v509 = vsel %vm311, %v303, -inf
        %510 = vmax.xlane.f32.xlu0 %v509
        %v511 = vpop.xlane.xlu0 %510
        %v512 = vsel %vm311, %v304, -inf
        %513 = vmax.xlane.f32.xlu0 %v512
        %v514 = vpop.xlane.xlu0 %513
        %v515 = vsel %vm311, %v305, -inf
        %516 = vmax.xlane.f32.xlu0 %v515
        %v517 = vpop.xlane.xlu0 %516
        %v518 = vsel %vm311, %v306, -inf
        %519 = vmax.xlane.f32.xlu0 %v518
        %v520 = vpop.xlane.xlu0 %519
        %v521 = vsel %vm311, %v307, -inf
        %522 = vmax.xlane.f32.xlu0 %v521
        %v523 = vpop.xlane.xlu0 %522
        %v524 = vsel %vm311, %v308, -inf
        %525 = vmax.xlane.f32.xlu0 %v524
        %v526 = vpop.xlane.xlu0 %525
        %v527 = vsel %vm311, %v309, -inf
        %528 = vmax.xlane.f32.xlu0 %v527
        %v529 = vpop.xlane.xlu0 %528
        %v530 = vsel %vm311, %v310, -inf
        %531 = vmax.xlane.f32.xlu0 %v530
        %v532 = vpop.xlane.xlu0 %531
        %v549 = vlaneseq
        %v550 = vshrl.u32 %v549, 7
        %v551 = vsub.s32 %v393, %v550
        %v552 = vrot.slane %v487, %v551
        %v553 = vlaneseq
        %v554 = vshrl.u32 %v553, 7
        %v555 = vsub.s32 %v398, %v554
        %v556 = vrot.slane %v490, %v555
        %v557 = vsel %vm403, %v556, %v552
        %v558 = vlaneseq
        %v559 = vshrl.u32 %v558, 7
        %v560 = vsub.s32 %v393, %v559
        %v561 = vrot.slane %v493, %v560
        %v562 = vlaneseq
        %v563 = vshrl.u32 %v562, 7
        %v564 = vsub.s32 %v398, %v563
        %v565 = vrot.slane %v496, %v564
        %v566 = vsel %vm403, %v565, %v561
        %v567 = vlaneseq
        %v568 = vshrl.u32 %v567, 7
        %v569 = vsub.s32 %v393, %v568
        %v570 = vrot.slane %v499, %v569
        %v571 = vlaneseq
        %v572 = vshrl.u32 %v571, 7
        %v573 = vsub.s32 %v398, %v572
        %v574 = vrot.slane %v502, %v573
        %v575 = vsel %vm403, %v574, %v570
        %v576 = vlaneseq
        %v577 = vshrl.u32 %v576, 7
        %v578 = vsub.s32 %v393, %v577
        %v579 = vrot.slane %v505, %v578
        %v580 = vlaneseq
        %v581 = vshrl.u32 %v580, 7
        %v582 = vsub.s32 %v398, %v581
        %v583 = vrot.slane %v508, %v582
        %v584 = vsel %vm403, %v583, %v579
        %v585 = vlaneseq
        %v586 = vshrl.u32 %v585, 7
        %v587 = vsub.s32 %v393, %v586
        %v588 = vrot.slane %v511, %v587
        %v589 = vlaneseq
        %v590 = vshrl.u32 %v589, 7
        %v591 = vsub.s32 %v398, %v590
        %v592 = vrot.slane %v514, %v591
        %v593 = vsel %vm403, %v592, %v588
        %v594 = vlaneseq
        %v595 = vshrl.u32 %v594, 7
        %v596 = vsub.s32 %v393, %v595
        %v597 = vrot.slane %v517, %v596
        %v598 = vlaneseq
        %v599 = vshrl.u32 %v598, 7
        %v600 = vsub.s32 %v398, %v599
        %v601 = vrot.slane %v520, %v600
        %v602 = vsel %vm403, %v601, %v597
        %v603 = vlaneseq
        %v604 = vshrl.u32 %v603, 7
        %v605 = vsub.s32 %v393, %v604
        %v606 = vrot.slane %v523, %v605
        %v607 = vlaneseq
        %v608 = vshrl.u32 %v607, 7
        %v609 = vsub.s32 %v398, %v608
        %v610 = vrot.slane %v526, %v609
        %v611 = vsel %vm403, %v610, %v606
        %v612 = vlaneseq
        %v613 = vshrl.u32 %v612, 7
        %v614 = vsub.s32 %v393, %v613
        %v615 = vrot.slane %v529, %v614
        %v616 = vlaneseq
        %v617 = vshrl.u32 %v616, 7
        %v618 = vsub.s32 %v398, %v617
        %v619 = vrot.slane %v532, %v618
        %v620 = vsel %vm403, %v619, %v615
        %v621 = vsel %vm468, %v566, %v557
        %v622 = vsel %vm470, %v575, %v621
        %v623 = vsel %vm472, %v584, %v622
        %v624 = vsel %vm474, %v593, %v623
        %v625 = vsel %vm476, %v602, %v624
        %v626 = vsel %vm478, %v611, %v625
        %v627 = vsel %vm480, %v620, %v626
        %629 = vst.msk [vmem:[%s254] sm:$0xff] %vm483, %v627
        %s630 = sand.u32 %s103, 1
        %s631 = scalar_lea.sflag [#allocation4], %s630
        %s632 = sand.u32 %s103, 1
        %s633 = smul.addr %s632, 8
        %s634 = scalar_lea.vmem [#allocation7], %s633
        %s635 = sand.u32 %s131, 1
        %s636 = scalar_lea.sflag [#allocation9], %s635
        %s637 = sand.u32 %s131, 1
        %s638 = smul.addr %s637, 8
        %s639 = scalar_lea.vmem [#allocation8], %s638
        // Predicated region
        $region37: #{conv_cbam_forward.5} parent=27 // pred_check
          %p640 = pneg %p113
        $region38: #{conv_cbam_forward.5} parent=27 // pred_check_branch
          %642 = sbr.rel (%p640) target = $region40
        $region39: #{conv_cbam_forward.5} parent=27 // pred_region
          %s644 = ssub.s32 128, 128
          %645 = vsyncadd %s631, %s644
          %s646 = smul.addr %s31, 2
          %s647 = sadd.s32 %s32, %s646
          %s648 = smul.addr %s647, 128
          %s649 = scalar_lea.hbm %s2, %s648
          %s651 = sshll.u32 %s634, 4
          %s652 = int_to_ptr.vmem [resolvable:$true] %s651
          %654 = dma.vmem_to_hbm [thread:$0]  %s652, 128, %s649, %s631
        $region40: #{conv_cbam_forward.5} parent=27 // pred_fallthru
          _
        // Predicated region
        $region41: #{conv_cbam_forward.5} parent=27 // pred_check
          %p655 = pneg %p141
        $region42: #{conv_cbam_forward.5} parent=27 // pred_check_branch
          %657 = sbr.rel (%p655) target = $region44
        $region43: #{conv_cbam_forward.5} parent=27 // pred_region
          %s659 = ssub.s32 128, 128
          %660 = vsyncadd %s636, %s659
          %s661 = smul.addr %s31, 2
          %s662 = sadd.s32 %s32, %s661
          %s663 = smul.addr %s662, 128
          %s664 = scalar_lea.hbm %s3, %s663
          %s666 = sshll.u32 %s639, 4
          %s667 = int_to_ptr.vmem [resolvable:$true] %s666
          %669 = dma.vmem_to_hbm [thread:$0]  %s667, 128, %s664, %s636
        $region44: #{conv_cbam_forward.5} parent=27 // pred_fallthru
          _
      $region28: #{conv_cbam_forward.5} parent=5 // pred_fallthru
        _
      %p670 = scmp.le.s32.totalorder 2, %s22
      // Predicated region
      $region45: #{conv_cbam_forward.5} parent=5 // pred_check
        %p671 = pneg %p670
      $region46: #{conv_cbam_forward.5} parent=5 // pred_check_branch
        %673 = sbr.rel (%p671) target = $region48
      $region47: #{conv_cbam_forward.5} parent=5 // pred_region
        %s674 = ssub.s32 %s22, 2
        // Predicated region
        $region49: #{conv_cbam_forward.5} parent=47 // pred_check
          %p675 = pneg %p119
        $region50: #{conv_cbam_forward.5} parent=47 // pred_check_branch
          %677 = sbr.rel (%p675) target = $region52
        $region51: #{conv_cbam_forward.5} parent=47 // pred_region
          %s678 = sand.u32 %s104, 1
          %s679 = scalar_lea.sflag [#allocation4], %s678
          %s680 = sand.u32 %s104, 1
          %s681 = smul.addr %s680, 8
          %s682 = scalar_lea.vmem [#allocation7], %s681
          %683 = dma.done %s679, 128
        $region52: #{conv_cbam_forward.5} parent=47 // pred_fallthru
          _
        // Predicated region
        $region53: #{conv_cbam_forward.5} parent=47 // pred_check
          %p684 = pneg %p147
        $region54: #{conv_cbam_forward.5} parent=47 // pred_check_branch
          %686 = sbr.rel (%p684) target = $region56
        $region55: #{conv_cbam_forward.5} parent=47 // pred_region
          %s687 = sand.u32 %s132, 1
          %s688 = scalar_lea.sflag [#allocation9], %s687
          %s689 = sand.u32 %s132, 1
          %s690 = smul.addr %s689, 8
          %s691 = scalar_lea.vmem [#allocation8], %s690
          %692 = dma.done %s688, 128
        $region56: #{conv_cbam_forward.5} parent=47 // pred_fallthru
          _
      $region48: #{conv_cbam_forward.5} parent=5 // pred_fallthru
        _
    $region6: #{conv_cbam_forward.5} parent=1 // loop_footer
      %s26 = sadd.s32 1, %s22
    $region7: #{conv_cbam_forward.5} parent=1 // loop_footer_branch
      %21 = sbr.rel target = $region3
    $region8: #{conv_cbam_forward.5} parent=1 // loop_exit
      _
    %693 = vsyncpa [#allocation3], 1
    %s694 = scalar_lea.sflag [#allocation3], 1
    %695 = vsyncpa %s694, 1
    %696 = vsyncpa [#allocation6], 1
    %s697 = scalar_lea.sflag [#allocation6], 1
    %698 = vsyncpa %s697, 1
    %699 = vsyncpa [#allocation4], 1
    %s700 = scalar_lea.sflag [#allocation4], 1
    %701 = vsyncpa %s700, 1
    %702 = vsyncpa [#allocation9], 1
    %s703 = scalar_lea.sflag [#allocation9], 1
    %704 = vsyncpa %s703, 1

// kernel: conv_cbam_forward.6
$region0: #{conv_cbam_forward.6}
  #allocation0 [shape = 'u32[]', space=smem, size = 0x4, offset = 0x4, fixed_abs, tag = 'smem constant byte address 0x4 - core index']
  #allocation1 [shape = 'u32[144,128]{1,0:T(1,128)}', space=vmem, size = 0x12000, scoped, tag = 'internal scratch']
  #allocation2 [shape = 'f32[64,128]{1,0:T(8,128)}', space=vmem, size = 0x8000, scoped, tag = 'scratch operand']
  #allocation3 [shape = 'f32[448,128]{1,0:T(8,128)}', space=vmem, size = 0x38000, scoped, tag = 'scratch operand']
  %s0 = inlined_call_operand.hbm [shape: f32[98], index: 0, kind: input, shape index: {}]
  %s1 = inlined_call_operand.hbm [shape: f32[2,16,16], index: 1, kind: input, shape index: {}]
  %s2 = inlined_call_operand.hbm [shape: f32[2,16,16], index: 2, kind: input, shape index: {}]
  %s3 = inlined_call_operand.hbm [shape: f32[2,16,16], index: 3, kind: output, shape index: {}]
  %s4 = sld [smem:[#allocation0]]
  $region57: #{conv_cbam_forward.6} parent=0
    _
  %s6 = ssub.s32 1, %s4
  %s7 = scalar_select 0, %s6, %s4
  $region1: #{conv_cbam_forward.6} parent=0
    #allocation4 [shape = 'u8[512]{0}', space=smem, size = 0x200, scoped, tag = 'input window, operand 0, single buffered']
    #allocation5 [shape = 's32[2]{0}', space=sflag, size = 0x8, scoped, tag = 'scoped memory for conv_cbam_forward.6']
    #allocation6 [shape = 's32[2]{0}', space=sflag, size = 0x8, scoped, tag = 'scoped memory for conv_cbam_forward.6']
    #allocation7 [shape = 's32[2]{0}', space=sflag, size = 0x8, scoped, tag = 'scoped memory for conv_cbam_forward.6']
    #allocation8 [shape = 'u8[16384]{0}', space=vmem, size = 0x4000, scoped, tag = 'input window, operand 1']
    #allocation9 [shape = 'u8[16384]{0}', space=vmem, size = 0x4000, scoped, tag = 'input window, operand 2']
    #allocation10 [shape = 's32[2]{0}', space=sflag, size = 0x8, scoped, tag = 'scoped memory for conv_cbam_forward.6']
    #allocation11 [shape = 'u8[16384]{0}', space=vmem, size = 0x4000, scoped, tag = 'output window, operand 0']
    %8 = vsyncpa [#allocation7], 0
    %9 = vsyncpa [#allocation5], 0
    %s10 = scalar_lea.sflag [#allocation5], 1
    %11 = vsyncpa %s10, 0
    %12 = vsyncpa [#allocation10], 0
    %s13 = scalar_lea.sflag [#allocation10], 1
    %14 = vsyncpa %s13, 0
    %15 = vsyncpa [#allocation6], 0
    %s16 = scalar_lea.sflag [#allocation6], 1
    %17 = vsyncpa %s16, 0
    loop: start=0, step=1, limit=4
    $region2: #{conv_cbam_forward.6} parent=1 // loop_pre_header
      _
    $region3: #{conv_cbam_forward.6} parent=1 // loop_header
      %s19 = sphi 0, %s23
      %p20 = scmp.ge.s32.totalorder %s19, 4
      %s27 = sphi 0, %s27
      %s29 = sphi 0, %s27
      %s30 = sphi 0, %s29
      %s44 = sphi 0, %s30
      %s50 = sphi 0, %s52
      %s53 = sphi 0, %s50
      %s54 = sphi 0, %s53
      %s70 = sphi 0, %s54
      %s76 = sphi 0, %s78
      %s79 = sphi 0, %s76
      %s80 = sphi 0, %s79
      %s96 = sphi 0, %s80
      %s102 = sphi 0, %s104
      %s105 = sphi 0, %s102
      %s106 = sphi 0, %s105
      %s122 = sphi 0, %s106
    $region4: #{conv_cbam_forward.6} parent=1 // loop_header_branch
      %22 = sbr.rel (%p20) target = $region8
    $region5: #{conv_cbam_forward.6} parent=1 // loop_body
      %s24 = ssub.s32 %s19, 1
      %s25 = ssub.s32 %s19, 2
      %s26 = sadd.s32 %s19, 1
      %s28 = sadd.s32 %s27, 1
      %p31 = scmp.eq.s32.totalorder %s19, 1
      %p32 = scmp.ne.s32.totalorder %s27, %s29
      %p33 = scmp.eq.s32.totalorder %s19, 0
      %p34 = por %p32, %p33
      %p35 = scmp.ne.s32.totalorder %s27, %s29
      %p36 = scmp.eq.s32.totalorder %s24, 1
      %p37 = por %p35, %p36
      %p38 = scmp.ne.s32.totalorder %s29, %s30
      %p39 = scmp.eq.s32.totalorder %s24, 0
      %p40 = por %p38, %p39
      %p41 = scmp.ne.s32.totalorder %s29, %s30
      %p42 = scmp.eq.s32.totalorder %s25, 1
      %p43 = por %p41, %p42
      %p45 = scmp.ne.s32.totalorder %s30, %s44
      %p46 = scmp.eq.s32.totalorder %s25, 0
      %p47 = por %p45, %p46
      %s48 = ssub.s32 %s19, %s26
      %p49 = scmp.eq.s32.totalorder %s48, 0
      %s51 = sadd.s32 %s50, 1
      %s52 = scalar_select %p49, %s50, %s51
      %p55 = pneg %p49
      %p56 = scmp.eq.s32.totalorder %s19, 1
      %p57 = por %p55, %p56
      %p58 = scmp.ne.s32.totalorder %s50, %s53
      %p59 = scmp.eq.s32.totalorder %s19, 0
      %p60 = por %p58, %p59
      %p61 = scmp.ne.s32.totalorder %s50, %s53
      %p62 = scmp.eq.s32.totalorder %s24, 1
      %p63 = por %p61, %p62
      %p64 = scmp.ne.s32.totalorder %s53, %s54
      %p65 = scmp.eq.s32.totalorder %s24, 0
      %p66 = por %p64, %p65
      %p67 = scmp.ne.s32.totalorder %s53, %s54
      %p68 = scmp.eq.s32.totalorder %s25, 1
      %p69 = por %p67, %p68
      %p71 = scmp.ne.s32.totalorder %s54, %s70
      %p72 = scmp.eq.s32.totalorder %s25, 0
      %p73 = por %p71, %p72
      %s74 = ssub.s32 %s19, %s26
      %p75 = scmp.eq.s32.totalorder %s74, 0
      %s77 = sadd.s32 %s76, 1
      %s78 = scalar_select %p75, %s76, %s77
      %p81 = pneg %p75
      %p82 = scmp.eq.s32.totalorder %s19, 1
      %p83 = por %p81, %p82
      %p84 = scmp.ne.s32.totalorder %s76, %s79
      %p85 = scmp.eq.s32.totalorder %s19, 0
      %p86 = por %p84, %p85
      %p87 = scmp.ne.s32.totalorder %s76, %s79
      %p88 = scmp.eq.s32.totalorder %s24, 1
      %p89 = por %p87, %p88
      %p90 = scmp.ne.s32.totalorder %s79, %s80
      %p91 = scmp.eq.s32.totalorder %s24, 0
      %p92 = por %p90, %p91
      %p93 = scmp.ne.s32.totalorder %s79, %s80
      %p94 = scmp.eq.s32.totalorder %s25, 1
      %p95 = por %p93, %p94
      %p97 = scmp.ne.s32.totalorder %s80, %s96
      %p98 = scmp.eq.s32.totalorder %s25, 0
      %p99 = por %p97, %p98
      %s100 = ssub.s32 %s19, %s26
      %p101 = scmp.eq.s32.totalorder %s100, 0
      %s103 = sadd.s32 %s102, 1
      %s104 = scalar_select %p101, %s102, %s103
      %p107 = pneg %p101
      %p108 = scmp.eq.s32.totalorder %s19, 1
      %p109 = por %p107, %p108
      %p110 = scmp.ne.s32.totalorder %s102, %s105
      %p111 = scmp.eq.s32.totalorder %s19, 0
      %p112 = por %p110, %p111
      %p113 = scmp.ne.s32.totalorder %s102, %s105
      %p114 = scmp.eq.s32.totalorder %s24, 1
      %p115 = por %p113, %p114
      %p116 = scmp.ne.s32.totalorder %s105, %s106
      %p117 = scmp.eq.s32.totalorder %s24, 0
      %p118 = por %p116, %p117
      %p119 = scmp.ne.s32.totalorder %s105, %s106
      %p120 = scmp.eq.s32.totalorder %s25, 1
      %p121 = por %p119, %p120
      %p123 = scmp.ne.s32.totalorder %s106, %s122
      %p124 = scmp.eq.s32.totalorder %s25, 0
      %p125 = por %p123, %p124
      %p126 = scmp.le.s32.totalorder 1, %s19
      %p127 = scmp.lt.s32.totalorder %s19, 3
      %p128 = pnand %p126, %p127
      %p129 = pneg %p128
      // Predicated region
      $region9: #{conv_cbam_forward.6} parent=5 // pred_check
        _
      $region10: #{conv_cbam_forward.6} parent=5 // pred_check_branch
        %131 = sbr.rel (%p128) target = $region12
      $region11: #{conv_cbam_forward.6} parent=5 // pred_region
        %s132 = ssub.s32 %s19, 1
        // Predicated region
        $region13: #{conv_cbam_forward.6} parent=11 // pred_check
          %p133 = pneg %p40
        $region14: #{conv_cbam_forward.6} parent=11 // pred_check_branch
          %135 = sbr.rel (%p133) target = $region16
        $region15: #{conv_cbam_forward.6} parent=11 // pred_region
          %s137 = ssub.s32 16, 16
          %138 = vsyncadd [#allocation7], %s137
          %141 = dma.hbm_to_smem %s0, 16, [#allocation4], [#allocation7]
        $region16: #{conv_cbam_forward.6} parent=11 // pred_fallthru
          _
      $region12: #{conv_cbam_forward.6} parent=5 // pred_fallthru
        _
      %p142 = scmp.lt.s32.totalorder %s19, 2
      // Predicated region
      $region17: #{conv_cbam_forward.6} parent=5 // pred_check
        %p143 = pneg %p142
      $region18: #{conv_cbam_forward.6} parent=5 // pred_check_branch
        %145 = sbr.rel (%p143) target = $region20
      $region19: #{conv_cbam_forward.6} parent=5 // pred_region
        // Predicated region
        $region21: #{conv_cbam_forward.6} parent=19 // pred_check
          %p146 = pneg %p60
        $region22: #{conv_cbam_forward.6} parent=19 // pred_check_branch
          %148 = sbr.rel (%p146) target = $region24
        $region23: #{conv_cbam_forward.6} parent=19 // pred_region
          %s149 = sand.u32 %s50, 1
          %s150 = scalar_lea.sflag [#allocation5], %s149
          %s151 = sand.u32 %s50, 1
          %s152 = smul.addr %s151, 16
          %s153 = scalar_lea.vmem [#allocation8], %s152
          %s155 = ssub.s32 256, 256
          %156 = vsyncadd %s150, %s155
          %s157 = smul.addr %s19, 2
          %s158 = smul.addr %s157, 128
          %s159 = scalar_lea.hbm %s1, %s158
          %s160 = sshll.u32 %s153, 4
          %s161 = int_to_ptr.vmem [resolvable:$true] %s160
          %166 = dma.hbm_to_vmem [thread:$0]  %s159, 256, %s161, %s150, 128, 128, 8
        $region24: #{conv_cbam_forward.6} parent=19 // pred_fallthru
          _
        // Predicated region
        $region25: #{conv_cbam_forward.6} parent=19 // pred_check
          %p167 = pneg %p86
        $region26: #{conv_cbam_forward.6} parent=19 // pred_check_branch
          %169 = sbr.rel (%p167) target = $region28
        $region27: #{conv_cbam_forward.6} parent=19 // pred_region
          %s170 = sand.u32 %s76, 1
          %s171 = scalar_lea.sflag [#allocation10], %s170
          %s172 = sand.u32 %s76, 1
          %s173 = smul.addr %s172, 16
          %s174 = scalar_lea.vmem [#allocation9], %s173
          %s176 = ssub.s32 256, 256
          %177 = vsyncadd %s171, %s176
          %s178 = smul.addr %s19, 2
          %s179 = smul.addr %s178, 128
          %s180 = scalar_lea.hbm %s2, %s179
          %s181 = sshll.u32 %s174, 4
          %s182 = int_to_ptr.vmem [resolvable:$true] %s181
          %187 = dma.hbm_to_vmem [thread:$0]  %s180, 256, %s182, %s171, 128, 128, 8
        $region28: #{conv_cbam_forward.6} parent=19 // pred_fallthru
          _
      $region20: #{conv_cbam_forward.6} parent=5 // pred_fallthru
        _
      %p188 = scmp.le.s32.totalorder 1, %s19
      %p189 = scmp.lt.s32.totalorder %s19, 3
      %p190 = pnand %p188, %p189
      %p191 = pneg %p190
      // Predicated region
      $region29: #{conv_cbam_forward.6} parent=5 // pred_check
        _
      $region30: #{conv_cbam_forward.6} parent=5 // pred_check_branch
        %193 = sbr.rel (%p190) target = $region32
      $region31: #{conv_cbam_forward.6} parent=5 // pred_region
        %s194 = ssub.s32 %s19, 1
        // Predicated region
        $region33: #{conv_cbam_forward.6} parent=31 // pred_check
          %p195 = pneg %p40
        $region34: #{conv_cbam_forward.6} parent=31 // pred_check_branch
          %197 = sbr.rel (%p195) target = $region36
        $region35: #{conv_cbam_forward.6} parent=31 // pred_region
          %198 = dma.done [#allocation7], 16
        $region36: #{conv_cbam_forward.6} parent=31 // pred_fallthru
          _
        %s199 = sand.u32 %s53, 1
        %s200 = scalar_lea.sflag [#allocation5], %s199
        %s201 = sand.u32 %s53, 1
        %s202 = smul.addr %s201, 16
        %s203 = scalar_lea.vmem [#allocation8], %s202
        // Predicated region
        $region37: #{conv_cbam_forward.6} parent=31 // pred_check
          %p204 = pneg %p66
        $region38: #{conv_cbam_forward.6} parent=31 // pred_check_branch
          %206 = sbr.rel (%p204) target = $region40
        $region39: #{conv_cbam_forward.6} parent=31 // pred_region
          %207 = dma.done %s200, 256
        $region40: #{conv_cbam_forward.6} parent=31 // pred_fallthru
          _
        %s208 = sand.u32 %s79, 1
        %s209 = scalar_lea.sflag [#allocation10], %s208
        %s210 = sand.u32 %s79, 1
        %s211 = smul.addr %s210, 16
        %s212 = scalar_lea.vmem [#allocation9], %s211
        // Predicated region
        $region41: #{conv_cbam_forward.6} parent=31 // pred_check
          %p213 = pneg %p92
        $region42: #{conv_cbam_forward.6} parent=31 // pred_check_branch
          %215 = sbr.rel (%p213) target = $region44
        $region43: #{conv_cbam_forward.6} parent=31 // pred_region
          %216 = dma.done %s209, 256
        $region44: #{conv_cbam_forward.6} parent=31 // pred_fallthru
          _
        %217 = sfence
        %p218 = pneg %p40
        %p219 = pneg %p37
        %s220 = sand.u32 %s53, 1
        %s221 = scalar_lea.sflag [#allocation5], %s220
        %s222 = sand.u32 %s53, 1
        %s223 = smul.addr %s222, 16
        %s224 = scalar_lea.vmem [#allocation8], %s223
        %p225 = pneg %p66
        %p226 = pneg %p63
        %s227 = sand.u32 %s79, 1
        %s228 = scalar_lea.sflag [#allocation10], %s227
        %s229 = sand.u32 %s79, 1
        %s230 = smul.addr %s229, 16
        %s231 = scalar_lea.vmem [#allocation9], %s230
        %p232 = pneg %p92
        %p233 = pneg %p89
        %p234 = pneg %p118
        %p235 = pneg %p115
        %s236 = sand.u32 %s105, 1
        %s237 = scalar_lea.sflag [#allocation6], %s236
        %s238 = sand.u32 %s105, 1
        %s239 = smul.addr %s238, 16
        %s240 = scalar_lea.vmem [#allocation11], %s239
        %241 = vst [vmem:[#allocation2] sm:$0xff] 0.0
        %242 = vst [vmem:[#allocation2 + $0x8] sm:$0xff] 0.0
        %243 = vst [vmem:[#allocation2 + $0x10] sm:$0xff] 0.0
        %244 = vst [vmem:[#allocation2 + $0x18] sm:$0xff] 0.0
        %245 = vst [vmem:[#allocation2 + $0x20] sm:$0xff] 0.0
        %246 = vst [vmem:[#allocation2 + $0x28] sm:$0xff] 0.0
        %247 = vst [vmem:[#allocation2 + $0x30] sm:$0xff] 0.0
        %248 = vst [vmem:[#allocation2 + $0x38] sm:$0xff] 0.0
        %v249 = vld [vmem:[%s203] sm:$0xff]
        %v250 = vld [vmem:[%s203 + $0x8] sm:$0xff]
        %vm251 = vcmask 130048
        %252 = vst.msk [vmem:[#allocation2 + $0x8] sm:$0xff] %vm251, %v249
        %253 = vst.msk [vmem:[#allocation2 + $0x10] sm:$0xff] %vm251, %v250
        %v254 = vld [vmem:[%s212] sm:$0xff]
        %v255 = vld [vmem:[%s212 + $0x8] sm:$0xff]
        %256 = vst.msk [vmem:[#allocation2 + $0x28] sm:$0xff] %vm251, %v254
        %257 = vst.msk [vmem:[#allocation2 + $0x30] sm:$0xff] %vm251, %v255
        %v258 = vld [vmem:[#allocation2] sm:$0xff]
        %v259 = vld [vmem:[#allocation2 + $0x8] sm:$0xff]
        %v260 = vld [vmem:[#allocation2 + $0x10] sm:$0xff]
        %v261 = vld [vmem:[#allocation2 + $0x18] sm:$0xff]
        %v262 = vld [vmem:[#allocation2 + $0x20] sm:$0xff]
        %v263 = vld [vmem:[#allocation2 + $0x28] sm:$0xff]
        %v264 = vld [vmem:[#allocation2 + $0x30] sm:$0xff]
        %v265 = vld [vmem:[#allocation2 + $0x38] sm:$0xff]
        %266 = vrot.lane.b32.xlu0 %v258, 3
        %v267 = vpop.permute.xlu0 %266
        %268 = vrot.lane.b32.xlu0 %v259, 3
        %v269 = vpop.permute.xlu0 %268
        %270 = vrot.lane.b32.xlu0 %v260, 3
        %v271 = vpop.permute.xlu0 %270
        %272 = vrot.lane.b32.xlu0 %v261, 3
        %v273 = vpop.permute.xlu0 %272
        %274 = vrot.lane.b32.xlu0 %v262, 3
        %v275 = vpop.permute.xlu0 %274
        %276 = vrot.lane.b32.xlu0 %v263, 3
        %v277 = vpop.permute.xlu0 %276
        %278 = vrot.lane.b32.xlu0 %v264, 3
        %v279 = vpop.permute.xlu0 %278
        %280 = vrot.lane.b32.xlu0 %v265, 3
        %v281 = vpop.permute.xlu0 %280
        %282 = vst [vmem:[#allocation3] sm:$0xff] %v267
        %283 = vst [vmem:[#allocation3 + $0x8] sm:$0xff] %v269
        %284 = vst [vmem:[#allocation3 + $0x10] sm:$0xff] %v271
        %285 = vst [vmem:[#allocation3 + $0x18] sm:$0xff] %v273
        %286 = vst [vmem:[#allocation3 + $0x20] sm:$0xff] %v275
        %287 = vst [vmem:[#allocation3 + $0x28] sm:$0xff] %v277
        %288 = vst [vmem:[#allocation3 + $0x30] sm:$0xff] %v279
        %289 = vst [vmem:[#allocation3 + $0x38] sm:$0xff] %v281
        %290 = vrot.lane.b32.xlu0 %v258, 2
        %v291 = vpop.permute.xlu0 %290
        %292 = vrot.lane.b32.xlu0 %v259, 2
        %v293 = vpop.permute.xlu0 %292
        %294 = vrot.lane.b32.xlu0 %v260, 2
        %v295 = vpop.permute.xlu0 %294
        %296 = vrot.lane.b32.xlu0 %v261, 2
        %v297 = vpop.permute.xlu0 %296
        %298 = vrot.lane.b32.xlu0 %v262, 2
        %v299 = vpop.permute.xlu0 %298
        %300 = vrot.lane.b32.xlu0 %v263, 2
        %v301 = vpop.permute.xlu0 %300
        %302 = vrot.lane.b32.xlu0 %v264, 2
        %v303 = vpop.permute.xlu0 %302
        %304 = vrot.lane.b32.xlu0 %v265, 2
        %v305 = vpop.permute.xlu0 %304
        %306 = vst [vmem:[#allocation3 + $0x40] sm:$0xff] %v291
        %307 = vst [vmem:[#allocation3 + $0x48] sm:$0xff] %v293
        %308 = vst [vmem:[#allocation3 + $0x50] sm:$0xff] %v295
        %309 = vst [vmem:[#allocation3 + $0x58] sm:$0xff] %v297
        %310 = vst [vmem:[#allocation3 + $0x60] sm:$0xff] %v299
        %311 = vst [vmem:[#allocation3 + $0x68] sm:$0xff] %v301
        %312 = vst [vmem:[#allocation3 + $0x70] sm:$0xff] %v303
        %313 = vst [vmem:[#allocation3 + $0x78] sm:$0xff] %v305
        %314 = vrot.lane.b32.xlu0 %v258, 1
        %v315 = vpop.permute.xlu0 %314
        %316 = vrot.lane.b32.xlu0 %v259, 1
        %v317 = vpop.permute.xlu0 %316
        %318 = vrot.lane.b32.xlu0 %v260, 1
        %v319 = vpop.permute.xlu0 %318
        %320 = vrot.lane.b32.xlu0 %v261, 1
        %v321 = vpop.permute.xlu0 %320
        %322 = vrot.lane.b32.xlu0 %v262, 1
        %v323 = vpop.permute.xlu0 %322
        %324 = vrot.lane.b32.xlu0 %v263, 1
        %v325 = vpop.permute.xlu0 %324
        %326 = vrot.lane.b32.xlu0 %v264, 1
        %v327 = vpop.permute.xlu0 %326
        %328 = vrot.lane.b32.xlu0 %v265, 1
        %v329 = vpop.permute.xlu0 %328
        %330 = vst [vmem:[#allocation3 + $0x80] sm:$0xff] %v315
        %331 = vst [vmem:[#allocation3 + $0x88] sm:$0xff] %v317
        %332 = vst [vmem:[#allocation3 + $0x90] sm:$0xff] %v319
        %333 = vst [vmem:[#allocation3 + $0x98] sm:$0xff] %v321
        %334 = vst [vmem:[#allocation3 + $0xa0] sm:$0xff] %v323
        %335 = vst [vmem:[#allocation3 + $0xa8] sm:$0xff] %v325
        %336 = vst [vmem:[#allocation3 + $0xb0] sm:$0xff] %v327
        %337 = vst [vmem:[#allocation3 + $0xb8] sm:$0xff] %v329
        %338 = vst [vmem:[#allocation3 + $0xc0] sm:$0xff] %v258
        %339 = vst [vmem:[#allocation3 + $0xc8] sm:$0xff] %v259
        %340 = vst [vmem:[#allocation3 + $0xd0] sm:$0xff] %v260
        %341 = vst [vmem:[#allocation3 + $0xd8] sm:$0xff] %v261
        %342 = vst [vmem:[#allocation3 + $0xe0] sm:$0xff] %v262
        %343 = vst [vmem:[#allocation3 + $0xe8] sm:$0xff] %v263
        %344 = vst [vmem:[#allocation3 + $0xf0] sm:$0xff] %v264
        %345 = vst [vmem:[#allocation3 + $0xf8] sm:$0xff] %v265
        %346 = vrot.lane.b32.xlu0 %v258, 127
        %v347 = vpop.permute.xlu0 %346
        %348 = vrot.lane.b32.xlu0 %v259, 127
        %v349 = vpop.permute.xlu0 %348
        %350 = vrot.lane.b32.xlu0 %v260, 127
        %v351 = vpop.permute.xlu0 %350
        %352 = vrot.lane.b32.xlu0 %v261, 127
        %v353 = vpop.permute.xlu0 %352
        %354 = vrot.lane.b32.xlu0 %v262, 127
        %v355 = vpop.permute.xlu0 %354
        %356 = vrot.lane.b32.xlu0 %v263, 127
        %v357 = vpop.permute.xlu0 %356
        %358 = vrot.lane.b32.xlu0 %v264, 127
        %v359 = vpop.permute.xlu0 %358
        %360 = vrot.lane.b32.xlu0 %v265, 127
        %v361 = vpop.permute.xlu0 %360
        %362 = vst [vmem:[#allocation3 + $0x100] sm:$0xff] %v347
        %363 = vst [vmem:[#allocation3 + $0x108] sm:$0xff] %v349
        %364 = vst [vmem:[#allocation3 + $0x110] sm:$0xff] %v351
        %365 = vst [vmem:[#allocation3 + $0x118] sm:$0xff] %v353
        %366 = vst [vmem:[#allocation3 + $0x120] sm:$0xff] %v355
        %367 = vst [vmem:[#allocation3 + $0x128] sm:$0xff] %v357
        %368 = vst [vmem:[#allocation3 + $0x130] sm:$0xff] %v359
        %369 = vst [vmem:[#allocation3 + $0x138] sm:$0xff] %v361
        %370 = vrot.lane.b32.xlu0 %v258, 126
        %v371 = vpop.permute.xlu0 %370
        %372 = vrot.lane.b32.xlu0 %v259, 126
        %v373 = vpop.permute.xlu0 %372
        %374 = vrot.lane.b32.xlu0 %v260, 126
        %v375 = vpop.permute.xlu0 %374
        %376 = vrot.lane.b32.xlu0 %v261, 126
        %v377 = vpop.permute.xlu0 %376
        %378 = vrot.lane.b32.xlu0 %v262, 126
        %v379 = vpop.permute.xlu0 %378
        %380 = vrot.lane.b32.xlu0 %v263, 126
        %v381 = vpop.permute.xlu0 %380
        %382 = vrot.lane.b32.xlu0 %v264, 126
        %v383 = vpop.permute.xlu0 %382
        %384 = vrot.lane.b32.xlu0 %v265, 126
        %v385 = vpop.permute.xlu0 %384
        %386 = vst [vmem:[#allocation3 + $0x140] sm:$0xff] %v371
        %387 = vst [vmem:[#allocation3 + $0x148] sm:$0xff] %v373
        %388 = vst [vmem:[#allocation3 + $0x150] sm:$0xff] %v375
        %389 = vst [vmem:[#allocation3 + $0x158] sm:$0xff] %v377
        %390 = vst [vmem:[#allocation3 + $0x160] sm:$0xff] %v379
        %391 = vst [vmem:[#allocation3 + $0x168] sm:$0xff] %v381
        %392 = vst [vmem:[#allocation3 + $0x170] sm:$0xff] %v383
        %393 = vst [vmem:[#allocation3 + $0x178] sm:$0xff] %v385
        %394 = vrot.lane.b32.xlu0 %v258, 125
        %v395 = vpop.permute.xlu0 %394
        %396 = vrot.lane.b32.xlu0 %v259, 125
        %v397 = vpop.permute.xlu0 %396
        %398 = vrot.lane.b32.xlu0 %v260, 125
        %v399 = vpop.permute.xlu0 %398
        %400 = vrot.lane.b32.xlu0 %v261, 125
        %v401 = vpop.permute.xlu0 %400
        %402 = vrot.lane.b32.xlu0 %v262, 125
        %v403 = vpop.permute.xlu0 %402
        %404 = vrot.lane.b32.xlu0 %v263, 125
        %v405 = vpop.permute.xlu0 %404
        %406 = vrot.lane.b32.xlu0 %v264, 125
        %v407 = vpop.permute.xlu0 %406
        %408 = vrot.lane.b32.xlu0 %v265, 125
        %v409 = vpop.permute.xlu0 %408
        %410 = vst [vmem:[#allocation3 + $0x180] sm:$0xff] %v395
        %411 = vst [vmem:[#allocation3 + $0x188] sm:$0xff] %v397
        %412 = vst [vmem:[#allocation3 + $0x190] sm:$0xff] %v399
        %413 = vst [vmem:[#allocation3 + $0x198] sm:$0xff] %v401
        %414 = vst [vmem:[#allocation3 + $0x1a0] sm:$0xff] %v403
        %415 = vst [vmem:[#allocation3 + $0x1a8] sm:$0xff] %v405
        %416 = vst [vmem:[#allocation3 + $0x1b0] sm:$0xff] %v407
        %417 = vst [vmem:[#allocation3 + $0x1b8] sm:$0xff] %v409
        %v418 = vld [vmem:[#allocation3 + $0x5] sm:$0xff]
        %v419 = vld [vmem:[#allocation3 + $0xd] sm:$0xff]
        %v420 = vld [vmem:[#allocation3 + $0x25] sm:$0xff]
        %v421 = vld [vmem:[#allocation3 + $0x2d] sm:$0xff]
        %s422 = sld [smem:[#allocation4]]
        %s423 = sld [smem:[#allocation4 + $0x1]]
        %v424 = vstv %s422
        %v425 = vmul.f32 %v418, %v424
        %v426 = vmul.f32 %v419, %v424
        %v427 = vstv %s423
        %v428 = vmul.f32 %v420, %v427
        %v429 = vmul.f32 %v421, %v427
        %v430 = vadd.f32 %v425, %v428
        %v431 = vadd.f32 %v426, %v429
        %v432 = vadd.f32 %v430, 0.0
        %v433 = vadd.f32 %v431, 0.0
        %v434 = vld [vmem:[#allocation3 + $0x45] sm:$0xff]
        %v435 = vld [vmem:[#allocation3 + $0x4d] sm:$0xff]
        %v436 = vld [vmem:[#allocation3 + $0x65] sm:$0xff]
        %v437 = vld [vmem:[#allocation3 + $0x6d] sm:$0xff]
        %s438 = sld [smem:[#allocation4 + $0x2]]
        %s439 = sld [smem:[#allocation4 + $0x3]]
        %v440 = vstv %s438
        %v441 = vmul.f32 %v434, %v440
        %v442 = vmul.f32 %v435, %v440
        %v443 = vstv %s439
        %v444 = vmul.f32 %v436, %v443
        %v445 = vmul.f32 %v437, %v443
        %v446 = vadd.f32 %v441, %v444
        %v447 = vadd.f32 %v442, %v445
        %v448 = vadd.f32 %v446, 0.0
        %v449 = vadd.f32 %v447, 0.0
        %v450 = vld [vmem:[#allocation3 + $0x85] sm:$0xff]
        %v451 = vld [vmem:[#allocation3 + $0x8d] sm:$0xff]
        %v452 = vld [vmem:[#allocation3 + $0xa5] sm:$0xff]
        %v453 = vld [vmem:[#allocation3 + $0xad] sm:$0xff]
        %s454 = sld [smem:[#allocation4 + $0x4]]
        %s455 = sld [smem:[#allocation4 + $0x5]]
        %v456 = vstv %s454
        %v457 = vmul.f32 %v450, %v456
        %v458 = vmul.f32 %v451, %v456
        %v459 = vstv %s455
        %v460 = vmul.f32 %v452, %v459
        %v461 = vmul.f32 %v453, %v459
        %v462 = vadd.f32 %v457, %v460
        %v463 = vadd.f32 %v458, %v461
        %v464 = vadd.f32 %v462, 0.0
        %v465 = vadd.f32 %v463, 0.0
        %v466 = vld [vmem:[#allocation3 + $0xc5] sm:$0xff]
        %v467 = vld [vmem:[#allocation3 + $0xcd] sm:$0xff]
        %v468 = vld [vmem:[#allocation3 + $0xe5] sm:$0xff]
        %v469 = vld [vmem:[#allocation3 + $0xed] sm:$0xff]
        %s470 = sld [smem:[#allocation4 + $0x6]]
        %s471 = sld [smem:[#allocation4 + $0x7]]
        %v472 = vstv %s470
        %v473 = vmul.f32 %v466, %v472
        %v474 = vmul.f32 %v467, %v472
        %v475 = vstv %s471
        %v476 = vmul.f32 %v468, %v475
        %v477 = vmul.f32 %v469, %v475
        %v478 = vadd.f32 %v473, %v476
        %v479 = vadd.f32 %v474, %v477
        %v480 = vadd.f32 %v478, 0.0
        %v481 = vadd.f32 %v479, 0.0
        %v482 = vld [vmem:[#allocation3 + $0x105] sm:$0xff]
        %v483 = vld [vmem:[#allocation3 + $0x10d] sm:$0xff]
        %v484 = vld [vmem:[#allocation3 + $0x125] sm:$0xff]
        %v485 = vld [vmem:[#allocation3 + $0x12d] sm:$0xff]
        %s486 = sld [smem:[#allocation4 + $0x8]]
        %s487 = sld [smem:[#allocation4 + $0x9]]
        %v488 = vstv %s486
        %v489 = vmul.f32 %v482, %v488
        %v490 = vmul.f32 %v483, %v488
        %v491 = vstv %s487
        %v492 = vmul.f32 %v484, %v491
        %v493 = vmul.f32 %v485, %v491
        %v494 = vadd.f32 %v489, %v492
        %v495 = vadd.f32 %v490, %v493
        %v496 = vadd.f32 %v432, %v494
        %v497 = vadd.f32 %v433, %v495
        %v498 = vld [vmem:[#allocation3 + $0x145] sm:$0xff]
        %v499 = vld [vmem:[#allocation3 + $0x14d] sm:$0xff]
        %v500 = vld [vmem:[#allocation3 + $0x165] sm:$0xff]
        %v501 = vld [vmem:[#allocation3 + $0x16d] sm:$0xff]
        %s502 = sld [smem:[#allocation4 + $0xa]]
        %s503 = sld [smem:[#allocation4 + $0xb]]
        %v504 = vstv %s502
        %v505 = vmul.f32 %v498, %v504
        %v506 = vmul.f32 %v499, %v504
        %v507 = vstv %s503
        %v508 = vmul.f32 %v500, %v507
        %v509 = vmul.f32 %v501, %v507
        %v510 = vadd.f32 %v505, %v508
        %v511 = vadd.f32 %v506, %v509
        %v512 = vadd.f32 %v448, %v510
        %v513 = vadd.f32 %v449, %v511
        %v514 = vld [vmem:[#allocation3 + $0x185] sm:$0xff]
        %v515 = vld [vmem:[#allocation3 + $0x18d] sm:$0xff]
        %v516 = vld [vmem:[#allocation3 + $0x1a5] sm:$0xff]
        %v517 = vld [vmem:[#allocation3 + $0x1ad] sm:$0xff]
        %s518 = sld [smem:[#allocation4 + $0xc]]
        %s519 = sld [smem:[#allocation4 + $0xd]]
        %v520 = vstv %s518
        %v521 = vmul.f32 %v514, %v520
        %v522 = vmul.f32 %v515, %v520
        %v523 = vstv %s519
        %v524 = vmul.f32 %v516, %v523
        %v525 = vmul.f32 %v517, %v523
        %v526 = vadd.f32 %v521, %v524
        %v527 = vadd.f32 %v522, %v525
        %v528 = vadd.f32 %v464, %v526
        %v529 = vadd.f32 %v465, %v527
        %v530 = vld [vmem:[#allocation3 + $0x6] sm:$0xff]
        %v531 = vld [vmem:[#allocation3 + $0xe] sm:$0xff]
        %v532 = vld [vmem:[#allocation3 + $0x26] sm:$0xff]
        %v533 = vld [vmem:[#allocation3 + $0x2e] sm:$0xff]
        %s534 = sld [smem:[#allocation4 + $0xe]]
        %s535 = sld [smem:[#allocation4 + $0xf]]
        %v536 = vstv %s534
        %v537 = vmul.f32 %v530, %v536
        %v538 = vmul.f32 %v531, %v536
        %v539 = vstv %s535
        %v540 = vmul.f32 %v532, %v539
        %v541 = vmul.f32 %v533, %v539
        %v542 = vadd.f32 %v537, %v540
        %v543 = vadd.f32 %v538, %v541
        %v544 = vadd.f32 %v480, %v542
        %v545 = vadd.f32 %v481, %v543
        %v546 = vld [vmem:[#allocation3 + $0x46] sm:$0xff]
        %v547 = vld [vmem:[#allocation3 + $0x4e] sm:$0xff]
        %v548 = vld [vmem:[#allocation3 + $0x66] sm:$0xff]
        %v549 = vld [vmem:[#allocation3 + $0x6e] sm:$0xff]
        %s550 = sld [smem:[#allocation4 + $0x10]]
        %s551 = sld [smem:[#allocation4 + $0x11]]
        %v552 = vstv %s550
        %v553 = vmul.f32 %v546, %v552
        %v554 = vmul.f32 %v547, %v552
        %v555 = vstv %s551
        %v556 = vmul.f32 %v548, %v555
        %v557 = vmul.f32 %v549, %v555
        %v558 = vadd.f32 %v553, %v556
        %v559 = vadd.f32 %v554, %v557
        %v560 = vadd.f32 %v496, %v558
        %v561 = vadd.f32 %v497, %v559
        %v562 = vld [vmem:[#allocation3 + $0x86] sm:$0xff]
        %v563 = vld [vmem:[#allocation3 + $0x8e] sm:$0xff]
        %v564 = vld [vmem:[#allocation3 + $0xa6] sm:$0xff]
        %v565 = vld [vmem:[#allocation3 + $0xae] sm:$0xff]
        %s566 = sld [smem:[#allocation4 + $0x12]]
        %s567 = sld [smem:[#allocation4 + $0x13]]
        %v568 = vstv %s566
        %v569 = vmul.f32 %v562, %v568
        %v570 = vmul.f32 %v563, %v568
        %v571 = vstv %s567
        %v572 = vmul.f32 %v564, %v571
        %v573 = vmul.f32 %v565, %v571
        %v574 = vadd.f32 %v569, %v572
        %v575 = vadd.f32 %v570, %v573
        %v576 = vadd.f32 %v512, %v574
        %v577 = vadd.f32 %v513, %v575
        %v578 = vld [vmem:[#allocation3 + $0xc6] sm:$0xff]
        %v579 = vld [vmem:[#allocation3 + $0xce] sm:$0xff]
        %v580 = vld [vmem:[#allocation3 + $0xe6] sm:$0xff]
        %v581 = vld [vmem:[#allocation3 + $0xee] sm:$0xff]
        %s582 = sld [smem:[#allocation4 + $0x14]]
        %s583 = sld [smem:[#allocation4 + $0x15]]
        %v584 = vstv %s582
        %v585 = vmul.f32 %v578, %v584
        %v586 = vmul.f32 %v579, %v584
        %v587 = vstv %s583
        %v588 = vmul.f32 %v580, %v587
        %v589 = vmul.f32 %v581, %v587
        %v590 = vadd.f32 %v585, %v588
        %v591 = vadd.f32 %v586, %v589
        %v592 = vadd.f32 %v528, %v590
        %v593 = vadd.f32 %v529, %v591
        %v594 = vld [vmem:[#allocation3 + $0x106] sm:$0xff]
        %v595 = vld [vmem:[#allocation3 + $0x10e] sm:$0xff]
        %v596 = vld [vmem:[#allocation3 + $0x126] sm:$0xff]
        %v597 = vld [vmem:[#allocation3 + $0x12e] sm:$0xff]
        %s598 = sld [smem:[#allocation4 + $0x16]]
        %s599 = sld [smem:[#allocation4 + $0x17]]
        %v600 = vstv %s598
        %v601 = vmul.f32 %v594, %v600
        %v602 = vmul.f32 %v595, %v600
        %v603 = vstv %s599
        %v604 = vmul.f32 %v596, %v603
        %v605 = vmul.f32 %v597, %v603
        %v606 = vadd.f32 %v601, %v604
        %v607 = vadd.f32 %v602, %v605
        %v608 = vadd.f32 %v544, %v606
        %v609 = vadd.f32 %v545, %v607
        %v610 = vld [vmem:[#allocation3 + $0x146] sm:$0xff]
        %v611 = vld [vmem:[#allocation3 + $0x14e] sm:$0xff]
        %v612 = vld [vmem:[#allocation3 + $0x166] sm:$0xff]
        %v613 = vld [vmem:[#allocation3 + $0x16e] sm:$0xff]
        %s614 = sld [smem:[#allocation4 + $0x18]]
        %s615 = sld [smem:[#allocation4 + $0x19]]
        %v616 = vstv %s614
        %v617 = vmul.f32 %v610, %v616
        %v618 = vmul.f32 %v611, %v616
        %v619 = vstv %s615
        %v620 = vmul.f32 %v612, %v619
        %v621 = vmul.f32 %v613, %v619
        %v622 = vadd.f32 %v617, %v620
        %v623 = vadd.f32 %v618, %v621
        %v624 = vadd.f32 %v560, %v622
        %v625 = vadd.f32 %v561, %v623
        %v626 = vld [vmem:[#allocation3 + $0x186] sm:$0xff]
        %v627 = vld [vmem:[#allocation3 + $0x18e] sm:$0xff]
        %v628 = vld [vmem:[#allocation3 + $0x1a6] sm:$0xff]
        %v629 = vld [vmem:[#allocation3 + $0x1ae] sm:$0xff]
        %s630 = sld [smem:[#allocation4 + $0x1a]]
        %s631 = sld [smem:[#allocation4 + $0x1b]]
        %v632 = vstv %s630
        %v633 = vmul.f32 %v626, %v632
        %v634 = vmul.f32 %v627, %v632
        %v635 = vstv %s631
        %v636 = vmul.f32 %v628, %v635
        %v637 = vmul.f32 %v629, %v635
        %v638 = vadd.f32 %v633, %v636
        %v639 = vadd.f32 %v634, %v637
        %v640 = vadd.f32 %v576, %v638
        %v641 = vadd.f32 %v577, %v639
        %v642 = vld [vmem:[#allocation3 + $0x7] sm:$0xff]
        %v643 = vld [vmem:[#allocation3 + $0xf] sm:$0xff]
        %v644 = vld [vmem:[#allocation3 + $0x27] sm:$0xff]
        %v645 = vld [vmem:[#allocation3 + $0x2f] sm:$0xff]
        %s646 = sld [smem:[#allocation4 + $0x1c]]
        %s647 = sld [smem:[#allocation4 + $0x1d]]
        %v648 = vstv %s646
        %v649 = vmul.f32 %v642, %v648
        %v650 = vmul.f32 %v643, %v648
        %v651 = vstv %s647
        %v652 = vmul.f32 %v644, %v651
        %v653 = vmul.f32 %v645, %v651
        %v654 = vadd.f32 %v649, %v652
        %v655 = vadd.f32 %v650, %v653
        %v656 = vadd.f32 %v592, %v654
        %v657 = vadd.f32 %v593, %v655
        %v658 = vld [vmem:[#allocation3 + $0x47] sm:$0xff]
        %v659 = vld [vmem:[#allocation3 + $0x4f] sm:$0xff]
        %v660 = vld [vmem:[#allocation3 + $0x67] sm:$0xff]
        %v661 = vld [vmem:[#allocation3 + $0x6f] sm:$0xff]
        %s662 = sld [smem:[#allocation4 + $0x1e]]
        %s663 = sld [smem:[#allocation4 + $0x1f]]
        %v664 = vstv %s662
        %v665 = vmul.f32 %v658, %v664
        %v666 = vmul.f32 %v659, %v664
        %v667 = vstv %s663
        %v668 = vmul.f32 %v660, %v667
        %v669 = vmul.f32 %v661, %v667
        %v670 = vadd.f32 %v665, %v668
        %v671 = vadd.f32 %v666, %v669
        %v672 = vadd.f32 %v608, %v670
        %v673 = vadd.f32 %v609, %v671
        %v674 = vld [vmem:[#allocation3 + $0x87] sm:$0xff]
        %v675 = vld [vmem:[#allocation3 + $0x8f] sm:$0xff]
        %v676 = vld [vmem:[#allocation3 + $0xa7] sm:$0xff]
        %v677 = vld [vmem:[#allocation3 + $0xaf] sm:$0xff]
        %s678 = sld [smem:[#allocation4 + $0x20]]
        %s679 = sld [smem:[#allocation4 + $0x21]]
        %v680 = vstv %s678
        %v681 = vmul.f32 %v674, %v680
        %v682 = vmul.f32 %v675, %v680
        %v683 = vstv %s679
        %v684 = vmul.f32 %v676, %v683
        %v685 = vmul.f32 %v677, %v683
        %v686 = vadd.f32 %v681, %v684
        %v687 = vadd.f32 %v682, %v685
        %v688 = vadd.f32 %v624, %v686
        %v689 = vadd.f32 %v625, %v687
        %v690 = vld [vmem:[#allocation3 + $0xc7] sm:$0xff]
        %v691 = vld [vmem:[#allocation3 + $0xcf] sm:$0xff]
        %v692 = vld [vmem:[#allocation3 + $0xe7] sm:$0xff]
        %v693 = vld [vmem:[#allocation3 + $0xef] sm:$0xff]
        %s694 = sld [smem:[#allocation4 + $0x22]]
        %s695 = sld [smem:[#allocation4 + $0x23]]
        %v696 = vstv %s694
        %v697 = vmul.f32 %v690, %v696
        %v698 = vmul.f32 %v691, %v696
        %v699 = vstv %s695
        %v700 = vmul.f32 %v692, %v699
        %v701 = vmul.f32 %v693, %v699
        %v702 = vadd.f32 %v697, %v700
        %v703 = vadd.f32 %v698, %v701
        %v704 = vadd.f32 %v640, %v702
        %v705 = vadd.f32 %v641, %v703
        %v706 = vld [vmem:[#allocation3 + $0x107] sm:$0xff]
        %v707 = vld [vmem:[#allocation3 + $0x10f] sm:$0xff]
        %v708 = vld [vmem:[#allocation3 + $0x127] sm:$0xff]
        %v709 = vld [vmem:[#allocation3 + $0x12f] sm:$0xff]
        %s710 = sld [smem:[#allocation4 + $0x24]]
        %s711 = sld [smem:[#allocation4 + $0x25]]
        %v712 = vstv %s710
        %v713 = vmul.f32 %v706, %v712
        %v714 = vmul.f32 %v707, %v712
        %v715 = vstv %s711
        %v716 = vmul.f32 %v708, %v715
        %v717 = vmul.f32 %v709, %v715
        %v718 = vadd.f32 %v713, %v716
        %v719 = vadd.f32 %v714, %v717
        %v720 = vadd.f32 %v656, %v718
        %v721 = vadd.f32 %v657, %v719
        %v722 = vld [vmem:[#allocation3 + $0x147] sm:$0xff]
        %v723 = vld [vmem:[#allocation3 + $0x14f] sm:$0xff]
        %v724 = vld [vmem:[#allocation3 + $0x167] sm:$0xff]
        %v725 = vld [vmem:[#allocation3 + $0x16f] sm:$0xff]
        %s726 = sld [smem:[#allocation4 + $0x26]]
        %s727 = sld [smem:[#allocation4 + $0x27]]
        %v728 = vstv %s726
        %v729 = vmul.f32 %v722, %v728
        %v730 = vmul.f32 %v723, %v728
        %v731 = vstv %s727
        %v732 = vmul.f32 %v724, %v731
        %v733 = vmul.f32 %v725, %v731
        %v734 = vadd.f32 %v729, %v732
        %v735 = vadd.f32 %v730, %v733
        %v736 = vadd.f32 %v672, %v734
        %v737 = vadd.f32 %v673, %v735
        %v738 = vld [vmem:[#allocation3 + $0x187] sm:$0xff]
        %v739 = vld [vmem:[#allocation3 + $0x18f] sm:$0xff]
        %v740 = vld [vmem:[#allocation3 + $0x1a7] sm:$0xff]
        %v741 = vld [vmem:[#allocation3 + $0x1af] sm:$0xff]
        %s742 = sld [smem:[#allocation4 + $0x28]]
        %s743 = sld [smem:[#allocation4 + $0x29]]
        %v744 = vstv %s742
        %v745 = vmul.f32 %v738, %v744
        %v746 = vmul.f32 %v739, %v744
        %v747 = vstv %s743
        %v748 = vmul.f32 %v740, %v747
        %v749 = vmul.f32 %v741, %v747
        %v750 = vadd.f32 %v745, %v748
        %v751 = vadd.f32 %v746, %v749
        %v752 = vadd.f32 %v688, %v750
        %v753 = vadd.f32 %v689, %v751
        %v754 = vld [vmem:[#allocation3 + $0x8] sm:$0xff]
        %v755 = vld [vmem:[#allocation3 + $0x10] sm:$0xff]
        %v756 = vld [vmem:[#allocation3 + $0x28] sm:$0xff]
        %v757 = vld [vmem:[#allocation3 + $0x30] sm:$0xff]
        %s758 = sld [smem:[#allocation4 + $0x2a]]
        %s759 = sld [smem:[#allocation4 + $0x2b]]
        %v760 = vstv %s758
        %v761 = vmul.f32 %v754, %v760
        %v762 = vmul.f32 %v755, %v760
        %v763 = vstv %s759
        %v764 = vmul.f32 %v756, %v763
        %v765 = vmul.f32 %v757, %v763
        %v766 = vadd.f32 %v761, %v764
        %v767 = vadd.f32 %v762, %v765
        %v768 = vadd.f32 %v704, %v766
        %v769 = vadd.f32 %v705, %v767
        %v770 = vld [vmem:[#allocation3 + $0x48] sm:$0xff]
        %v771 = vld [vmem:[#allocation3 + $0x50] sm:$0xff]
        %v772 = vld [vmem:[#allocation3 + $0x68] sm:$0xff]
        %v773 = vld [vmem:[#allocation3 + $0x70] sm:$0xff]
        %s774 = sld [smem:[#allocation4 + $0x2c]]
        %s775 = sld [smem:[#allocation4 + $0x2d]]
        %v776 = vstv %s774
        %v777 = vmul.f32 %v770, %v776
        %v778 = vmul.f32 %v771, %v776
        %v779 = vstv %s775
        %v780 = vmul.f32 %v772, %v779
        %v781 = vmul.f32 %v773, %v779
        %v782 = vadd.f32 %v777, %v780
        %v783 = vadd.f32 %v778, %v781
        %v784 = vadd.f32 %v720, %v782
        %v785 = vadd.f32 %v721, %v783
        %v786 = vld [vmem:[#allocation3 + $0x88] sm:$0xff]
        %v787 = vld [vmem:[#allocation3 + $0x90] sm:$0xff]
        %v788 = vld [vmem:[#allocation3 + $0xa8] sm:$0xff]
        %v789 = vld [vmem:[#allocation3 + $0xb0] sm:$0xff]
        %s790 = sld [smem:[#allocation4 + $0x2e]]
        %s791 = sld [smem:[#allocation4 + $0x2f]]
        %v792 = vstv %s790
        %v793 = vmul.f32 %v786, %v792
        %v794 = vmul.f32 %v787, %v792
        %v795 = vstv %s791
        %v796 = vmul.f32 %v788, %v795
        %v797 = vmul.f32 %v789, %v795
        %v798 = vadd.f32 %v793, %v796
        %v799 = vadd.f32 %v794, %v797
        %v800 = vadd.f32 %v736, %v798
        %v801 = vadd.f32 %v737, %v799
        %v802 = vld [vmem:[#allocation3 + $0xc8] sm:$0xff]
        %v803 = vld [vmem:[#allocation3 + $0xd0] sm:$0xff]
        %v804 = vld [vmem:[#allocation3 + $0xe8] sm:$0xff]
        %v805 = vld [vmem:[#allocation3 + $0xf0] sm:$0xff]
        %s806 = sld [smem:[#allocation4 + $0x30]]
        %s807 = sld [smem:[#allocation4 + $0x31]]
        %v808 = vstv %s806
        %v809 = vmul.f32 %v802, %v808
        %v810 = vmul.f32 %v803, %v808
        %v811 = vstv %s807
        %v812 = vmul.f32 %v804, %v811
        %v813 = vmul.f32 %v805, %v811
        %v814 = vadd.f32 %v809, %v812
        %v815 = vadd.f32 %v810, %v813
        %v816 = vadd.f32 %v752, %v814
        %v817 = vadd.f32 %v753, %v815
        %v818 = vld [vmem:[#allocation3 + $0x108] sm:$0xff]
        %v819 = vld [vmem:[#allocation3 + $0x110] sm:$0xff]
        %v820 = vld [vmem:[#allocation3 + $0x128] sm:$0xff]
        %v821 = vld [vmem:[#allocation3 + $0x130] sm:$0xff]
        %s822 = sld [smem:[#allocation4 + $0x32]]
        %s823 = sld [smem:[#allocation4 + $0x33]]
        %v824 = vstv %s822
        %v825 = vmul.f32 %v818, %v824
        %v826 = vmul.f32 %v819, %v824
        %v827 = vstv %s823
        %v828 = vmul.f32 %v820, %v827
        %v829 = vmul.f32 %v821, %v827
        %v830 = vadd.f32 %v825, %v828
        %v831 = vadd.f32 %v826, %v829
        %v832 = vadd.f32 %v768, %v830
        %v833 = vadd.f32 %v769, %v831
        %v834 = vld [vmem:[#allocation3 + $0x148] sm:$0xff]
        %v835 = vld [vmem:[#allocation3 + $0x150] sm:$0xff]
        %v836 = vld [vmem:[#allocation3 + $0x168] sm:$0xff]
        %v837 = vld [vmem:[#allocation3 + $0x170] sm:$0xff]
        %s838 = sld [smem:[#allocation4 + $0x34]]
        %s839 = sld [smem:[#allocation4 + $0x35]]
        %v840 = vstv %s838
        %v841 = vmul.f32 %v834, %v840
        %v842 = vmul.f32 %v835, %v840
        %v843 = vstv %s839
        %v844 = vmul.f32 %v836, %v843
        %v845 = vmul.f32 %v837, %v843
        %v846 = vadd.f32 %v841, %v844
        %v847 = vadd.f32 %v842, %v845
        %v848 = vadd.f32 %v784, %v846
        %v849 = vadd.f32 %v785, %v847
        %v850 = vld [vmem:[#allocation3 + $0x188] sm:$0xff]
        %v851 = vld [vmem:[#allocation3 + $0x190] sm:$0xff]
        %v852 = vld [vmem:[#allocation3 + $0x1a8] sm:$0xff]
        %v853 = vld [vmem:[#allocation3 + $0x1b0] sm:$0xff]
        %s854 = sld [smem:[#allocation4 + $0x36]]
        %s855 = sld [smem:[#allocation4 + $0x37]]
        %v856 = vstv %s854
        %v857 = vmul.f32 %v850, %v856
        %v858 = vmul.f32 %v851, %v856
        %v859 = vstv %s855
        %v860 = vmul.f32 %v852, %v859
        %v861 = vmul.f32 %v853, %v859
        %v862 = vadd.f32 %v857, %v860
        %v863 = vadd.f32 %v858, %v861
        %v864 = vadd.f32 %v800, %v862
        %v865 = vadd.f32 %v801, %v863
        %v866 = vld [vmem:[#allocation3 + $0x9] sm:$0xff]
        %v867 = vld [vmem:[#allocation3 + $0x11] sm:$0xff]
        %v868 = vld [vmem:[#allocation3 + $0x29] sm:$0xff]
        %v869 = vld [vmem:[#allocation3 + $0x31] sm:$0xff]
        %s870 = sld [smem:[#allocation4 + $0x38]]
        %s871 = sld [smem:[#allocation4 + $0x39]]
        %v872 = vstv %s870
        %v873 = vmul.f32 %v866, %v872
        %v874 = vmul.f32 %v867, %v872
        %v875 = vstv %s871
        %v876 = vmul.f32 %v868, %v875
        %v877 = vmul.f32 %v869, %v875
        %v878 = vadd.f32 %v873, %v876
        %v879 = vadd.f32 %v874, %v877
        %v880 = vadd.f32 %v816, %v878
        %v881 = vadd.f32 %v817, %v879
        %v882 = vld [vmem:[#allocation3 + $0x49] sm:$0xff]
        %v883 = vld [vmem:[#allocation3 + $0x51] sm:$0xff]
        %v884 = vld [vmem:[#allocation3 + $0x69] sm:$0xff]
        %v885 = vld [vmem:[#allocation3 + $0x71] sm:$0xff]
        %s886 = sld [smem:[#allocation4 + $0x3a]]
        %s887 = sld [smem:[#allocation4 + $0x3b]]
        %v888 = vstv %s886
        %v889 = vmul.f32 %v882, %v888
        %v890 = vmul.f32 %v883, %v888
        %v891 = vstv %s887
        %v892 = vmul.f32 %v884, %v891
        %v893 = vmul.f32 %v885, %v891
        %v894 = vadd.f32 %v889, %v892
        %v895 = vadd.f32 %v890, %v893
        %v896 = vadd.f32 %v832, %v894
        %v897 = vadd.f32 %v833, %v895
        %v898 = vld [vmem:[#allocation3 + $0x89] sm:$0xff]
        %v899 = vld [vmem:[#allocation3 + $0x91] sm:$0xff]
        %v900 = vld [vmem:[#allocation3 + $0xa9] sm:$0xff]
        %v901 = vld [vmem:[#allocation3 + $0xb1] sm:$0xff]
        %s902 = sld [smem:[#allocation4 + $0x3c]]
        %s903 = sld [smem:[#allocation4 + $0x3d]]
        %v904 = vstv %s902
        %v905 = vmul.f32 %v898, %v904
        %v906 = vmul.f32 %v899, %v904
        %v907 = vstv %s903
        %v908 = vmul.f32 %v900, %v907
        %v909 = vmul.f32 %v901, %v907
        %v910 = vadd.f32 %v905, %v908
        %v911 = vadd.f32 %v906, %v909
        %v912 = vadd.f32 %v848, %v910
        %v913 = vadd.f32 %v849, %v911
        %v914 = vld [vmem:[#allocation3 + $0xc9] sm:$0xff]
        %v915 = vld [vmem:[#allocation3 + $0xd1] sm:$0xff]
        %v916 = vld [vmem:[#allocation3 + $0xe9] sm:$0xff]
        %v917 = vld [vmem:[#allocation3 + $0xf1] sm:$0xff]
        %s918 = sld [smem:[#allocation4 + $0x3e]]
        %s919 = sld [smem:[#allocation4 + $0x3f]]
        %v920 = vstv %s918
        %v921 = vmul.f32 %v914, %v920
        %v922 = vmul.f32 %v915, %v920
        %v923 = vstv %s919
        %v924 = vmul.f32 %v916, %v923
        %v925 = vmul.f32 %v917, %v923
        %v926 = vadd.f32 %v921, %v924
        %v927 = vadd.f32 %v922, %v925
        %v928 = vadd.f32 %v864, %v926
        %v929 = vadd.f32 %v865, %v927
        %v930 = vld [vmem:[#allocation3 + $0x109] sm:$0xff]
        %v931 = vld [vmem:[#allocation3 + $0x111] sm:$0xff]
        %v932 = vld [vmem:[#allocation3 + $0x129] sm:$0xff]
        %v933 = vld [vmem:[#allocation3 + $0x131] sm:$0xff]
        %s934 = sld [smem:[#allocation4 + $0x40]]
        %s935 = sld [smem:[#allocation4 + $0x41]]
        %v936 = vstv %s934
        %v937 = vmul.f32 %v930, %v936
        %v938 = vmul.f32 %v931, %v936
        %v939 = vstv %s935
        %v940 = vmul.f32 %v932, %v939
        %v941 = vmul.f32 %v933, %v939
        %v942 = vadd.f32 %v937, %v940
        %v943 = vadd.f32 %v938, %v941
        %v944 = vadd.f32 %v880, %v942
        %v945 = vadd.f32 %v881, %v943
        %v946 = vld [vmem:[#allocation3 + $0x149] sm:$0xff]
        %v947 = vld [vmem:[#allocation3 + $0x151] sm:$0xff]
        %v948 = vld [vmem:[#allocation3 + $0x169] sm:$0xff]
        %v949 = vld [vmem:[#allocation3 + $0x171] sm:$0xff]
        %s950 = sld [smem:[#allocation4 + $0x42]]
        %s951 = sld [smem:[#allocation4 + $0x43]]
        %v952 = vstv %s950
        %v953 = vmul.f32 %v946, %v952
        %v954 = vmul.f32 %v947, %v952
        %v955 = vstv %s951
        %v956 = vmul.f32 %v948, %v955
        %v957 = vmul.f32 %v949, %v955
        %v958 = vadd.f32 %v953, %v956
        %v959 = vadd.f32 %v954, %v957
        %v960 = vadd.f32 %v896, %v958
        %v961 = vadd.f32 %v897, %v959
        %v962 = vld [vmem:[#allocation3 + $0x189] sm:$0xff]
        %v963 = vld [vmem:[#allocation3 + $0x191] sm:$0xff]
        %v964 = vld [vmem:[#allocation3 + $0x1a9] sm:$0xff]
        %v965 = vld [vmem:[#allocation3 + $0x1b1] sm:$0xff]
        %s966 = sld [smem:[#allocation4 + $0x44]]
        %s967 = sld [smem:[#allocation4 + $0x45]]
        %v968 = vstv %s966
        %v969 = vmul.f32 %v962, %v968
        %v970 = vmul.f32 %v963, %v968
        %v971 = vstv %s967
        %v972 = vmul.f32 %v964, %v971
        %v973 = vmul.f32 %v965, %v971
        %v974 = vadd.f32 %v969, %v972
        %v975 = vadd.f32 %v970, %v973
        %v976 = vadd.f32 %v912, %v974
        %v977 = vadd.f32 %v913, %v975
        %v978 = vld [vmem:[#allocation3 + $0xa] sm:$0xff]
        %v979 = vld [vmem:[#allocation3 + $0x12] sm:$0xff]
        %v980 = vld [vmem:[#allocation3 + $0x2a] sm:$0xff]
        %v981 = vld [vmem:[#allocation3 + $0x32] sm:$0xff]
        %s982 = sld [smem:[#allocation4 + $0x46]]
        %s983 = sld [smem:[#allocation4 + $0x47]]
        %v984 = vstv %s982
        %v985 = vmul.f32 %v978, %v984
        %v986 = vmul.f32 %v979, %v984
        %v987 = vstv %s983
        %v988 = vmul.f32 %v980, %v987
        %v989 = vmul.f32 %v981, %v987
        %v990 = vadd.f32 %v985, %v988
        %v991 = vadd.f32 %v986, %v989
        %v992 = vadd.f32 %v928, %v990
        %v993 = vadd.f32 %v929, %v991
        %v994 = vld [vmem:[#allocation3 + $0x4a] sm:$0xff]
        %v995 = vld [vmem:[#allocation3 + $0x52] sm:$0xff]
        %v996 = vld [vmem:[#allocation3 + $0x6a] sm:$0xff]
        %v997 = vld [vmem:[#allocation3 + $0x72] sm:$0xff]
        %s998 = sld [smem:[#allocation4 + $0x48]]
        %s999 = sld [smem:[#allocation4 + $0x49]]
        %v1000 = vstv %s998
        %v1001 = vmul.f32 %v994, %v1000
        %v1002 = vmul.f32 %v995, %v1000
        %v1003 = vstv %s999
        %v1004 = vmul.f32 %v996, %v1003
        %v1005 = vmul.f32 %v997, %v1003
        %v1006 = vadd.f32 %v1001, %v1004
        %v1007 = vadd.f32 %v1002, %v1005
        %v1008 = vadd.f32 %v944, %v1006
        %v1009 = vadd.f32 %v945, %v1007
        %v1010 = vld [vmem:[#allocation3 + $0x8a] sm:$0xff]
        %v1011 = vld [vmem:[#allocation3 + $0x92] sm:$0xff]
        %v1012 = vld [vmem:[#allocation3 + $0xaa] sm:$0xff]
        %v1013 = vld [vmem:[#allocation3 + $0xb2] sm:$0xff]
        %s1014 = sld [smem:[#allocation4 + $0x4a]]
        %s1015 = sld [smem:[#allocation4 + $0x4b]]
        %v1016 = vstv %s1014
        %v1017 = vmul.f32 %v1010, %v1016
        %v1018 = vmul.f32 %v1011, %v1016
        %v1019 = vstv %s1015
        %v1020 = vmul.f32 %v1012, %v1019
        %v1021 = vmul.f32 %v1013, %v1019
        %v1022 = vadd.f32 %v1017, %v1020
        %v1023 = vadd.f32 %v1018, %v1021
        %v1024 = vadd.f32 %v960, %v1022
        %v1025 = vadd.f32 %v961, %v1023
        %v1026 = vld [vmem:[#allocation3 + $0xca] sm:$0xff]
        %v1027 = vld [vmem:[#allocation3 + $0xd2] sm:$0xff]
        %v1028 = vld [vmem:[#allocation3 + $0xea] sm:$0xff]
        %v1029 = vld [vmem:[#allocation3 + $0xf2] sm:$0xff]
        %s1030 = sld [smem:[#allocation4 + $0x4c]]
        %s1031 = sld [smem:[#allocation4 + $0x4d]]
        %v1032 = vstv %s1030
        %v1033 = vmul.f32 %v1026, %v1032
        %v1034 = vmul.f32 %v1027, %v1032
        %v1035 = vstv %s1031
        %v1036 = vmul.f32 %v1028, %v1035
        %v1037 = vmul.f32 %v1029, %v1035
        %v1038 = vadd.f32 %v1033, %v1036
        %v1039 = vadd.f32 %v1034, %v1037
        %v1040 = vadd.f32 %v976, %v1038
        %v1041 = vadd.f32 %v977, %v1039
        %v1042 = vld [vmem:[#allocation3 + $0x10a] sm:$0xff]
        %v1043 = vld [vmem:[#allocation3 + $0x112] sm:$0xff]
        %v1044 = vld [vmem:[#allocation3 + $0x12a] sm:$0xff]
        %v1045 = vld [vmem:[#allocation3 + $0x132] sm:$0xff]
        %s1046 = sld [smem:[#allocation4 + $0x4e]]
        %s1047 = sld [smem:[#allocation4 + $0x4f]]
        %v1048 = vstv %s1046
        %v1049 = vmul.f32 %v1042, %v1048
        %v1050 = vmul.f32 %v1043, %v1048
        %v1051 = vstv %s1047
        %v1052 = vmul.f32 %v1044, %v1051
        %v1053 = vmul.f32 %v1045, %v1051
        %v1054 = vadd.f32 %v1049, %v1052
        %v1055 = vadd.f32 %v1050, %v1053
        %v1056 = vadd.f32 %v992, %v1054
        %v1057 = vadd.f32 %v993, %v1055
        %v1058 = vld [vmem:[#allocation3 + $0x14a] sm:$0xff]
        %v1059 = vld [vmem:[#allocation3 + $0x152] sm:$0xff]
        %v1060 = vld [vmem:[#allocation3 + $0x16a] sm:$0xff]
        %v1061 = vld [vmem:[#allocation3 + $0x172] sm:$0xff]
        %s1062 = sld [smem:[#allocation4 + $0x50]]
        %s1063 = sld [smem:[#allocation4 + $0x51]]
        %v1064 = vstv %s1062
        %v1065 = vmul.f32 %v1058, %v1064
        %v1066 = vmul.f32 %v1059, %v1064
        %v1067 = vstv %s1063
        %v1068 = vmul.f32 %v1060, %v1067
        %v1069 = vmul.f32 %v1061, %v1067
        %v1070 = vadd.f32 %v1065, %v1068
        %v1071 = vadd.f32 %v1066, %v1069
        %v1072 = vadd.f32 %v1008, %v1070
        %v1073 = vadd.f32 %v1009, %v1071
        %v1074 = vld [vmem:[#allocation3 + $0x18a] sm:$0xff]
        %v1075 = vld [vmem:[#allocation3 + $0x192] sm:$0xff]
        %v1076 = vld [vmem:[#allocation3 + $0x1aa] sm:$0xff]
        %v1077 = vld [vmem:[#allocation3 + $0x1b2] sm:$0xff]
        %s1078 = sld [smem:[#allocation4 + $0x52]]
        %s1079 = sld [smem:[#allocation4 + $0x53]]
        %v1080 = vstv %s1078
        %v1081 = vmul.f32 %v1074, %v1080
        %v1082 = vmul.f32 %v1075, %v1080
        %v1083 = vstv %s1079
        %v1084 = vmul.f32 %v1076, %v1083
        %v1085 = vmul.f32 %v1077, %v1083
        %v1086 = vadd.f32 %v1081, %v1084
        %v1087 = vadd.f32 %v1082, %v1085
        %v1088 = vadd.f32 %v1024, %v1086
        %v1089 = vadd.f32 %v1025, %v1087
        %v1090 = vld [vmem:[#allocation3 + $0xb] sm:$0xff]
        %v1091 = vld [vmem:[#allocation3 + $0x13] sm:$0xff]
        %v1092 = vld [vmem:[#allocation3 + $0x2b] sm:$0xff]
        %v1093 = vld [vmem:[#allocation3 + $0x33] sm:$0xff]
        %s1094 = sld [smem:[#allocation4 + $0x54]]
        %s1095 = sld [smem:[#allocation4 + $0x55]]
        %v1096 = vstv %s1094
        %v1097 = vmul.f32 %v1090, %v1096
        %v1098 = vmul.f32 %v1091, %v1096
        %v1099 = vstv %s1095
        %v1100 = vmul.f32 %v1092, %v1099
        %v1101 = vmul.f32 %v1093, %v1099
        %v1102 = vadd.f32 %v1097, %v1100
        %v1103 = vadd.f32 %v1098, %v1101
        %v1104 = vadd.f32 %v1040, %v1102
        %v1105 = vadd.f32 %v1041, %v1103
        %v1106 = vld [vmem:[#allocation3 + $0x4b] sm:$0xff]
        %v1107 = vld [vmem:[#allocation3 + $0x53] sm:$0xff]
        %v1108 = vld [vmem:[#allocation3 + $0x6b] sm:$0xff]
        %v1109 = vld [vmem:[#allocation3 + $0x73] sm:$0xff]
        %s1110 = sld [smem:[#allocation4 + $0x56]]
        %s1111 = sld [smem:[#allocation4 + $0x57]]
        %v1112 = vstv %s1110
        %v1113 = vmul.f32 %v1106, %v1112
        %v1114 = vmul.f32 %v1107, %v1112
        %v1115 = vstv %s1111
        %v1116 = vmul.f32 %v1108, %v1115
        %v1117 = vmul.f32 %v1109, %v1115
        %v1118 = vadd.f32 %v1113, %v1116
        %v1119 = vadd.f32 %v1114, %v1117
        %v1120 = vadd.f32 %v1056, %v1118
        %v1121 = vadd.f32 %v1057, %v1119
        %v1122 = vld [vmem:[#allocation3 + $0x8b] sm:$0xff]
        %v1123 = vld [vmem:[#allocation3 + $0x93] sm:$0xff]
        %v1124 = vld [vmem:[#allocation3 + $0xab] sm:$0xff]
        %v1125 = vld [vmem:[#allocation3 + $0xb3] sm:$0xff]
        %s1126 = sld [smem:[#allocation4 + $0x58]]
        %s1127 = sld [smem:[#allocation4 + $0x59]]
        %v1128 = vstv %s1126
        %v1129 = vmul.f32 %v1122, %v1128
        %v1130 = vmul.f32 %v1123, %v1128
        %v1131 = vstv %s1127
        %v1132 = vmul.f32 %v1124, %v1131
        %v1133 = vmul.f32 %v1125, %v1131
        %v1134 = vadd.f32 %v1129, %v1132
        %v1135 = vadd.f32 %v1130, %v1133
        %v1136 = vadd.f32 %v1072, %v1134
        %v1137 = vadd.f32 %v1073, %v1135
        %v1138 = vld [vmem:[#allocation3 + $0xcb] sm:$0xff]
        %v1139 = vld [vmem:[#allocation3 + $0xd3] sm:$0xff]
        %v1140 = vld [vmem:[#allocation3 + $0xeb] sm:$0xff]
        %v1141 = vld [vmem:[#allocation3 + $0xf3] sm:$0xff]
        %s1142 = sld [smem:[#allocation4 + $0x5a]]
        %s1143 = sld [smem:[#allocation4 + $0x5b]]
        %v1144 = vstv %s1142
        %v1145 = vmul.f32 %v1138, %v1144
        %v1146 = vmul.f32 %v1139, %v1144
        %v1147 = vstv %s1143
        %v1148 = vmul.f32 %v1140, %v1147
        %v1149 = vmul.f32 %v1141, %v1147
        %v1150 = vadd.f32 %v1145, %v1148
        %v1151 = vadd.f32 %v1146, %v1149
        %v1152 = vadd.f32 %v1088, %v1150
        %v1153 = vadd.f32 %v1089, %v1151
        %v1154 = vld [vmem:[#allocation3 + $0x10b] sm:$0xff]
        %v1155 = vld [vmem:[#allocation3 + $0x113] sm:$0xff]
        %v1156 = vld [vmem:[#allocation3 + $0x12b] sm:$0xff]
        %v1157 = vld [vmem:[#allocation3 + $0x133] sm:$0xff]
        %s1158 = sld [smem:[#allocation4 + $0x5c]]
        %s1159 = sld [smem:[#allocation4 + $0x5d]]
        %v1160 = vstv %s1158
        %v1161 = vmul.f32 %v1154, %v1160
        %v1162 = vmul.f32 %v1155, %v1160
        %v1163 = vstv %s1159
        %v1164 = vmul.f32 %v1156, %v1163
        %v1165 = vmul.f32 %v1157, %v1163
        %v1166 = vadd.f32 %v1161, %v1164
        %v1167 = vadd.f32 %v1162, %v1165
        %v1168 = vadd.f32 %v1104, %v1166
        %v1169 = vadd.f32 %v1105, %v1167
        %v1170 = vld [vmem:[#allocation3 + $0x14b] sm:$0xff]
        %v1171 = vld [vmem:[#allocation3 + $0x153] sm:$0xff]
        %v1172 = vld [vmem:[#allocation3 + $0x16b] sm:$0xff]
        %v1173 = vld [vmem:[#allocation3 + $0x173] sm:$0xff]
        %s1174 = sld [smem:[#allocation4 + $0x5e]]
        %s1175 = sld [smem:[#allocation4 + $0x5f]]
        %v1176 = vstv %s1174
        %v1177 = vmul.f32 %v1170, %v1176
        %v1178 = vmul.f32 %v1171, %v1176
        %v1179 = vstv %s1175
        %v1180 = vmul.f32 %v1172, %v1179
        %v1181 = vmul.f32 %v1173, %v1179
        %v1182 = vadd.f32 %v1177, %v1180
        %v1183 = vadd.f32 %v1178, %v1181
        %v1184 = vadd.f32 %v1120, %v1182
        %v1185 = vadd.f32 %v1121, %v1183
        %v1186 = vld [vmem:[#allocation3 + $0x18b] sm:$0xff]
        %v1187 = vld [vmem:[#allocation3 + $0x193] sm:$0xff]
        %v1188 = vld [vmem:[#allocation3 + $0x1ab] sm:$0xff]
        %v1189 = vld [vmem:[#allocation3 + $0x1b3] sm:$0xff]
        %s1190 = sld [smem:[#allocation4 + $0x60]]
        %s1191 = sld [smem:[#allocation4 + $0x61]]
        %v1192 = vstv %s1190
        %v1193 = vmul.f32 %v1186, %v1192
        %v1194 = vmul.f32 %v1187, %v1192
        %v1195 = vstv %s1191
        %v1196 = vmul.f32 %v1188, %v1195
        %v1197 = vmul.f32 %v1189, %v1195
        %v1198 = vadd.f32 %v1193, %v1196
        %v1199 = vadd.f32 %v1194, %v1197
        %v1200 = vadd.f32 %v1136, %v1198
        %v1201 = vadd.f32 %v1137, %v1199
        %v1202 = vadd.f32 %v1200, %v1152
        %v1203 = vadd.f32 %v1201, %v1153
        %v1204 = vadd.f32 %v1168, %v1184
        %v1205 = vadd.f32 %v1169, %v1185
        %v1206 = vadd.f32 %v1202, %v1204
        %v1207 = vadd.f32 %v1203, %v1205
        %v1208 = vxor.u32 %v1206, 2147483648
        %v1209 = vxor.u32 %v1207, 2147483648
        %v1210 = vmul.f32 %v1208, 1.442695
        %v1211 = vpow.pop %v1210
        %v1212 = vmul.f32 %v1209, 1.442695
        %v1213 = vpow.pop %v1212
        %v1214 = vadd.f32 %v1211, 1.0
        %v1215 = vadd.f32 %v1213, 1.0
        %v1216 = vrcp.pop %v1214
        %v1217 = vmul.f32 1.0, %v1216
        %v1218 = vrcp.pop %v1215
        %v1219 = vmul.f32 1.0, %v1218
        %1220 = vst.msk [vmem:[%s240] sm:$0xff] %vm251, %v1217
        %1221 = vst.msk [vmem:[%s240 + $0x8] sm:$0xff] %vm251, %v1219
        %s1222 = sand.u32 %s105, 1
        %s1223 = scalar_lea.sflag [#allocation6], %s1222
        %s1224 = sand.u32 %s105, 1
        %s1225 = smul.addr %s1224, 16
        %s1226 = scalar_lea.vmem [#allocation11], %s1225
        // Predicated region
        $region45: #{conv_cbam_forward.6} parent=31 // pred_check
          %p1227 = pneg %p115
        $region46: #{conv_cbam_forward.6} parent=31 // pred_check_branch
          %1229 = sbr.rel (%p1227) target = $region48
        $region47: #{conv_cbam_forward.6} parent=31 // pred_region
          %s1231 = ssub.s32 256, 256
          %1232 = vsyncadd %s1223, %s1231
          %s1233 = smul.addr %s24, 2
          %s1234 = smul.addr %s1233, 128
          %s1235 = scalar_lea.hbm %s3, %s1234
          %s1236 = sshll.u32 %s1226, 4
          %s1237 = int_to_ptr.vmem [resolvable:$true] %s1236
          %1242 = dma.vmem_to_hbm [thread:$0]  %s1237, 256, %s1235, %s1223, 128, 128, 8
        $region48: #{conv_cbam_forward.6} parent=31 // pred_fallthru
          _
      $region32: #{conv_cbam_forward.6} parent=5 // pred_fallthru
        _
      %p1243 = scmp.le.s32.totalorder 2, %s19
      // Predicated region
      $region49: #{conv_cbam_forward.6} parent=5 // pred_check
        %p1244 = pneg %p1243
      $region50: #{conv_cbam_forward.6} parent=5 // pred_check_branch
        %1246 = sbr.rel (%p1244) target = $region52
      $region51: #{conv_cbam_forward.6} parent=5 // pred_region
        %s1247 = ssub.s32 %s19, 2
        // Predicated region
        $region53: #{conv_cbam_forward.6} parent=51 // pred_check
          %p1248 = pneg %p121
        $region54: #{conv_cbam_forward.6} parent=51 // pred_check_branch
          %1250 = sbr.rel (%p1248) target = $region56
        $region55: #{conv_cbam_forward.6} parent=51 // pred_region
          %s1251 = sand.u32 %s106, 1
          %s1252 = scalar_lea.sflag [#allocation6], %s1251
          %s1253 = sand.u32 %s106, 1
          %s1254 = smul.addr %s1253, 16
          %s1255 = scalar_lea.vmem [#allocation11], %s1254
          %1256 = dma.done %s1252, 256
        $region56: #{conv_cbam_forward.6} parent=51 // pred_fallthru
          _
      $region52: #{conv_cbam_forward.6} parent=5 // pred_fallthru
        _
    $region6: #{conv_cbam_forward.6} parent=1 // loop_footer
      %s23 = sadd.s32 1, %s19
    $region7: #{conv_cbam_forward.6} parent=1 // loop_footer_branch
      %18 = sbr.rel target = $region3
    $region8: #{conv_cbam_forward.6} parent=1 // loop_exit
      _
    %1257 = vsyncpa [#allocation5], 1
    %s1258 = scalar_lea.sflag [#allocation5], 1
    %1259 = vsyncpa %s1258, 1
    %1260 = vsyncpa [#allocation10], 1
    %s1261 = scalar_lea.sflag [#allocation10], 1
    %1262 = vsyncpa %s1261, 1
    %1263 = vsyncpa [#allocation6], 1
    %s1264 = scalar_lea.sflag [#allocation6], 1
    %1265 = vsyncpa %s1264, 1
    %1266 = vsyncpa [#allocation7], 1
    %s1267 = scalar_lea.sflag [#allocation7], 1
    %1268 = vsyncpa %s1267, 1

</llo_original>
